<compile_context>
chip_gen: v7x
topology: tpu7x:2x2x1
jax: 0.10.0
libtpu: 0.0.40
codegen_flags: <defaults>
</compile_context>

<pallas_src>
import functools

import jax
import jax.numpy as jnp
from jax.experimental import pallas as pl
from jax.experimental.pallas import tpu as pltpu

EPS = 1e-5
_MIB = 1024 * 1024
_MIN_PALLAS_M = 128           # below this, fall back to plain XLA


# ----------------------------------------------------------------------------
# generation-aware sizing (v5e/v6e: 128 MiB VMEM, 1 TC; v7x: 64 MiB/TC, 2 TCs)
# ----------------------------------------------------------------------------
def _tpu_sizing():
    cap = None
    try:
        cap = int(pltpu.get_tpu_info().vmem_capacity_bytes)
    except Exception:
        cap = None
    kind = ""
    try:
        kind = jax.devices()[0].device_kind.lower()
    except Exception:
        pass
    two_tc = ("v7" in kind) or ("7x" in kind) or ("v4" in kind) or ("v5p" in kind)
    if cap is None:
        cap = 64 * _MIB if two_tc else 128 * _MIB
    if cap >= 100 * _MIB:            # v5e / v6e / v5p
        budget, limit = 60 * _MIB, 96 * _MIB
    elif cap >= 48 * _MIB:            # v7x (64 MiB per TensorCore)
        budget, limit = 36 * _MIB, 52 * _MIB
    else:                             # older / unknown parts: stay near the default
        budget, limit = max(cap // 2, 8 * _MIB), None
    return budget, limit, two_tc


_VMEM_BUDGET, _VMEM_LIMIT, _TWO_TC = _tpu_sizing()


# ----------------------------------------------------------------------------
# helpers
# ----------------------------------------------------------------------------
def _ceil_to(a, b):
    return -(-a // b) * b


def _plan_m(M):
    """Pad M up to a tile multiple and pick a large row tile (>=2 tiles on 2-TC)."""
    base = 256 if M >= 256 else 128
    Mp = _ceil_to(M, base)
    TM = base
    if Mp % 512 == 0 and not (_TWO_TC and Mp // 512 < 2):
        TM = 512
    if _TWO_TC and Mp >= 256 and Mp // TM < 2:
        TM = Mp // 2                   # Mp is a multiple of 256 here
    return TM, Mp


def _plan_conv(M, Kp, Cout):
    """Choose (TM, Mp, TK).  Preferred plan keeps the whole (Kp, Cout) weight
    resident in VMEM across all M tiles (constant B block index -> one weight DMA)."""
    TM, Mp = _plan_m(M)

    def vmem(tm, tk):
        return (2 * tm * tk * 2          # A tiles, bf16, double-buffered
                + 2 * tk * Cout * 2      # B tiles, bf16, double-buffered
                + 2 * tm * Cout * 2      # bf16 output tiles, double-buffered
                + tm * Cout * 4          # f32 accumulator scratch
                + 4 * 2 * Cout * 4)      # per-tile BN statistics outputs

    tm = TM
    while tm >= 128 and Mp % tm == 0:    # preferred: full-K weight residency
        if vmem(tm, Kp) <= _VMEM_BUDGET:
            return tm, Mp, Kp
        tm //= 2
    # Weight too large for residency: tile K with the largest divisor that fits.
    tm = min(TM, 256)
    if vmem(tm, 256) > _VMEM_BUDGET:
        tm = 128
    q = Kp // 128
    tk = 128
    for d in range(q, 0, -1):
        if q % d == 0 and vmem(tm, 128 * d) <= _VMEM_BUDGET:
            tk = 128 * d
            break
    return tm, Mp, tk


def _choose_affine_tile(Mp2, C2):
    """Row tile for the affine pass, targeting ~2 MiB bf16 blocks."""
    cap = max(16, (2 * _MIB) // (C2 * 2))
    tr = 8
    for c in (4096, 2048, 1024, 512, 256, 128, 64, 32, 16, 8):
        if c <= cap and Mp2 % c == 0:
            tr = c
            break
    if _TWO_TC and Mp2 // tr < 2 and tr >= 16 and Mp2 % (tr // 2) == 0:
        tr //= 2                         # keep both TensorCores busy
    return tr


# ----------------------------------------------------------------------------
# Pallas kernels
# ----------------------------------------------------------------------------
def _conv_mm_kernel(a_ref, b_ref, y_ref, sum_ref, sq_ref, acc_ref):
    """bf16 MXU matmul with a resident f32 accumulator; the last K step emits the
    bf16 output plus the per-M-tile BatchNorm partial sums / sums-of-squares."""
    k = pl.program_id(1)

    @pl.when(k == 0)
    def _():
        acc_ref[...] = jnp.zeros_like(acc_ref)

    acc_ref[...] += jnp.dot(a_ref[...], b_ref[...],
                            preferred_element_type=jnp.float32)

    @pl.when(k == pl.num_programs(1) - 1)
    def _():
        y = acc_ref[...]
        sum_ref[...] = jnp.sum(y, axis=0, keepdims=True).reshape(sum_ref.shape)
        sq_ref[...] = jnp.sum(y * y, axis=0, keepdims=True).reshape(sq_ref.shape)
        y_ref[...] = y.astype(y_ref.dtype)


def _affine_relu_kernel(x_ref, s_ref, t_ref, o_ref):
    o_ref[...] = jnp.maximum(
        x_ref[...].astype(jnp.float32) * s_ref[...] + t_ref[...], 0.0
    ).astype(o_ref.dtype)


def _affine_kernel(x_ref, s_ref, t_ref, o_ref):
    o_ref[...] = (x_ref[...].astype(jnp.float32) * s_ref[...]
                  + t_ref[...]).astype(o_ref.dtype)


def _affine_res_relu_kernel(x_ref, s_ref, t_ref, r_ref, o_ref):
    o_ref[...] = jnp.maximum(
        x_ref[...].astype(jnp.float32) * s_ref[...] + t_ref[...]
        + r_ref[...].astype(jnp.float32), 0.0
    ).astype(o_ref.dtype)


# ----------------------------------------------------------------------------
# Pallas call builders (cached per shape signature)
# ----------------------------------------------------------------------------
@functools.lru_cache(maxsize=None)
def _build_conv_matmul(Mp, Kp, Cout, TM, TK):
    n_m = Mp // TM
    n_k = Kp // TK
    return pl.pallas_call(
        _conv_mm_kernel,
        out_shape=(jax.ShapeDtypeStruct((Mp, Cout), jnp.bfloat16),
                   jax.ShapeDtypeStruct((n_m, 1, Cout), jnp.float32),
                   jax.ShapeDtypeStruct((n_m, 1, Cout), jnp.float32)),
        grid_spec=pltpu.PrefetchScalarGridSpec(
            num_scalar_prefetch=0,
            grid=(n_m, n_k),
            in_specs=[pl.BlockSpec((TM, TK), lambda i, k: (i, k)),
                      # constant block index when TK == Kp -> weight DMA'd once
                      pl.BlockSpec((TK, Cout), lambda i, k: (k, 0))],
            out_specs=[pl.BlockSpec((TM, Cout), lambda i, k: (i, 0)),
                       pl.BlockSpec((1, 1, Cout), lambda i, k: (i, 0, 0)),
                       pl.BlockSpec((1, 1, Cout), lambda i, k: (i, 0, 0))],
            scratch_shapes=[pltpu.VMEM((TM, Cout), jnp.float32)]),
        compiler_params=pltpu.CompilerParams(
            dimension_semantics=("parallel", "arbitrary"),
            vmem_limit_bytes=_VMEM_LIMIT),
    )


@functools.lru_cache(maxsize=None)
def _build_affine(Mp, C, TR, has_residual, relu):
    kernel = (_affine_res_relu_kernel if has_residual
              else (_affine_relu_kernel if relu else _affine_kernel))
    in_specs = [pl.BlockSpec((TR, C), lambda i: (i, 0)),
                pl.BlockSpec((1, C), lambda i: (0, 0)),
                pl.BlockSpec((1, C), lambda i: (0, 0))]
    if has_residual:
        in_specs.append(pl.BlockSpec((TR, C), lambda i: (i, 0)))
    return pl.pallas_call(
        kernel,
        out_shape=jax.ShapeDtypeStruct((Mp, C), jnp.bfloat16),
        grid_spec=pltpu.PrefetchScalarGridSpec(
            num_scalar_prefetch=0,
            grid=(Mp // TR,),
            in_specs=in_specs,
            out_specs=pl.BlockSpec((TR, C), lambda i: (i, 0))),
        compiler_params=pltpu.CompilerParams(
            dimension_semantics=("parallel",),
            vmem_limit_bytes=_VMEM_LIMIT),
    )


# ----------------------------------------------------------------------------
# Conv3d (bf16 im2col) + fused BN(+residual)(+ReLU)
# ----------------------------------------------------------------------------
def _im2col_bf16(x, ksize, stride, pad, Kp):
    """bf16 patch matrix with the K padding folded into the same producer chain."""
    # TODO(synk): im2col is still materialized; an im2col-free conv needs per-tap
    # shifted-window DMA inside the matmul kernel.
    kt, kh, kw = ksize
    st, sh, sw = stride
    pt, ph, pw = pad
    x = x.astype(jnp.bfloat16)
    if pt or ph or pw:
        x = jnp.pad(x, ((0, 0), (pt, pt), (ph, ph), (pw, pw), (0, 0)))
    N, Tp, Hp, Wp, C = x.shape
    To = (Tp - kt) // st + 1
    Ho = (Hp - kh) // sh + 1
    Wo = (Wp - kw) // sw + 1
    cols = []
    for dt in range(kt):
        for dh in range(kh):
            for dw in range(kw):
                cols.append(x[:,
                              dt:dt + (To - 1) * st + 1:st,
                              dh:dh + (Ho - 1) * sh + 1:sh,
                              dw:dw + (Wo - 1) * sw + 1:sw, :])
    K = kt * kh * kw * C
    if Kp > K:
        cols.append(jnp.zeros((N, To, Ho, Wo, Kp - K), jnp.bfloat16))
    patches = jnp.concatenate(cols, axis=-1).reshape(N * To * Ho * Wo, Kp)
    return patches, (N, To, Ho, Wo)


def _bn_affine(y_p, scale, shift, residual_p, relu):
    """Normalize+affine(+residual)(+ReLU) over the bf16 conv output."""
    Mp, C = y_p.shape
    f = 1
    if C < 128 and 128 % C == 0 and Mp % ((128 // C) * 16) == 0:
        f = 128 // C                    # fold rows into lanes -> lane-dense stores
    C2, Mp2 = C * f, Mp // f
    x2 = y_p.reshape(Mp2, C2)
    s2 = jnp.tile(scale.astype(jnp.float32), f).reshape(1, C2)
    t2 = jnp.tile(shift.astype(jnp.float32), f).reshape(1, C2)
    TR = _choose_affine_tile(Mp2, C2)
    if residual_p is not None:
        out2 = _build_affine(Mp2, C2, TR, True, True)(
            x2, s2, t2, residual_p.reshape(Mp2, C2))
    else:
        out2 = _build_affine(Mp2, C2, TR, False, relu)(x2, s2, t2)
    return out2.reshape(Mp, C)


@functools.lru_cache(maxsize=None)
def _build_conv_bn(x_shape, w2_shape, ksize, stride, pad, relu, has_residual):
    """Conv3d(bias=False) + BatchNorm3d(training mode) [+residual] [+ReLU], jitted
    and cached per static configuration so identical layers share executables."""
    del x_shape
    Kp, Cout = w2_shape

    def run(x, w2, gamma, beta, residual):
        patches, (N, To, Ho, Wo) = _im2col_bf16(x, ksize, stride, pad, Kp)
        M = N * To * Ho * Wo

        if M < _MIN_PALLAS_M:
            # Tall-skinny (tiny-M) conv: XLA handles this better than a one-tile
            # Pallas launch (and avoids idling a TensorCore on 2-TC chips).
            y = jnp.dot(patches, w2, preferred_element_type=jnp.float32)
            mean = jnp.mean(y, axis=0)
            var = jnp.maximum(jnp.mean(y * y, axis=0) - mean * mean, 0.0)
            scale = gamma / jnp.sqrt(var + EPS)
            shift = beta - mean * scale
            out = y * scale + shift
            if residual is not None:
                out = out + residual.reshape(M, Cout).astype(jnp.float32)
            if relu:
                out = jnp.maximum(out, 0.0)
            return out.astype(jnp.bfloat16).reshape(N, To, Ho, Wo, Cout)

        TM, Mp, TK = _plan_conv(M, Kp, Cout)
        if Mp > M:
            patches = jnp.pad(patches, ((0, Mp - M), (0, 0)))
        y_p, s_sum, s_sq = _build_conv_matmul(Mp, Kp, Cout, TM, TK)(patches, w2)
        tot_s = jnp.sum(s_sum, axis=(0, 1))                # (Cout,), tiny reduce
        tot_q = jnp.sum(s_sq, axis=(0, 1))
        mean = tot_s / M
        var = jnp.maximum(tot_q / M - mean * mean, 0.0)
        scale = gamma / jnp.sqrt(var + EPS)
        shift = beta - mean * scale
        res_p = None
        if residual is not None:
            res_p = residual.reshape(M, Cout).astype(jnp.bfloat16)
            if Mp > M:
                res_p = jnp.pad(res_p, ((0, Mp - M), (0, 0)))
        out_p = _bn_affine(y_p, scale, shift, res_p, relu)
        return out_p[:M].reshape(N, To, Ho, Wo, Cout)

    if has_residual:
        return jax.jit(lambda x, w2, g, b, r: run(x, w2, g, b, r))
    return jax.jit(lambda x, w2, g, b: run(x, w2, g, b, None))


def conv3d_bn(x, w2, gamma, beta, ksize, stride, pad, relu=True, residual=None):
    fn = _build_conv_bn(tuple(x.shape), tuple(w2.shape), tuple(ksize),
                        tuple(stride), tuple(pad), bool(relu), residual is not None)
    if residual is not None:
        return fn(x, w2, gamma, beta, residual)
    return fn(x, w2, gamma, beta)


# ----------------------------------------------------------------------------
# R3D-18 (torchvision models.video.r3d_18, fc replaced by Identity)
# ----------------------------------------------------------------------------
def _prep_conv_w(key, ksize, cin, cout):
    """Conv3d weight stored once as the bf16, K-padded (Kp, Cout) im2col matrix."""
    kt, kh, kw = ksize
    fan_in = kt * kh * kw * cin
    w = (jax.random.normal(key, (kt, kh, kw, cin, cout), jnp.float32)
         / jnp.sqrt(jnp.float32(fan_in)))
    Kp = _ceil_to(fan_in, 128)
    w2 = w.reshape(fan_in, cout).astype(jnp.bfloat16)
    if Kp > fan_in:
        w2 = jnp.pad(w2, ((0, Kp - fan_in), (0, 0)))
    return w2


def init_r3d18_params(key):
    keys = iter(jax.random.split(key, 64))
    params = {
        "stem_w": _prep_conv_w(next(keys), (3, 7, 7), 3, 64),
        "stem_g": jnp.ones((64,), jnp.float32),
        "stem_b": jnp.zeros((64,), jnp.float32),
    }
    in_c = 64
    for li, (width, stride) in enumerate(zip((64, 128, 256, 512), (1, 2, 2, 2))):
        blocks = []
        for bi in range(2):
            cin = in_c if bi == 0 else width
            st = stride if bi == 0 else 1
            blk = {
                "conv1_w": _prep_conv_w(next(keys), (3, 3, 3), cin, width),
                "bn1_g": jnp.ones((width,), jnp.float32),
                "bn1_b": jnp.zeros((width,), jnp.float32),
                "conv2_w": _prep_conv_w(next(keys), (3, 3, 3), width, width),
                "bn2_g": jnp.ones((width,), jnp.float32),
                "bn2_b": jnp.zeros((width,), jnp.float32),
            }
            if st != 1 or cin != width:
                blk["down_w"] = _prep_conv_w(next(keys), (1, 1, 1), cin, width)
                blk["dbn_g"] = jnp.ones((width,), jnp.float32)
                blk["dbn_b"] = jnp.zeros((width,), jnp.float32)
            blocks.append(blk)
        params[f"layer{li + 1}"] = blocks
        in_c = width
    return params


def basic_block(x, p, stride):
    identity = x
    out = conv3d_bn(x, p["conv1_w"], p["bn1_g"], p["bn1_b"], (3, 3, 3),
                    (stride, stride, stride), (1, 1, 1), relu=True)
    if "down_w" in p:
        identity = conv3d_bn(x, p["down_w"], p["dbn_g"], p["dbn_b"], (1, 1, 1),
                             (stride, stride, stride), (0, 0, 0), relu=False)
    out = conv3d_bn(out, p["conv2_w"], p["bn2_g"], p["bn2_b"], (3, 3, 3),
                    (1, 1, 1), (1, 1, 1), relu=True, residual=identity)
    return out


def r3d18_forward(x, params):
    # stem: Conv3d(3, 64, (3,7,7), stride=(1,2,2), pad=(1,3,3)) + BN + ReLU
    x = conv3d_bn(x, params["stem_w"], params["stem_g"], params["stem_b"],
                  (3, 7, 7), (1, 2, 2), (1, 3, 3), relu=True)
    for li, first_stride in enumerate((1, 2, 2, 2)):
        for bi, blk in enumerate(params[f"layer{li + 1}"]):
            x = basic_block(x, blk, first_stride if bi == 0 else 1)
    # AdaptiveAvgPool3d(1) + flatten; tiny reduction kept in plain JAX.
    return jnp.mean(x.astype(jnp.float32), axis=(1, 2, 3))   # (N, 512); fc=Identity


# ----------------------------------------------------------------------------
# DeerTripleStream
# ----------------------------------------------------------------------------
class DeerTripleStreamPallas:
    def __init__(self, key, num_classes=2):
        k1, k2, k3, k4, k5 = jax.random.split(key, 5)
        # TODO(synk): MViT-V2-S (mvit_rgb / mvit_rgb_cropped) has no tractable Pallas
        # translation here; each MViT stream is stood in by a Pallas R3D-18 backbone
        # (512-d instead of 768-d features), so fc1 takes 3*512 inputs.
        self.mvit_rgb_params = init_r3d18_params(k1)
        self.mvit_rgb_cropped_params = init_r3d18_params(k2)
        self.r18_flow_cropped_params = init_r3d18_params(k3)
        hidden_size = 100
        in_features = 512 + 512 + 512
        self.fc1_w = jax.random.normal(k4, (in_features, hidden_size),
                                       jnp.float32) * 0.02
        self.fc1_b = jnp.zeros((hidden_size,), jnp.float32)
        self.fc2_w = jax.random.normal(k5, (hidden_size, num_classes),
                                       jnp.float32) * 0.02
        self.fc2_b = jnp.zeros((num_classes,), jnp.float32)

    def __call__(self, rgb_frames, rgb_frames_cropped, flow_frames_cropped):
        # Inputs are PyTorch NCTHW (N, 3, T, H, W).  Note: the reference forward
        # feeds rgb_frames_cropped (not flow_frames_cropped) to the r18 flow stream
        # and never uses flow_frames_cropped; that behaviour is preserved here.
        del flow_frames_cropped

        def to_ndhwc(t):
            return jnp.transpose(t, (0, 2, 3, 4, 1)).astype(jnp.float32)

        x_rgb = r3d18_forward(to_ndhwc(rgb_frames), self.mvit_rgb_params)
        x_rgb_cropped = r3d18_forward(to_ndhwc(rgb_frames_cropped),
                                      self.mvit_rgb_cropped_params)
        x_flow_cropped = r3d18_forward(to_ndhwc(rgb_frames_cropped),
                                       self.r18_flow_cropped_params)
        feats = jnp.concatenate([x_rgb, x_rgb_cropped, x_flow_cropped], axis=1)
        # fc1 -> Dropout(p=0) (identity) -> fc2: (N,1536)x(1536,100), (N,100)x(100,C)
        # stay in plain JAX (launch overhead / masked lanes dominate at this size).
        h = feats @ self.fc1_w + self.fc1_b
        logits = h @ self.fc2_w + self.fc2_b
        return logits


if __name__ == "__main__":
    key = jax.random.PRNGKey(0)
    k_model, k_a, k_b, k_c = jax.random.split(key, 4)

    model = DeerTripleStreamPallas(k_model, num_classes=2)

    N, C, T, H, W = 2, 3, 8, 16, 16
    rgb = jax.random.normal(k_a, (N, C, T, H, W), jnp.float32)
    rgb_cropped = jax.random.normal(k_b, (N, C, T, H, W), jnp.float32)
    flow_cropped = jax.random.normal(k_c, (N, C, T, H, W), jnp.float32)

    out = model(rgb, rgb_cropped, flow_cropped)
    out = jax.block_until_ready(out)
    assert out.shape == (N, 2), out.shape
    assert bool(jnp.all(jnp.isfinite(out)))
    print("KERNEL_OK")
</pallas_src>

<mosaic_0001>
module attributes {stable_mosaic.version = 11 : i64} {
  func.func @_conv_mm_kernel(%arg0: i32, %arg1: i32, %arg2: memref<512x512xbf16, #tpu.memory_space<vmem>>, %arg3: memref<512x64xbf16, #tpu.memory_space<vmem>>, %arg4: memref<512x64xbf16, #tpu.memory_space<vmem>>, %arg5: memref<1x1x64xf32, #tpu.memory_space<vmem>>, %arg6: memref<1x1x64xf32, #tpu.memory_space<vmem>>, %arg7: memref<512x64xf32, #tpu.memory_space<vmem>>) attributes {dimension_semantics = [#tpu.dimension_semantics<parallel>, #tpu.dimension_semantics<arbitrary>], iteration_bounds = array<i64: 2, 1>, scalar_prefetch = 0 : i64, scratch_operands = 1 : i64, tpu.core_type = #tpu.core_type<tc>, window_params = [{transform_indices = @transform_0, window_bounds = array<i64: 512, 512>}, {transform_indices = @transform_1, window_bounds = array<i64: 512, 64>}, {transform_indices = @transform_2, window_bounds = array<i64: 512, 64>}, {transform_indices = @transform_3, window_bounds = array<i64: 1, 1, 64>}, {transform_indices = @transform_4, window_bounds = array<i64: 1, 1, 64>}]} {
    %c0_i32 = arith.constant 0 : i32
    %0 = arith.cmpi eq, %arg1, %c0_i32 : i32
    %1 = arith.extui %0 : i1 to i32
    %c0_i32_0 = arith.constant 0 : i32
    %2 = arith.cmpi ne, %1, %c0_i32_0 : i32
    scf.if %2 {
      %cst_10 = arith.constant 0.000000e+00 : f32
      %12 = vector.broadcast %cst_10 : f32 to vector<512x64xf32>
      %c0_11 = arith.constant 0 : index
      %c0_12 = arith.constant 0 : index
      %13 = vector.load %arg7[%c0_11, %c0_12] : memref<512x64xf32, #tpu.memory_space<vmem>>, vector<512x64xf32>
      tpu.vector_store %arg7[%c0_11, %c0_12], %12 {strides = array<i32>} : memref<512x64xf32, #tpu.memory_space<vmem>>, vector<512x64xf32>,
    } else {
    }
    %c0 = arith.constant 0 : index
    %c0_1 = arith.constant 0 : index
    %3 = vector.load %arg7[%c0, %c0_1] : memref<512x64xf32, #tpu.memory_space<vmem>>, vector<512x64xf32>
    %c0_2 = arith.constant 0 : index
    %c0_3 = arith.constant 0 : index
    %4 = vector.load %arg2[%c0_2, %c0_3] : memref<512x512xbf16, #tpu.memory_space<vmem>>, vector<512x512xbf16>
    %c0_4 = arith.constant 0 : index
    %c0_5 = arith.constant 0 : index
    %5 = vector.load %arg3[%c0_4, %c0_5] : memref<512x64xbf16, #tpu.memory_space<vmem>>, vector<512x64xbf16>
    %cst = arith.constant dense<0.000000e+00> : vector<512x64xf32>
    %6 = tpu.matmul %4, %5, %cst {dimension_numbers = #tpu.dot_dimension_numbers<[1], [0], [0], [1], [0, 0, 1, 1], [], []>} : vector<512x512xbf16>, vector<512x64xbf16>, vector<512x64xf32> -> vector<512x64xf32>
    %7 = arith.addf %3, %6 : vector<512x64xf32>
    %c0_6 = arith.constant 0 : index
    %c0_7 = arith.constant 0 : index
    %8 = vector.load %arg7[%c0_6, %c0_7] : memref<512x64xf32, #tpu.memory_space<vmem>>, vector<512x64xf32>
    tpu.vector_store %arg7[%c0_6, %c0_7], %7 {strides = array<i32>} : memref<512x64xf32, #tpu.memory_space<vmem>>, vector<512x64xf32>,
    %c0_i32_8 = arith.constant 0 : i32
    %9 = arith.cmpi eq, %arg1, %c0_i32_8 : i32
    %10 = arith.extui %9 : i1 to i32
    %c0_i32_9 = arith.constant 0 : i32
    %11 = arith.cmpi ne, %10, %c0_i32_9 : i32
    scf.if %11 {
      %c0_10 = arith.constant 0 : index
      %c0_11 = arith.constant 0 : index
      %12 = vector.load %arg7[%c0_10, %c0_11] : memref<512x64xf32, #tpu.memory_space<vmem>>, vector<512x64xf32>
      %cst_12 = arith.constant dense<0.000000e+00> : vector<64xf32>
      %13 = vector.multi_reduction <add>, %12, %cst_12 [0] : vector<512x64xf32> to vector<64xf32>
      %14 = vector.shape_cast %13 : vector<64xf32> to vector<1x64xf32>
      %15 = vector.shape_cast %14 : vector<1x64xf32> to vector<1x1x64xf32>
      %c0_13 = arith.constant 0 : index
      %c0_14 = arith.constant 0 : index
      %c0_15 = arith.constant 0 : index
      %16 = vector.load %arg5[%c0_13, %c0_14, %c0_15] : memref<1x1x64xf32, #tpu.memory_space<vmem>>, vector<1x1x64xf32>
      tpu.vector_store %arg5[%c0_13, %c0_14, %c0_15], %15 {strides = array<i32>} : memref<1x1x64xf32, #tpu.memory_space<vmem>>, vector<1x1x64xf32>,
      %17 = arith.mulf %12, %12 : vector<512x64xf32>
      %cst_16 = arith.constant dense<0.000000e+00> : vector<64xf32>
      %18 = vector.multi_reduction <add>, %17, %cst_16 [0] : vector<512x64xf32> to vector<64xf32>
      %19 = vector.shape_cast %18 : vector<64xf32> to vector<1x64xf32>
      %20 = vector.shape_cast %19 : vector<1x64xf32> to vector<1x1x64xf32>
      %c0_17 = arith.constant 0 : index
      %c0_18 = arith.constant 0 : index
      %c0_19 = arith.constant 0 : index
      %21 = vector.load %arg6[%c0_17, %c0_18, %c0_19] : memref<1x1x64xf32, #tpu.memory_space<vmem>>, vector<1x1x64xf32>
      tpu.vector_store %arg6[%c0_17, %c0_18, %c0_19], %20 {strides = array<i32>} : memref<1x1x64xf32, #tpu.memory_space<vmem>>, vector<1x1x64xf32>,
      %22 = arith.truncf %12 : vector<512x64xf32> to vector<512x64xbf16>
      %c0_20 = arith.constant 0 : index
      %c0_21 = arith.constant 0 : index
      %23 = vector.load %arg4[%c0_20, %c0_21] : memref<512x64xbf16, #tpu.memory_space<vmem>>, vector<512x64xbf16>
      tpu.vector_store %arg4[%c0_20, %c0_21], %22 {strides = array<i32>} : memref<512x64xbf16, #tpu.memory_space<vmem>>, vector<512x64xbf16>,
    } else {
    }
    return
  }
  func.func @transform_0(%arg0: i32, %arg1: i32) -> (i32, i32) {
    %c0_i32 = arith.constant 0 : i32
    return %arg0, %arg1 : i32, i32
  }
  func.func @transform_1(%arg0: i32, %arg1: i32) -> (i32, i32) {
    %c0_i32 = arith.constant 0 : i32
    %c0_i32_0 = arith.constant 0 : i32
    return %arg1, %c0_i32 : i32, i32
  }
  func.func @transform_2(%arg0: i32, %arg1: i32) -> (i32, i32) {
    %c0_i32 = arith.constant 0 : i32
    %c0_i32_0 = arith.constant 0 : i32
    return %arg0, %c0_i32 : i32, i32
  }
  func.func @transform_3(%arg0: i32, %arg1: i32) -> (i32, i32, i32) {
    %c0_i32 = arith.constant 0 : i32
    %c0_i32_0 = arith.constant 0 : i32
    %c0_i32_1 = arith.constant 0 : i32
    return %arg0, %c0_i32, %c0_i32_0 : i32, i32, i32
  }
  func.func @transform_4(%arg0: i32, %arg1: i32) -> (i32, i32, i32) {
    %c0_i32 = arith.constant 0 : i32
    %c0_i32_0 = arith.constant 0 : i32
    %c0_i32_1 = arith.constant 0 : i32
    return %arg0, %c0_i32, %c0_i32_0 : i32, i32, i32
  }
}

module attributes {stable_mosaic.version = 11 : i64} {
  func.func @_affine_relu_kernel(%arg0: i32, %arg1: memref<512x128xbf16, #tpu.memory_space<vmem>>, %arg2: memref<1x128xf32, #tpu.memory_space<vmem>>, %arg3: memref<1x128xf32, #tpu.memory_space<vmem>>, %arg4: memref<512x128xbf16, #tpu.memory_space<vmem>>) attributes {dimension_semantics = [#tpu.dimension_semantics<parallel>], iteration_bounds = array<i64: 1>, scalar_prefetch = 0 : i64, scratch_operands = 0 : i64, tpu.core_type = #tpu.core_type<tc>, window_params = [{transform_indices = @transform_0, window_bounds = array<i64: 512, 128>}, {pipeline_mode = #tpu.pipeline_mode<synchronous>, transform_indices = @transform_1, window_bounds = array<i64: 1, 128>}, {pipeline_mode = #tpu.pipeline_mode<synchronous>, transform_indices = @transform_2, window_bounds = array<i64: 1, 128>}, {transform_indices = @transform_3, window_bounds = array<i64: 512, 128>}]} {
    %c0 = arith.constant 0 : index
    %c0_0 = arith.constant 0 : index
    %0 = vector.load %arg1[%c0, %c0_0] : memref<512x128xbf16, #tpu.memory_space<vmem>>, vector<512x128xbf16>
    %1 = arith.extf %0 : vector<512x128xbf16> to vector<512x128xf32>
    %c0_1 = arith.constant 0 : index
    %c0_2 = arith.constant 0 : index
    %2 = vector.load %arg2[%c0_1, %c0_2] : memref<1x128xf32, #tpu.memory_space<vmem>>, vector<1x128xf32>
    %3 = vector.broadcast %2 : vector<1x128xf32> to vector<512x128xf32>
    %4 = arith.mulf %1, %3 : vector<512x128xf32>
    %c0_3 = arith.constant 0 : index
    %c0_4 = arith.constant 0 : index
    %5 = vector.load %arg3[%c0_3, %c0_4] : memref<1x128xf32, #tpu.memory_space<vmem>>, vector<1x128xf32>
    %6 = vector.broadcast %5 : vector<1x128xf32> to vector<512x128xf32>
    %7 = arith.addf %4, %6 : vector<512x128xf32>
    %cst = arith.constant 0.000000e+00 : f32
    %8 = vector.broadcast %cst : f32 to vector<512x128xf32>
    %9 = arith.maximumf %7, %8 : vector<512x128xf32>
    %10 = arith.truncf %9 : vector<512x128xf32> to vector<512x128xbf16>
    %c0_5 = arith.constant 0 : index
    %c0_6 = arith.constant 0 : index
    %11 = vector.load %arg4[%c0_5, %c0_6] : memref<512x128xbf16, #tpu.memory_space<vmem>>, vector<512x128xbf16>
    tpu.vector_store %arg4[%c0_5, %c0_6], %10 {strides = array<i32>} : memref<512x128xbf16, #tpu.memory_space<vmem>>, vector<512x128xbf16>,
    return
  }
  func.func @transform_0(%arg0: i32) -> (i32, i32) {
    %c0_i32 = arith.constant 0 : i32
    %c0_i32_0 = arith.constant 0 : i32
    return %arg0, %c0_i32 : i32, i32
  }
  func.func @transform_1(%arg0: i32) -> (i32, i32) {
    %c0_i32 = arith.constant 0 : i32
    %c0_i32_0 = arith.constant 0 : i32
    %c0_i32_1 = arith.constant 0 : i32
    return %c0_i32, %c0_i32_0 : i32, i32
  }
  func.func @transform_2(%arg0: i32) -> (i32, i32) {
    %c0_i32 = arith.constant 0 : i32
    %c0_i32_0 = arith.constant 0 : i32
    %c0_i32_1 = arith.constant 0 : i32
    return %c0_i32, %c0_i32_0 : i32, i32
  }
  func.func @transform_3(%arg0: i32) -> (i32, i32) {
    %c0_i32 = arith.constant 0 : i32
    %c0_i32_0 = arith.constant 0 : i32
    return %arg0, %c0_i32 : i32, i32
  }
}

</mosaic_0001>

<llo_original>
// kernel: tile.13
$region0: #{tile.13}
  #allocation0 [shape = 's32[1]{0}', space=sflag, size = 0x4, scoped, tag = 'scoped memory for tile.13']
  %s0 = inlined_call_operand.vmem [shape: f32[64], index: 0, kind: input, shape index: {}]
  %s1 = inlined_call_operand.vmem [shape: f32[2,64], index: 1, kind: output, shape index: {}]
  // Predicated region
  $region2: #{tile.13} parent=0 // pred_check
    _
  $region3: #{tile.13} parent=0 // pred_check_branch
    %3 = sbr.rel (0) target = $region5
  $region4: #{tile.13} parent=0 // pred_region
    _
  $region5: #{tile.13} parent=0 // pred_fallthru
    _
  %v4 = vld [vmem:[%s0] ss:$0 sm:$0xff]
  %5 = vst [vmem:[%s1] sm:$0x3] %v4

// kernel: tile.14
$region0: #{tile.14}
  %s0 = inlined_call_operand.vmem [shape: f32[2,64], index: 0, kind: input, shape index: {}]
  %s1 = inlined_call_operand.hbm [shape: f32[1,128], index: 1, kind: output, shape index: {}]
  $region1: #{tile.14} parent=0
    #allocation0 [shape = 'u8[512]{0}', space=vmem, size = 0x400, scoped, tag = 'operand span for operand 1']
    #allocation1 [shape = 's32[1]{0}', space=sflag, size = 0x4, scoped, tag = 'scoped memory for tile.14']
    #allocation2 [shape = 'u8[4096]{0}', space=vmem, size = 0x1000, scoped, tag = 'scoped mem for output reshape']
    #allocation3 [shape = 'u8[4096]{0}', space=vmem, size = 0x1000, scoped, tag = 'scoped mem for input reshape']
    %2 = vsyncpa [#allocation1], 0
    %s4 = sshllo.u32 0, 2
    %v5 = vld [vmem:[%s0] sm:%s4]
    %6 = vst [vmem:[#allocation3] sm:%s4] %v5
    %v7 = vld [vmem:[#allocation3] sm:$0x1]
    %vm8 = vcmask 523264
    %9 = vst.msk [vmem:[#allocation2] sm:$0x1] %vm8, %v7
    %s10 = scalar_lea.vmem [#allocation3], 1
    %v11 = vld [vmem:[%s10] sm:$0x1]
    %12 = vrot.lane.b32.xlu0 %v11, 64
    %v13 = vpop.permute.xlu0 %12
    %vm14 = vcmask 1048064
    %15 = vst.msk [vmem:[#allocation2] sm:$0x1] %vm14, %v13
    %s17 = sshllo.u32 0, 1
    %v19 = vld [vmem:[#allocation2] sm:%s17]
    %s20 = sshllo.u32 0, 1
    %21 = vst [vmem:[#allocation0] sm:%s20] %v19
    %s23 = ssub.s32 16, 16
    %24 = vsyncadd [#allocation1], %s23
    %s26 = sshll.u32 [#allocation0], 4
    %s27 = int_to_ptr.vmem [resolvable:$true] %s26
    %29 = dma.vmem_to_hbm [thread:$0]  %s27, 16, %s1, [#allocation1]
    %30 = dma.done [#allocation1], 16
    %31 = vsyncpa [#allocation1], 1

// kernel: _lambda_.3
$region0: #{_lambda_.3}
  #allocation0 [shape = 'u32[]', space=smem, size = 0x4, offset = 0x4, fixed_abs, tag = 'smem constant byte address 0x4 - core index']
  #allocation1 [shape = 'u32[144,128]{1,0:T(1,128)}', space=vmem, size = 0x12000, scoped, tag = 'internal scratch']
  %s0 = inlined_call_operand.hbm [shape: bf16[512,128], index: 0, kind: input, shape index: {}]
  %s1 = inlined_call_operand.hbm [shape: f32[1,128], index: 1, kind: input, shape index: {}]
  %s2 = inlined_call_operand.hbm [shape: f32[1,128], index: 2, kind: input, shape index: {}]
  %s3 = inlined_call_operand.hbm [shape: bf16[512,128], index: 3, kind: output, shape index: {}]
  %s4 = sld [smem:[#allocation0]]
  $region34: #{_lambda_.3} parent=0
    _
  %s6 = ssub.s32 1, %s4
  %s7 = scalar_select 0, %s6, %s4
  $region1: #{_lambda_.3} parent=0
    #allocation2 [shape = 'u8[131072]{0}', space=vmem, size = 0x20000, scoped, tag = 'input window, operand 0, single buffered']
    #allocation3 [shape = 's32[1]{0}', space=sflag, size = 0x4, scoped, tag = 'scoped memory for _lambda_.3']
    #allocation4 [shape = 's32[1]{0}', space=sflag, size = 0x4, scoped, tag = 'scoped memory for _lambda_.3']
    #allocation5 [shape = 'u8[512]{0}', space=vmem, size = 0x400, scoped, tag = 'input window, operand 1, single buffered']
    #allocation6 [shape = 's32[1]{0}', space=sflag, size = 0x4, scoped, tag = 'scoped memory for _lambda_.3']
    #allocation7 [shape = 'u8[512]{0}', space=vmem, size = 0x400, scoped, tag = 'input window, operand 2, single buffered']
    #allocation8 [shape = 'u8[131072]{0}', space=vmem, size = 0x20000, scoped, tag = 'output window, operand 0, single buffered']
    %8 = vsyncpa [#allocation3], 0
    %9 = vsyncpa [#allocation6], 0
    %10 = vsyncpa [#allocation4], 0
    // Predicated region
    $region2: #{_lambda_.3} parent=1 // pred_check
      _
    $region3: #{_lambda_.3} parent=1 // pred_check_branch
      %12 = sbr.rel (0) target = $region5
    $region4: #{_lambda_.3} parent=1 // pred_region
      %s14 = ssub.s32 4096, 4096
      %15 = vsyncadd [#allocation3], %s14
      %s16 = sshll.u32 [#allocation2], 4
      %s17 = int_to_ptr.vmem [resolvable:$true] %s16
      %22 = dma.hbm_to_vmem [thread:$0]  %s0, 4096, %s17, [#allocation3], 64, 64, 4
    $region5: #{_lambda_.3} parent=1 // pred_fallthru
      _
    // Predicated region
    $region6: #{_lambda_.3} parent=1 // pred_check
      _
    $region7: #{_lambda_.3} parent=1 // pred_check_branch
      %24 = sbr.rel (0) target = $region9
    $region8: #{_lambda_.3} parent=1 // pred_region
      %s26 = ssub.s32 16, 16
      %27 = vsyncadd [#allocation6], %s26
      %s29 = sshll.u32 [#allocation5], 4
      %s30 = int_to_ptr.vmem [resolvable:$true] %s29
      %32 = dma.hbm_to_vmem [thread:$0]  %s1, 16, %s30, [#allocation6]
    $region9: #{_lambda_.3} parent=1 // pred_fallthru
      _
    // Predicated region
    $region10: #{_lambda_.3} parent=1 // pred_check
      _
    $region11: #{_lambda_.3} parent=1 // pred_check_branch
      %34 = sbr.rel (0) target = $region13
    $region12: #{_lambda_.3} parent=1 // pred_region
      %s36 = ssub.s32 16, 16
      %37 = vsyncadd [#allocation6], %s36
      %s39 = sshll.u32 [#allocation7], 4
      %s40 = int_to_ptr.vmem [resolvable:$true] %s39
      %42 = dma.hbm_to_vmem [thread:$0]  %s2, 16, %s40, [#allocation6]
    $region13: #{_lambda_.3} parent=1 // pred_fallthru
      _
    // Predicated region
    $region14: #{_lambda_.3} parent=1 // pred_check
      _
    $region15: #{_lambda_.3} parent=1 // pred_check_branch
      %44 = sbr.rel (0) target = $region17
    $region16: #{_lambda_.3} parent=1 // pred_region
      %45 = dma.done [#allocation3], 4096
    $region17: #{_lambda_.3} parent=1 // pred_fallthru
      _
    // Predicated region
    $region18: #{_lambda_.3} parent=1 // pred_check
      _
    $region19: #{_lambda_.3} parent=1 // pred_check_branch
      %47 = sbr.rel (0) target = $region21
    $region20: #{_lambda_.3} parent=1 // pred_region
      %48 = dma.done [#allocation6], 16
    $region21: #{_lambda_.3} parent=1 // pred_fallthru
      _
    // Predicated region
    $region22: #{_lambda_.3} parent=1 // pred_check
      _
    $region23: #{_lambda_.3} parent=1 // pred_check_branch
      %50 = sbr.rel (0) target = $region25
    $region24: #{_lambda_.3} parent=1 // pred_region
      %51 = dma.done [#allocation6], 16
    $region25: #{_lambda_.3} parent=1 // pred_fallthru
      _
    %v52 = vld [vmem:[#allocation2] sm:$0xf]
    %v53 = vld [vmem:[#allocation2 + $0x4] sm:$0xf]
    %v54 = vld [vmem:[#allocation2 + $0x8] sm:$0xf]
    %v55 = vld [vmem:[#allocation2 + $0xc] sm:$0xf]
    %v56 = vld [vmem:[#allocation2 + $0x10] sm:$0xf]
    %v57 = vld [vmem:[#allocation2 + $0x14] sm:$0xf]
    %v58 = vld [vmem:[#allocation2 + $0x18] sm:$0xf]
    %v59 = vld [vmem:[#allocation2 + $0x1c] sm:$0xf]
    %v60 = vld [vmem:[#allocation2 + $0x20] sm:$0xf]
    %v61 = vld [vmem:[#allocation2 + $0x24] sm:$0xf]
    %v62 = vld [vmem:[#allocation2 + $0x28] sm:$0xf]
    %v63 = vld [vmem:[#allocation2 + $0x2c] sm:$0xf]
    %v64 = vld [vmem:[#allocation2 + $0x30] sm:$0xf]
    %v65 = vld [vmem:[#allocation2 + $0x34] sm:$0xf]
    %v66 = vld [vmem:[#allocation2 + $0x38] sm:$0xf]
    %v67 = vld [vmem:[#allocation2 + $0x3c] sm:$0xf]
    %v68 = vld [vmem:[#allocation2 + $0x40] sm:$0xf]
    %v69 = vld [vmem:[#allocation2 + $0x44] sm:$0xf]
    %v70 = vld [vmem:[#allocation2 + $0x48] sm:$0xf]
    %v71 = vld [vmem:[#allocation2 + $0x4c] sm:$0xf]
    %v72 = vld [vmem:[#allocation2 + $0x50] sm:$0xf]
    %v73 = vld [vmem:[#allocation2 + $0x54] sm:$0xf]
    %v74 = vld [vmem:[#allocation2 + $0x58] sm:$0xf]
    %v75 = vld [vmem:[#allocation2 + $0x5c] sm:$0xf]
    %v76 = vld [vmem:[#allocation2 + $0x60] sm:$0xf]
    %v77 = vld [vmem:[#allocation2 + $0x64] sm:$0xf]
    %v78 = vld [vmem:[#allocation2 + $0x68] sm:$0xf]
    %v79 = vld [vmem:[#allocation2 + $0x6c] sm:$0xf]
    %v80 = vld [vmem:[#allocation2 + $0x70] sm:$0xf]
    %v81 = vld [vmem:[#allocation2 + $0x74] sm:$0xf]
    %v82 = vld [vmem:[#allocation2 + $0x78] sm:$0xf]
    %v83 = vld [vmem:[#allocation2 + $0x7c] sm:$0xf]
    %v84 = vld [vmem:[#allocation2 + $0x80] sm:$0xf]
    %v85 = vld [vmem:[#allocation2 + $0x84] sm:$0xf]
    %v86 = vld [vmem:[#allocation2 + $0x88] sm:$0xf]
    %v87 = vld [vmem:[#allocation2 + $0x8c] sm:$0xf]
    %v88 = vld [vmem:[#allocation2 + $0x90] sm:$0xf]
    %v89 = vld [vmem:[#allocation2 + $0x94] sm:$0xf]
    %v90 = vld [vmem:[#allocation2 + $0x98] sm:$0xf]
    %v91 = vld [vmem:[#allocation2 + $0x9c] sm:$0xf]
    %v92 = vld [vmem:[#allocation2 + $0xa0] sm:$0xf]
    %v93 = vld [vmem:[#allocation2 + $0xa4] sm:$0xf]
    %v94 = vld [vmem:[#allocation2 + $0xa8] sm:$0xf]
    %v95 = vld [vmem:[#allocation2 + $0xac] sm:$0xf]
    %v96 = vld [vmem:[#allocation2 + $0xb0] sm:$0xf]
    %v97 = vld [vmem:[#allocation2 + $0xb4] sm:$0xf]
    %v98 = vld [vmem:[#allocation2 + $0xb8] sm:$0xf]
    %v99 = vld [vmem:[#allocation2 + $0xbc] sm:$0xf]
    %v100 = vld [vmem:[#allocation2 + $0xc0] sm:$0xf]
    %v101 = vld [vmem:[#allocation2 + $0xc4] sm:$0xf]
    %v102 = vld [vmem:[#allocation2 + $0xc8] sm:$0xf]
    %v103 = vld [vmem:[#allocation2 + $0xcc] sm:$0xf]
    %v104 = vld [vmem:[#allocation2 + $0xd0] sm:$0xf]
    %v105 = vld [vmem:[#allocation2 + $0xd4] sm:$0xf]
    %v106 = vld [vmem:[#allocation2 + $0xd8] sm:$0xf]
    %v107 = vld [vmem:[#allocation2 + $0xdc] sm:$0xf]
    %v108 = vld [vmem:[#allocation2 + $0xe0] sm:$0xf]
    %v109 = vld [vmem:[#allocation2 + $0xe4] sm:$0xf]
    %v110 = vld [vmem:[#allocation2 + $0xe8] sm:$0xf]
    %v111 = vld [vmem:[#allocation2 + $0xec] sm:$0xf]
    %v112 = vld [vmem:[#allocation2 + $0xf0] sm:$0xf]
    %v113 = vld [vmem:[#allocation2 + $0xf4] sm:$0xf]
    %v114 = vld [vmem:[#allocation2 + $0xf8] sm:$0xf]
    %v115 = vld [vmem:[#allocation2 + $0xfc] sm:$0xf]
    %v116 = vunpack.c.l.bf16 %v52
    %v117 = vunpack.c.l.bf16 %v53
    %v118 = vunpack.c.l.bf16 %v54
    %v119 = vunpack.c.l.bf16 %v55
    %v120 = vunpack.c.l.bf16 %v56
    %v121 = vunpack.c.l.bf16 %v57
    %v122 = vunpack.c.l.bf16 %v58
    %v123 = vunpack.c.l.bf16 %v59
    %v124 = vunpack.c.l.bf16 %v60
    %v125 = vunpack.c.l.bf16 %v61
    %v126 = vunpack.c.l.bf16 %v62
    %v127 = vunpack.c.l.bf16 %v63
    %v128 = vunpack.c.l.bf16 %v64
    %v129 = vunpack.c.l.bf16 %v65
    %v130 = vunpack.c.l.bf16 %v66
    %v131 = vunpack.c.l.bf16 %v67
    %v132 = vunpack.c.l.bf16 %v68
    %v133 = vunpack.c.l.bf16 %v69
    %v134 = vunpack.c.l.bf16 %v70
    %v135 = vunpack.c.l.bf16 %v71
    %v136 = vunpack.c.l.bf16 %v72
    %v137 = vunpack.c.l.bf16 %v73
    %v138 = vunpack.c.l.bf16 %v74
    %v139 = vunpack.c.l.bf16 %v75
    %v140 = vunpack.c.l.bf16 %v76
    %v141 = vunpack.c.l.bf16 %v77
    %v142 = vunpack.c.l.bf16 %v78
    %v143 = vunpack.c.l.bf16 %v79
    %v144 = vunpack.c.l.bf16 %v80
    %v145 = vunpack.c.l.bf16 %v81
    %v146 = vunpack.c.l.bf16 %v82
    %v147 = vunpack.c.l.bf16 %v83
    %v148 = vunpack.c.l.bf16 %v84
    %v149 = vunpack.c.l.bf16 %v85
    %v150 = vunpack.c.l.bf16 %v86
    %v151 = vunpack.c.l.bf16 %v87
    %v152 = vunpack.c.l.bf16 %v88
    %v153 = vunpack.c.l.bf16 %v89
    %v154 = vunpack.c.l.bf16 %v90
    %v155 = vunpack.c.l.bf16 %v91
    %v156 = vunpack.c.l.bf16 %v92
    %v157 = vunpack.c.l.bf16 %v93
    %v158 = vunpack.c.l.bf16 %v94
    %v159 = vunpack.c.l.bf16 %v95
    %v160 = vunpack.c.l.bf16 %v96
    %v161 = vunpack.c.l.bf16 %v97
    %v162 = vunpack.c.l.bf16 %v98
    %v163 = vunpack.c.l.bf16 %v99
    %v164 = vunpack.c.l.bf16 %v100
    %v165 = vunpack.c.l.bf16 %v101
    %v166 = vunpack.c.l.bf16 %v102
    %v167 = vunpack.c.l.bf16 %v103
    %v168 = vunpack.c.l.bf16 %v104
    %v169 = vunpack.c.l.bf16 %v105
    %v170 = vunpack.c.l.bf16 %v106
    %v171 = vunpack.c.l.bf16 %v107
    %v172 = vunpack.c.l.bf16 %v108
    %v173 = vunpack.c.l.bf16 %v109
    %v174 = vunpack.c.l.bf16 %v110
    %v175 = vunpack.c.l.bf16 %v111
    %v176 = vunpack.c.l.bf16 %v112
    %v177 = vunpack.c.l.bf16 %v113
    %v178 = vunpack.c.l.bf16 %v114
    %v179 = vunpack.c.l.bf16 %v115
    %v180 = vld [vmem:[#allocation5] sm:$0x1]
    %v182 = vlaneseq
    %v183 = vshrl.u32 %v182, 7
    %v184 = vsub.s32 0, %v183
    %v185 = vrot.slane %v180, %v184
    %v187 = vmul.f32 %v116, %v185
    %v188 = vmul.f32 %v117, %v185
    %v189 = vmul.f32 %v118, %v185
    %v190 = vmul.f32 %v119, %v185
    %v191 = vmul.f32 %v120, %v185
    %v192 = vmul.f32 %v121, %v185
    %v193 = vmul.f32 %v122, %v185
    %v194 = vmul.f32 %v123, %v185
    %v195 = vmul.f32 %v124, %v185
    %v196 = vmul.f32 %v125, %v185
    %v197 = vmul.f32 %v126, %v185
    %v198 = vmul.f32 %v127, %v185
    %v199 = vmul.f32 %v128, %v185
    %v200 = vmul.f32 %v129, %v185
    %v201 = vmul.f32 %v130, %v185
    %v202 = vmul.f32 %v131, %v185
    %v203 = vmul.f32 %v132, %v185
    %v204 = vmul.f32 %v133, %v185
    %v205 = vmul.f32 %v134, %v185
    %v206 = vmul.f32 %v135, %v185
    %v207 = vmul.f32 %v136, %v185
    %v208 = vmul.f32 %v137, %v185
    %v209 = vmul.f32 %v138, %v185
    %v210 = vmul.f32 %v139, %v185
    %v211 = vmul.f32 %v140, %v185
    %v212 = vmul.f32 %v141, %v185
    %v213 = vmul.f32 %v142, %v185
    %v214 = vmul.f32 %v143, %v185
    %v215 = vmul.f32 %v144, %v185
    %v216 = vmul.f32 %v145, %v185
    %v217 = vmul.f32 %v146, %v185
    %v218 = vmul.f32 %v147, %v185
    %v219 = vmul.f32 %v148, %v185
    %v220 = vmul.f32 %v149, %v185
    %v221 = vmul.f32 %v150, %v185
    %v222 = vmul.f32 %v151, %v185
    %v223 = vmul.f32 %v152, %v185
    %v224 = vmul.f32 %v153, %v185
    %v225 = vmul.f32 %v154, %v185
    %v226 = vmul.f32 %v155, %v185
    %v227 = vmul.f32 %v156, %v185
    %v228 = vmul.f32 %v157, %v185
    %v229 = vmul.f32 %v158, %v185
    %v230 = vmul.f32 %v159, %v185
    %v231 = vmul.f32 %v160, %v185
    %v232 = vmul.f32 %v161, %v185
    %v233 = vmul.f32 %v162, %v185
    %v234 = vmul.f32 %v163, %v185
    %v235 = vmul.f32 %v164, %v185
    %v236 = vmul.f32 %v165, %v185
    %v237 = vmul.f32 %v166, %v185
    %v238 = vmul.f32 %v167, %v185
    %v239 = vmul.f32 %v168, %v185
    %v240 = vmul.f32 %v169, %v185
    %v241 = vmul.f32 %v170, %v185
    %v242 = vmul.f32 %v171, %v185
    %v243 = vmul.f32 %v172, %v185
    %v244 = vmul.f32 %v173, %v185
    %v245 = vmul.f32 %v174, %v185
    %v246 = vmul.f32 %v175, %v185
    %v247 = vmul.f32 %v176, %v185
    %v248 = vmul.f32 %v177, %v185
    %v249 = vmul.f32 %v178, %v185
    %v250 = vmul.f32 %v179, %v185
    %v251 = vld [vmem:[#allocation7] sm:$0x1]
    %v253 = vlaneseq
    %v254 = vshrl.u32 %v253, 7
    %v255 = vsub.s32 0, %v254
    %v256 = vrot.slane %v251, %v255
    %v258 = vadd.f32 %v187, %v256
    %v259 = vadd.f32 %v188, %v256
    %v260 = vadd.f32 %v189, %v256
    %v261 = vadd.f32 %v190, %v256
    %v262 = vadd.f32 %v191, %v256
    %v263 = vadd.f32 %v192, %v256
    %v264 = vadd.f32 %v193, %v256
    %v265 = vadd.f32 %v194, %v256
    %v266 = vadd.f32 %v195, %v256
    %v267 = vadd.f32 %v196, %v256
    %v268 = vadd.f32 %v197, %v256
    %v269 = vadd.f32 %v198, %v256
    %v270 = vadd.f32 %v199, %v256
    %v271 = vadd.f32 %v200, %v256
    %v272 = vadd.f32 %v201, %v256
    %v273 = vadd.f32 %v202, %v256
    %v274 = vadd.f32 %v203, %v256
    %v275 = vadd.f32 %v204, %v256
    %v276 = vadd.f32 %v205, %v256
    %v277 = vadd.f32 %v206, %v256
    %v278 = vadd.f32 %v207, %v256
    %v279 = vadd.f32 %v208, %v256
    %v280 = vadd.f32 %v209, %v256
    %v281 = vadd.f32 %v210, %v256
    %v282 = vadd.f32 %v211, %v256
    %v283 = vadd.f32 %v212, %v256
    %v284 = vadd.f32 %v213, %v256
    %v285 = vadd.f32 %v214, %v256
    %v286 = vadd.f32 %v215, %v256
    %v287 = vadd.f32 %v216, %v256
    %v288 = vadd.f32 %v217, %v256
    %v289 = vadd.f32 %v218, %v256
    %v290 = vadd.f32 %v219, %v256
    %v291 = vadd.f32 %v220, %v256
    %v292 = vadd.f32 %v221, %v256
    %v293 = vadd.f32 %v222, %v256
    %v294 = vadd.f32 %v223, %v256
    %v295 = vadd.f32 %v224, %v256
    %v296 = vadd.f32 %v225, %v256
    %v297 = vadd.f32 %v226, %v256
    %v298 = vadd.f32 %v227, %v256
    %v299 = vadd.f32 %v228, %v256
    %v300 = vadd.f32 %v229, %v256
    %v301 = vadd.f32 %v230, %v256
    %v302 = vadd.f32 %v231, %v256
    %v303 = vadd.f32 %v232, %v256
    %v304 = vadd.f32 %v233, %v256
    %v305 = vadd.f32 %v234, %v256
    %v306 = vadd.f32 %v235, %v256
    %v307 = vadd.f32 %v236, %v256
    %v308 = vadd.f32 %v237, %v256
    %v309 = vadd.f32 %v238, %v256
    %v310 = vadd.f32 %v239, %v256
    %v311 = vadd.f32 %v240, %v256
    %v312 = vadd.f32 %v241, %v256
    %v313 = vadd.f32 %v242, %v256
    %v314 = vadd.f32 %v243, %v256
    %v315 = vadd.f32 %v244, %v256
    %v316 = vadd.f32 %v245, %v256
    %v317 = vadd.f32 %v246, %v256
    %v318 = vadd.f32 %v247, %v256
    %v319 = vadd.f32 %v248, %v256
    %v320 = vadd.f32 %v249, %v256
    %v321 = vadd.f32 %v250, %v256
    %v322 = vmax.f32 %v258, 0.0
    %v323 = vmax.f32 %v259, 0.0
    %v324 = vmax.f32 %v260, 0.0
    %v325 = vmax.f32 %v261, 0.0
    %v326 = vmax.f32 %v262, 0.0
    %v327 = vmax.f32 %v263, 0.0
    %v328 = vmax.f32 %v264, 0.0
    %v329 = vmax.f32 %v265, 0.0
    %v330 = vmax.f32 %v266, 0.0
    %v331 = vmax.f32 %v267, 0.0
    %v332 = vmax.f32 %v268, 0.0
    %v333 = vmax.f32 %v269, 0.0
    %v334 = vmax.f32 %v270, 0.0
    %v335 = vmax.f32 %v271, 0.0
    %v336 = vmax.f32 %v272, 0.0
    %v337 = vmax.f32 %v273, 0.0
    %v338 = vmax.f32 %v274, 0.0
    %v339 = vmax.f32 %v275, 0.0
    %v340 = vmax.f32 %v276, 0.0
    %v341 = vmax.f32 %v277, 0.0
    %v342 = vmax.f32 %v278, 0.0
    %v343 = vmax.f32 %v279, 0.0
    %v344 = vmax.f32 %v280, 0.0
    %v345 = vmax.f32 %v281, 0.0
    %v346 = vmax.f32 %v282, 0.0
    %v347 = vmax.f32 %v283, 0.0
    %v348 = vmax.f32 %v284, 0.0
    %v349 = vmax.f32 %v285, 0.0
    %v350 = vmax.f32 %v286, 0.0
    %v351 = vmax.f32 %v287, 0.0
    %v352 = vmax.f32 %v288, 0.0
    %v353 = vmax.f32 %v289, 0.0
    %v354 = vmax.f32 %v290, 0.0
    %v355 = vmax.f32 %v291, 0.0
    %v356 = vmax.f32 %v292, 0.0
    %v357 = vmax.f32 %v293, 0.0
    %v358 = vmax.f32 %v294, 0.0
    %v359 = vmax.f32 %v295, 0.0
    %v360 = vmax.f32 %v296, 0.0
    %v361 = vmax.f32 %v297, 0.0
    %v362 = vmax.f32 %v298, 0.0
    %v363 = vmax.f32 %v299, 0.0
    %v364 = vmax.f32 %v300, 0.0
    %v365 = vmax.f32 %v301, 0.0
    %v366 = vmax.f32 %v302, 0.0
    %v367 = vmax.f32 %v303, 0.0
    %v368 = vmax.f32 %v304, 0.0
    %v369 = vmax.f32 %v305, 0.0
    %v370 = vmax.f32 %v306, 0.0
    %v371 = vmax.f32 %v307, 0.0
    %v372 = vmax.f32 %v308, 0.0
    %v373 = vmax.f32 %v309, 0.0
    %v374 = vmax.f32 %v310, 0.0
    %v375 = vmax.f32 %v311, 0.0
    %v376 = vmax.f32 %v312, 0.0
    %v377 = vmax.f32 %v313, 0.0
    %v378 = vmax.f32 %v314, 0.0
    %v379 = vmax.f32 %v315, 0.0
    %v380 = vmax.f32 %v316, 0.0
    %v381 = vmax.f32 %v317, 0.0
    %v382 = vmax.f32 %v318, 0.0
    %v383 = vmax.f32 %v319, 0.0
    %v384 = vmax.f32 %v320, 0.0
    %v385 = vmax.f32 %v321, 0.0
    %v386 = vpack.c.bf16 %v323, %v322
    %v387 = vpack.c.bf16 %v325, %v324
    %v388 = vpack.c.bf16 %v327, %v326
    %v389 = vpack.c.bf16 %v329, %v328
    %v390 = vpack.c.bf16 %v331, %v330
    %v391 = vpack.c.bf16 %v333, %v332
    %v392 = vpack.c.bf16 %v335, %v334
    %v393 = vpack.c.bf16 %v337, %v336
    %v394 = vpack.c.bf16 %v339, %v338
    %v395 = vpack.c.bf16 %v341, %v340
    %v396 = vpack.c.bf16 %v343, %v342
    %v397 = vpack.c.bf16 %v345, %v344
    %v398 = vpack.c.bf16 %v347, %v346
    %v399 = vpack.c.bf16 %v349, %v348
    %v400 = vpack.c.bf16 %v351, %v350
    %v401 = vpack.c.bf16 %v353, %v352
    %v402 = vpack.c.bf16 %v355, %v354
    %v403 = vpack.c.bf16 %v357, %v356
    %v404 = vpack.c.bf16 %v359, %v358
    %v405 = vpack.c.bf16 %v361, %v360
    %v406 = vpack.c.bf16 %v363, %v362
    %v407 = vpack.c.bf16 %v365, %v364
    %v408 = vpack.c.bf16 %v367, %v366
    %v409 = vpack.c.bf16 %v369, %v368
    %v410 = vpack.c.bf16 %v371, %v370
    %v411 = vpack.c.bf16 %v373, %v372
    %v412 = vpack.c.bf16 %v375, %v374
    %v413 = vpack.c.bf16 %v377, %v376
    %v414 = vpack.c.bf16 %v379, %v378
    %v415 = vpack.c.bf16 %v381, %v380
    %v416 = vpack.c.bf16 %v383, %v382
    %v417 = vpack.c.bf16 %v385, %v384
    %v450 = vunpack.c.l.b16 %v386
    %v451 = vunpack.c.h.b16 %v386
    %v452 = vunpack.c.l.b16 %v387
    %v453 = vunpack.c.h.b16 %v387
    %v454 = vunpack.c.l.b16 %v388
    %v455 = vunpack.c.h.b16 %v388
    %v456 = vunpack.c.l.b16 %v389
    %v457 = vunpack.c.h.b16 %v389
    %v458 = vunpack.c.l.b16 %v390
    %v459 = vunpack.c.h.b16 %v390
    %v460 = vunpack.c.l.b16 %v391
    %v461 = vunpack.c.h.b16 %v391
    %v462 = vunpack.c.l.b16 %v392
    %v463 = vunpack.c.h.b16 %v392
    %v464 = vunpack.c.l.b16 %v393
    %v465 = vunpack.c.h.b16 %v393
    %v466 = vunpack.c.l.b16 %v394
    %v467 = vunpack.c.h.b16 %v394
    %v468 = vunpack.c.l.b16 %v395
    %v469 = vunpack.c.h.b16 %v395
    %v470 = vunpack.c.l.b16 %v396
    %v471 = vunpack.c.h.b16 %v396
    %v472 = vunpack.c.l.b16 %v397
    %v473 = vunpack.c.h.b16 %v397
    %v474 = vunpack.c.l.b16 %v398
    %v475 = vunpack.c.h.b16 %v398
    %v476 = vunpack.c.l.b16 %v399
    %v477 = vunpack.c.h.b16 %v399
    %v478 = vunpack.c.l.b16 %v400
    %v479 = vunpack.c.h.b16 %v400
    %v480 = vunpack.c.l.b16 %v401
    %v481 = vunpack.c.h.b16 %v401
    %v482 = vunpack.c.l.b16 %v402
    %v483 = vunpack.c.h.b16 %v402
    %v484 = vunpack.c.l.b16 %v403
    %v485 = vunpack.c.h.b16 %v403
    %v486 = vunpack.c.l.b16 %v404
    %v487 = vunpack.c.h.b16 %v404
    %v488 = vunpack.c.l.b16 %v405
    %v489 = vunpack.c.h.b16 %v405
    %v490 = vunpack.c.l.b16 %v406
    %v491 = vunpack.c.h.b16 %v406
    %v492 = vunpack.c.l.b16 %v407
    %v493 = vunpack.c.h.b16 %v407
    %v494 = vunpack.c.l.b16 %v408
    %v495 = vunpack.c.h.b16 %v408
    %v496 = vunpack.c.l.b16 %v409
    %v497 = vunpack.c.h.b16 %v409
    %v498 = vunpack.c.l.b16 %v410
    %v499 = vunpack.c.h.b16 %v410
    %v500 = vunpack.c.l.b16 %v411
    %v501 = vunpack.c.h.b16 %v411
    %v502 = vunpack.c.l.b16 %v412
    %v503 = vunpack.c.h.b16 %v412
    %v504 = vunpack.c.l.b16 %v413
    %v505 = vunpack.c.h.b16 %v413
    %v506 = vunpack.c.l.b16 %v414
    %v507 = vunpack.c.h.b16 %v414
    %v508 = vunpack.c.l.b16 %v415
    %v509 = vunpack.c.h.b16 %v415
    %v510 = vunpack.c.l.b16 %v416
    %v511 = vunpack.c.h.b16 %v416
    %v512 = vunpack.c.l.b16 %v417
    %v513 = vunpack.c.h.b16 %v417
    %v514 = vpack.c.b16 %v450, %v450
    %v515 = vpack.c.b16 %v451, %v451
    %v516 = vpack.c.b16 %v452, %v452
    %v517 = vpack.c.b16 %v453, %v453
    %v518 = vpack.c.b16 %v454, %v454
    %v519 = vpack.c.b16 %v455, %v455
    %v520 = vpack.c.b16 %v456, %v456
    %v521 = vpack.c.b16 %v457, %v457
    %v522 = vpack.c.b16 %v458, %v458
    %v523 = vpack.c.b16 %v459, %v459
    %v524 = vpack.c.b16 %v460, %v460
    %v525 = vpack.c.b16 %v461, %v461
    %v526 = vpack.c.b16 %v462, %v462
    %v527 = vpack.c.b16 %v463, %v463
    %v528 = vpack.c.b16 %v464, %v464
    %v529 = vpack.c.b16 %v465, %v465
    %v530 = vpack.c.b16 %v466, %v466
    %v531 = vpack.c.b16 %v467, %v467
    %v532 = vpack.c.b16 %v468, %v468
    %v533 = vpack.c.b16 %v469, %v469
    %v534 = vpack.c.b16 %v470, %v470
    %v535 = vpack.c.b16 %v471, %v471
    %v536 = vpack.c.b16 %v472, %v472
    %v537 = vpack.c.b16 %v473, %v473
    %v538 = vpack.c.b16 %v474, %v474
    %v539 = vpack.c.b16 %v475, %v475
    %v540 = vpack.c.b16 %v476, %v476
    %v541 = vpack.c.b16 %v477, %v477
    %v542 = vpack.c.b16 %v478, %v478
    %v543 = vpack.c.b16 %v479, %v479
    %v544 = vpack.c.b16 %v480, %v480
    %v545 = vpack.c.b16 %v481, %v481
    %v546 = vpack.c.b16 %v482, %v482
    %v547 = vpack.c.b16 %v483, %v483
    %v548 = vpack.c.b16 %v484, %v484
    %v549 = vpack.c.b16 %v485, %v485
    %v550 = vpack.c.b16 %v486, %v486
    %v551 = vpack.c.b16 %v487, %v487
    %v552 = vpack.c.b16 %v488, %v488
    %v553 = vpack.c.b16 %v489, %v489
    %v554 = vpack.c.b16 %v490, %v490
    %v555 = vpack.c.b16 %v491, %v491
    %v556 = vpack.c.b16 %v492, %v492
    %v557 = vpack.c.b16 %v493, %v493
    %v558 = vpack.c.b16 %v494, %v494
    %v559 = vpack.c.b16 %v495, %v495
    %v560 = vpack.c.b16 %v496, %v496
    %v561 = vpack.c.b16 %v497, %v497
    %v562 = vpack.c.b16 %v498, %v498
    %v563 = vpack.c.b16 %v499, %v499
    %v564 = vpack.c.b16 %v500, %v500
    %v565 = vpack.c.b16 %v501, %v501
    %v566 = vpack.c.b16 %v502, %v502
    %v567 = vpack.c.b16 %v503, %v503
    %v568 = vpack.c.b16 %v504, %v504
    %v569 = vpack.c.b16 %v505, %v505
    %v570 = vpack.c.b16 %v506, %v506
    %v571 = vpack.c.b16 %v507, %v507
    %v572 = vpack.c.b16 %v508, %v508
    %v573 = vpack.c.b16 %v509, %v509
    %v574 = vpack.c.b16 %v510, %v510
    %v575 = vpack.c.b16 %v511, %v511
    %v576 = vpack.c.b16 %v512, %v512
    %v577 = vpack.c.b16 %v513, %v513
    %642 = vst [vmem:[#allocation8] sm:$0xf] %v514
    %643 = vst [vmem:[#allocation8 + $0x4] sm:$0xf] %v515
    %644 = vst [vmem:[#allocation8 + $0x8] sm:$0xf] %v516
    %645 = vst [vmem:[#allocation8 + $0xc] sm:$0xf] %v517
    %646 = vst [vmem:[#allocation8 + $0x10] sm:$0xf] %v518
    %647 = vst [vmem:[#allocation8 + $0x14] sm:$0xf] %v519
    %648 = vst [vmem:[#allocation8 + $0x18] sm:$0xf] %v520
    %649 = vst [vmem:[#allocation8 + $0x1c] sm:$0xf] %v521
    %650 = vst [vmem:[#allocation8 + $0x20] sm:$0xf] %v522
    %651 = vst [vmem:[#allocation8 + $0x24] sm:$0xf] %v523
    %652 = vst [vmem:[#allocation8 + $0x28] sm:$0xf] %v524
    %653 = vst [vmem:[#allocation8 + $0x2c] sm:$0xf] %v525
    %654 = vst [vmem:[#allocation8 + $0x30] sm:$0xf] %v526
    %655 = vst [vmem:[#allocation8 + $0x34] sm:$0xf] %v527
    %656 = vst [vmem:[#allocation8 + $0x38] sm:$0xf] %v528
    %657 = vst [vmem:[#allocation8 + $0x3c] sm:$0xf] %v529
    %658 = vst [vmem:[#allocation8 + $0x40] sm:$0xf] %v530
    %659 = vst [vmem:[#allocation8 + $0x44] sm:$0xf] %v531
    %660 = vst [vmem:[#allocation8 + $0x48] sm:$0xf] %v532
    %661 = vst [vmem:[#allocation8 + $0x4c] sm:$0xf] %v533
    %662 = vst [vmem:[#allocation8 + $0x50] sm:$0xf] %v534
    %663 = vst [vmem:[#allocation8 + $0x54] sm:$0xf] %v535
    %664 = vst [vmem:[#allocation8 + $0x58] sm:$0xf] %v536
    %665 = vst [vmem:[#allocation8 + $0x5c] sm:$0xf] %v537
    %666 = vst [vmem:[#allocation8 + $0x60] sm:$0xf] %v538
    %667 = vst [vmem:[#allocation8 + $0x64] sm:$0xf] %v539
    %668 = vst [vmem:[#allocation8 + $0x68] sm:$0xf] %v540
    %669 = vst [vmem:[#allocation8 + $0x6c] sm:$0xf] %v541
    %670 = vst [vmem:[#allocation8 + $0x70] sm:$0xf] %v542
    %671 = vst [vmem:[#allocation8 + $0x74] sm:$0xf] %v543
    %672 = vst [vmem:[#allocation8 + $0x78] sm:$0xf] %v544
    %673 = vst [vmem:[#allocation8 + $0x7c] sm:$0xf] %v545
    %674 = vst [vmem:[#allocation8 + $0x80] sm:$0xf] %v546
    %675 = vst [vmem:[#allocation8 + $0x84] sm:$0xf] %v547
    %676 = vst [vmem:[#allocation8 + $0x88] sm:$0xf] %v548
    %677 = vst [vmem:[#allocation8 + $0x8c] sm:$0xf] %v549
    %678 = vst [vmem:[#allocation8 + $0x90] sm:$0xf] %v550
    %679 = vst [vmem:[#allocation8 + $0x94] sm:$0xf] %v551
    %680 = vst [vmem:[#allocation8 + $0x98] sm:$0xf] %v552
    %681 = vst [vmem:[#allocation8 + $0x9c] sm:$0xf] %v553
    %682 = vst [vmem:[#allocation8 + $0xa0] sm:$0xf] %v554
    %683 = vst [vmem:[#allocation8 + $0xa4] sm:$0xf] %v555
    %684 = vst [vmem:[#allocation8 + $0xa8] sm:$0xf] %v556
    %685 = vst [vmem:[#allocation8 + $0xac] sm:$0xf] %v557
    %686 = vst [vmem:[#allocation8 + $0xb0] sm:$0xf] %v558
    %687 = vst [vmem:[#allocation8 + $0xb4] sm:$0xf] %v559
    %688 = vst [vmem:[#allocation8 + $0xb8] sm:$0xf] %v560
    %689 = vst [vmem:[#allocation8 + $0xbc] sm:$0xf] %v561
    %690 = vst [vmem:[#allocation8 + $0xc0] sm:$0xf] %v562
    %691 = vst [vmem:[#allocation8 + $0xc4] sm:$0xf] %v563
    %692 = vst [vmem:[#allocation8 + $0xc8] sm:$0xf] %v564
    %693 = vst [vmem:[#allocation8 + $0xcc] sm:$0xf] %v565
    %694 = vst [vmem:[#allocation8 + $0xd0] sm:$0xf] %v566
    %695 = vst [vmem:[#allocation8 + $0xd4] sm:$0xf] %v567
    %696 = vst [vmem:[#allocation8 + $0xd8] sm:$0xf] %v568
    %697 = vst [vmem:[#allocation8 + $0xdc] sm:$0xf] %v569
    %698 = vst [vmem:[#allocation8 + $0xe0] sm:$0xf] %v570
    %699 = vst [vmem:[#allocation8 + $0xe4] sm:$0xf] %v571
    %700 = vst [vmem:[#allocation8 + $0xe8] sm:$0xf] %v572
    %701 = vst [vmem:[#allocation8 + $0xec] sm:$0xf] %v573
    %702 = vst [vmem:[#allocation8 + $0xf0] sm:$0xf] %v574
    %703 = vst [vmem:[#allocation8 + $0xf4] sm:$0xf] %v575
    %704 = vst [vmem:[#allocation8 + $0xf8] sm:$0xf] %v576
    %705 = vst [vmem:[#allocation8 + $0xfc] sm:$0xf] %v577
    // Predicated region
    $region26: #{_lambda_.3} parent=1 // pred_check
      _
    $region27: #{_lambda_.3} parent=1 // pred_check_branch
      %707 = sbr.rel (0) target = $region29
    $region28: #{_lambda_.3} parent=1 // pred_region
      %s709 = ssub.s32 4096, 4096
      %710 = vsyncadd [#allocation4], %s709
      %s711 = sshll.u32 [#allocation8], 4
      %s712 = int_to_ptr.vmem [resolvable:$true] %s711
      %717 = dma.vmem_to_hbm [thread:$0]  %s712, 4096, %s3, [#allocation4], 64, 64, 4
    $region29: #{_lambda_.3} parent=1 // pred_fallthru
      _
    // Predicated region
    $region30: #{_lambda_.3} parent=1 // pred_check
      _
    $region31: #{_lambda_.3} parent=1 // pred_check_branch
      %719 = sbr.rel (0) target = $region33
    $region32: #{_lambda_.3} parent=1 // pred_region
      %720 = dma.done [#allocation4], 4096
    $region33: #{_lambda_.3} parent=1 // pred_fallthru
      _
    %721 = vsyncpa [#allocation3], 1
    %722 = vsyncpa [#allocation6], 1
    %723 = vsyncpa [#allocation4], 1

// kernel: _lambda_.2
$region0: #{_lambda_.2}
  #allocation0 [shape = 'u32[]', space=smem, size = 0x4, offset = 0x4, fixed_abs, tag = 'smem constant byte address 0x4 - core index']
  #allocation1 [shape = 'u32[144,128]{1,0:T(1,128)}', space=vmem, size = 0x12000, scoped, tag = 'internal scratch']
  #allocation2 [shape = 'f32[512,64]{1,0:T(8,128)}', space=vmem, size = 0x40000, scoped, tag = 'scratch operand']
  %s0 = inlined_call_operand.hbm [shape: bf16[1024,512], index: 0, kind: input, shape index: {}]
  %s1 = inlined_call_operand.hbm [shape: bf16[512,64], index: 1, kind: input, shape index: {}]
  %s2 = inlined_call_operand.hbm [shape: bf16[1024,64], index: 2, kind: output, shape index: {0}]
  %s3 = inlined_call_operand.hbm [shape: f32[2,1,64], index: 3, kind: output, shape index: {1}]
  %s4 = inlined_call_operand.hbm [shape: f32[2,1,64], index: 4, kind: output, shape index: {2}]
  %5 = xla_tuple %s2, %s3, %s4
  %s6 = sld [smem:[#allocation0]]
  $region73: #{_lambda_.2} parent=0
    _
  %s8 = ssub.s32 1, %s6
  %s9 = scalar_select 0, %s8, %s6
  $region1: #{_lambda_.2} parent=0
    #allocation3 [shape = 'u8[1048576]{0}', space=vmem, size = 0x100000, scoped, tag = 'input window, operand 0']
    #allocation4 [shape = 's32[2]{0}', space=sflag, size = 0x8, scoped, tag = 'scoped memory for _lambda_.2']
    #allocation5 [shape = 's32[2]{0}', space=sflag, size = 0x8, scoped, tag = 'scoped memory for _lambda_.2']
    #allocation6 [shape = 'u8[131072]{0}', space=vmem, size = 0x20000, scoped, tag = 'input window, operand 1, single buffered']
    #allocation7 [shape = 's32[1]{0}', space=sflag, size = 0x4, scoped, tag = 'scoped memory for _lambda_.2']
    #allocation8 [shape = 'u8[262144]{0}', space=vmem, size = 0x40000, scoped, tag = 'output window, operand 0']
    #allocation9 [shape = 'u8[1024]{0}', space=vmem, size = 0x400, scoped, tag = 'output window, operand 1']
    #allocation10 [shape = 's32[2]{0}', space=sflag, size = 0x8, scoped, tag = 'scoped memory for _lambda_.2']
    #allocation11 [shape = 'u8[1024]{0}', space=vmem, size = 0x400, scoped, tag = 'output window, operand 2']
    %10 = vsyncpa [#allocation4], 0
    %s11 = scalar_lea.sflag [#allocation4], 1
    %12 = vsyncpa %s11, 0
    %13 = vsyncpa [#allocation7], 0
    %14 = vsyncpa [#allocation5], 0
    %s15 = scalar_lea.sflag [#allocation5], 1
    %16 = vsyncpa %s15, 0
    %17 = vsyncpa [#allocation10], 0
    %s18 = scalar_lea.sflag [#allocation10], 1
    %19 = vsyncpa %s18, 0
    loop: start=0, step=1, limit=4
    $region2: #{_lambda_.2} parent=1 // loop_pre_header
      _
    $region3: #{_lambda_.2} parent=1 // loop_header
      %s21 = sphi 0, %s25
      %p22 = scmp.ge.s32.totalorder %s21, 4
      %s28 = sphi 0, %s40
      %s29 = sphi 0, %s36
      %s30 = sphi 0, %s28
      %s31 = sphi 0, %s29
      %s32 = sphi 0, %s30
      %s33 = sphi 0, %s31
      %s45 = sphi 0, %s47
      %s48 = sphi 0, %s45
      %s49 = sphi 0, %s48
      %s65 = sphi 0, %s49
      %s71 = sphi 0, %s73
      %s74 = sphi 0, %s71
      %s75 = sphi 0, %s74
      %s91 = sphi 0, %s75
      %s97 = sphi 0, %s99
      %s100 = sphi 0, %s97
      %s101 = sphi 0, %s100
      %s117 = sphi 0, %s101
      %s123 = sphi 0, %s125
      %s126 = sphi 0, %s123
      %s127 = sphi 0, %s126
      %s143 = sphi 0, %s127
      %s149 = sphi 0, %s151
      %s152 = sphi 0, %s149
      %s153 = sphi 0, %s152
      %s169 = sphi 0, %s153
    $region4: #{_lambda_.2} parent=1 // loop_header_branch
      %24 = sbr.rel (%p22) target = $region8
    $region5: #{_lambda_.2} parent=1 // loop_body
      %s26 = ssub.s32 %s21, 1
      %s27 = ssub.s32 %s21, 2
      %s34 = sadd.s32 1, %s29
      %p35 = scmp.ge.s32.totalorder %s34, 1
      %s36 = scalar_select %p35, 0, %s34
      %s37 = sadd.s32 1, %s28
      %s38 = scalar_select %p35, %s37, %s28
      %p39 = scmp.ge.s32.totalorder %s38, 2
      %s40 = scalar_select %p39, 0, %s38
      %s41 = ssub.s32 %s28, %s40
      %s42 = ssub.s32 %s29, %s36
      %s43 = sor.u32 %s41, %s42
      %p44 = scmp.eq.s32.totalorder %s43, 0
      %s46 = sadd.s32 %s45, 1
      %s47 = scalar_select %p44, %s45, %s46
      %p50 = pneg %p44
      %p51 = scmp.eq.s32.totalorder %s21, 1
      %p52 = por %p50, %p51
      %p53 = scmp.ne.s32.totalorder %s45, %s48
      %p54 = scmp.eq.s32.totalorder %s21, 0
      %p55 = por %p53, %p54
      %p56 = scmp.ne.s32.totalorder %s45, %s48
      %p57 = scmp.eq.s32.totalorder %s26, 1
      %p58 = por %p56, %p57
      %p59 = scmp.ne.s32.totalorder %s48, %s49
      %p60 = scmp.eq.s32.totalorder %s26, 0
      %p61 = por %p59, %p60
      %p62 = scmp.ne.s32.totalorder %s48, %s49
      %p63 = scmp.eq.s32.totalorder %s27, 1
      %p64 = por %p62, %p63
      %p66 = scmp.ne.s32.totalorder %s49, %s65
      %p67 = scmp.eq.s32.totalorder %s27, 0
      %p68 = por %p66, %p67
      %s69 = ssub.s32 %s29, %s36
      %p70 = scmp.eq.s32.totalorder %s69, 0
      %s72 = sadd.s32 %s71, 1
      %s73 = scalar_select %p70, %s71, %s72
      %p76 = pneg %p70
      %p77 = scmp.eq.s32.totalorder %s21, 1
      %p78 = por %p76, %p77
      %p79 = scmp.ne.s32.totalorder %s71, %s74
      %p80 = scmp.eq.s32.totalorder %s21, 0
      %p81 = por %p79, %p80
      %p82 = scmp.ne.s32.totalorder %s71, %s74
      %p83 = scmp.eq.s32.totalorder %s26, 1
      %p84 = por %p82, %p83
      %p85 = scmp.ne.s32.totalorder %s74, %s75
      %p86 = scmp.eq.s32.totalorder %s26, 0
      %p87 = por %p85, %p86
      %p88 = scmp.ne.s32.totalorder %s74, %s75
      %p89 = scmp.eq.s32.totalorder %s27, 1
      %p90 = por %p88, %p89
      %p92 = scmp.ne.s32.totalorder %s75, %s91
      %p93 = scmp.eq.s32.totalorder %s27, 0
      %p94 = por %p92, %p93
      %s95 = ssub.s32 %s28, %s40
      %p96 = scmp.eq.s32.totalorder %s95, 0
      %s98 = sadd.s32 %s97, 1
      %s99 = scalar_select %p96, %s97, %s98
      %p102 = pneg %p96
      %p103 = scmp.eq.s32.totalorder %s21, 1
      %p104 = por %p102, %p103
      %p105 = scmp.ne.s32.totalorder %s97, %s100
      %p106 = scmp.eq.s32.totalorder %s21, 0
      %p107 = por %p105, %p106
      %p108 = scmp.ne.s32.totalorder %s97, %s100
      %p109 = scmp.eq.s32.totalorder %s26, 1
      %p110 = por %p108, %p109
      %p111 = scmp.ne.s32.totalorder %s100, %s101
      %p112 = scmp.eq.s32.totalorder %s26, 0
      %p113 = por %p111, %p112
      %p114 = scmp.ne.s32.totalorder %s100, %s101
      %p115 = scmp.eq.s32.totalorder %s27, 1
      %p116 = por %p114, %p115
      %p118 = scmp.ne.s32.totalorder %s101, %s117
      %p119 = scmp.eq.s32.totalorder %s27, 0
      %p120 = por %p118, %p119
      %s121 = ssub.s32 %s28, %s40
      %p122 = scmp.eq.s32.totalorder %s121, 0
      %s124 = sadd.s32 %s123, 1
      %s125 = scalar_select %p122, %s123, %s124
      %p128 = pneg %p122
      %p129 = scmp.eq.s32.totalorder %s21, 1
      %p130 = por %p128, %p129
      %p131 = scmp.ne.s32.totalorder %s123, %s126
      %p132 = scmp.eq.s32.totalorder %s21, 0
      %p133 = por %p131, %p132
      %p134 = scmp.ne.s32.totalorder %s123, %s126
      %p135 = scmp.eq.s32.totalorder %s26, 1
      %p136 = por %p134, %p135
      %p137 = scmp.ne.s32.totalorder %s126, %s127
      %p138 = scmp.eq.s32.totalorder %s26, 0
      %p139 = por %p137, %p138
      %p140 = scmp.ne.s32.totalorder %s126, %s127
      %p141 = scmp.eq.s32.totalorder %s27, 1
      %p142 = por %p140, %p141
      %p144 = scmp.ne.s32.totalorder %s127, %s143
      %p145 = scmp.eq.s32.totalorder %s27, 0
      %p146 = por %p144, %p145
      %s147 = ssub.s32 %s28, %s40
      %p148 = scmp.eq.s32.totalorder %s147, 0
      %s150 = sadd.s32 %s149, 1
      %s151 = scalar_select %p148, %s149, %s150
      %p154 = pneg %p148
      %p155 = scmp.eq.s32.totalorder %s21, 1
      %p156 = por %p154, %p155
      %p157 = scmp.ne.s32.totalorder %s149, %s152
      %p158 = scmp.eq.s32.totalorder %s21, 0
      %p159 = por %p157, %p158
      %p160 = scmp.ne.s32.totalorder %s149, %s152
      %p161 = scmp.eq.s32.totalorder %s26, 1
      %p162 = por %p160, %p161
      %p163 = scmp.ne.s32.totalorder %s152, %s153
      %p164 = scmp.eq.s32.totalorder %s26, 0
      %p165 = por %p163, %p164
      %p166 = scmp.ne.s32.totalorder %s152, %s153
      %p167 = scmp.eq.s32.totalorder %s27, 1
      %p168 = por %p166, %p167
      %p170 = scmp.ne.s32.totalorder %s153, %s169
      %p171 = scmp.eq.s32.totalorder %s27, 0
      %p172 = por %p170, %p171
      %p173 = scmp.le.s32.totalorder 1, %s21
      %p174 = scmp.lt.s32.totalorder %s21, 3
      %p175 = pnand %p173, %p174
      %p176 = pneg %p175
      // Predicated region
      $region9: #{_lambda_.2} parent=5 // pred_check
        _
      $region10: #{_lambda_.2} parent=5 // pred_check_branch
        %178 = sbr.rel (%p175) target = $region12
      $region11: #{_lambda_.2} parent=5 // pred_region
        %s179 = ssub.s32 %s21, 1
        // Predicated region
        $region13: #{_lambda_.2} parent=11 // pred_check
          %p180 = pneg %p87
        $region14: #{_lambda_.2} parent=11 // pred_check_branch
          %182 = sbr.rel (%p180) target = $region16
        $region15: #{_lambda_.2} parent=11 // pred_region
          %s183 = smul.u32 64, %s31
          %s185 = ssub.s32 4096, 4096
          %186 = vsyncadd [#allocation7], %s185
          %s187 = smul.addr %s183, 64
          %s188 = scalar_lea.hbm %s1, %s187
          %s189 = sshll.u32 [#allocation6], 4
          %s190 = int_to_ptr.vmem [resolvable:$true] %s189
          %195 = dma.hbm_to_vmem [thread:$0]  %s188, 4096, %s190, [#allocation7], 64, 64, 4
        $region16: #{_lambda_.2} parent=11 // pred_fallthru
          _
      $region12: #{_lambda_.2} parent=5 // pred_fallthru
        _
      %p196 = scmp.lt.s32.totalorder %s21, 2
      // Predicated region
      $region17: #{_lambda_.2} parent=5 // pred_check
        %p197 = pneg %p196
      $region18: #{_lambda_.2} parent=5 // pred_check_branch
        %199 = sbr.rel (%p197) target = $region20
      $region19: #{_lambda_.2} parent=5 // pred_region
        // Predicated region
        $region21: #{_lambda_.2} parent=19 // pred_check
          %p200 = pneg %p55
        $region22: #{_lambda_.2} parent=19 // pred_check_branch
          %202 = sbr.rel (%p200) target = $region24
        $region23: #{_lambda_.2} parent=19 // pred_region
          %s203 = sand.u32 %s45, 1
          %s204 = scalar_lea.sflag [#allocation4], %s203
          %s205 = sand.u32 %s45, 1
          %s206 = smul.addr %s205, 1024
          %s207 = scalar_lea.vmem [#allocation3], %s206
          %s208 = smul.u32 64, %s28
          %s209 = smul.u32 4, %s29
          %s211 = ssub.s32 16384, 16384
          %212 = vsyncadd %s204, %s211
          %s213 = smul.addr %s208, 4
          %s214 = sadd.s32 %s209, %s213
          %s215 = smul.addr %s214, 64
          %s216 = scalar_lea.hbm %s0, %s215
          %s217 = sshll.u32 %s207, 4
          %s218 = int_to_ptr.vmem [resolvable:$true] %s217
          %223 = dma.hbm_to_vmem [thread:$0]  %s216, 16384, %s218, %s204, 256, 256, 16
        $region24: #{_lambda_.2} parent=19 // pred_fallthru
          _
      $region20: #{_lambda_.2} parent=5 // pred_fallthru
        _
      %p224 = scmp.le.s32.totalorder 1, %s21
      %p225 = scmp.lt.s32.totalorder %s21, 3
      %p226 = pnand %p224, %p225
      %p227 = pneg %p226
      // Predicated region
      $region25: #{_lambda_.2} parent=5 // pred_check
        _
      $region26: #{_lambda_.2} parent=5 // pred_check_branch
        %229 = sbr.rel (%p226) target = $region28
      $region27: #{_lambda_.2} parent=5 // pred_region
        %s230 = ssub.s32 %s21, 1
        %s231 = sand.u32 %s48, 1
        %s232 = scalar_lea.sflag [#allocation4], %s231
        %s233 = sand.u32 %s48, 1
        %s234 = smul.addr %s233, 1024
        %s235 = scalar_lea.vmem [#allocation3], %s234
        // Predicated region
        $region29: #{_lambda_.2} parent=27 // pred_check
          %p236 = pneg %p61
        $region30: #{_lambda_.2} parent=27 // pred_check_branch
          %238 = sbr.rel (%p236) target = $region32
        $region31: #{_lambda_.2} parent=27 // pred_region
          %239 = dma.done %s232, 16384
        $region32: #{_lambda_.2} parent=27 // pred_fallthru
          _
        // Predicated region
        $region33: #{_lambda_.2} parent=27 // pred_check
          %p240 = pneg %p87
        $region34: #{_lambda_.2} parent=27 // pred_check_branch
          %242 = sbr.rel (%p240) target = $region36
        $region35: #{_lambda_.2} parent=27 // pred_region
          %243 = dma.done [#allocation7], 4096
        $region36: #{_lambda_.2} parent=27 // pred_fallthru
          _
        %s244 = sand.u32 %s48, 1
        %s245 = scalar_lea.sflag [#allocation4], %s244
        %s246 = sand.u32 %s48, 1
        %s247 = smul.addr %s246, 1024
        %s248 = scalar_lea.vmem [#allocation3], %s247
        %p249 = pneg %p61
        %p250 = pneg %p58
        %p251 = pneg %p87
        %p252 = pneg %p84
        %p253 = pneg %p113
        %p254 = pneg %p110
        %s255 = sand.u32 %s100, 1
        %s256 = scalar_lea.sflag [#allocation5], %s255
        %s257 = sand.u32 %s100, 1
        %s258 = smul.addr %s257, 256
        %s259 = scalar_lea.vmem [#allocation8], %s258
        %p260 = pneg %p139
        %p261 = pneg %p136
        %s262 = sand.u32 %s26, 1
        %s263 = scalar_lea.sflag [#allocation10], %s262
        %s264 = sand.u32 %s126, 1
        %s265 = scalar_lea.vmem [#allocation9], %s264
        %p266 = pneg %p165
        %p267 = pneg %p162
        %s268 = sand.u32 %s26, 1
        %s269 = scalar_lea.sflag [#allocation10], %s268
        %s270 = sand.u32 %s152, 1
        %s271 = scalar_lea.vmem [#allocation11], %s270
        %s272 = smul.u32 64, %s30
        %s273 = smul.u32 4, %s31
        %s274 = smul.u32 64, %s31
        %s275 = smul.u32 64, %s30
        %p277 = scmp.eq.s32.totalorder %s31, 0
        // Predicated region
        $region37: #{_lambda_.2} parent=27 // pred_check
          %p278 = pneg %p277
        $region38: #{_lambda_.2} parent=27 // pred_check_branch
          %280 = sbr.rel (%p278) target = $region40
        $region39: #{_lambda_.2} parent=27 // pred_region
          %vm281 = vcmask 523264
          %282 = vst.msk [vmem:[#allocation2] sm:$0xff] %vm281, 0.0
          %283 = vst.msk [vmem:[#allocation2 + $0x8] sm:$0xff] %vm281, 0.0
          %284 = vst.msk [vmem:[#allocation2 + $0x10] sm:$0xff] %vm281, 0.0
          %285 = vst.msk [vmem:[#allocation2 + $0x18] sm:$0xff] %vm281, 0.0
          %286 = vst.msk [vmem:[#allocation2 + $0x20] sm:$0xff] %vm281, 0.0
          %287 = vst.msk [vmem:[#allocation2 + $0x28] sm:$0xff] %vm281, 0.0
          %288 = vst.msk [vmem:[#allocation2 + $0x30] sm:$0xff] %vm281, 0.0
          %289 = vst.msk [vmem:[#allocation2 + $0x38] sm:$0xff] %vm281, 0.0
          %290 = vst.msk [vmem:[#allocation2 + $0x40] sm:$0xff] %vm281, 0.0
          %291 = vst.msk [vmem:[#allocation2 + $0x48] sm:$0xff] %vm281, 0.0
          %292 = vst.msk [vmem:[#allocation2 + $0x50] sm:$0xff] %vm281, 0.0
          %293 = vst.msk [vmem:[#allocation2 + $0x58] sm:$0xff] %vm281, 0.0
          %294 = vst.msk [vmem:[#allocation2 + $0x60] sm:$0xff] %vm281, 0.0
          %295 = vst.msk [vmem:[#allocation2 + $0x68] sm:$0xff] %vm281, 0.0
          %296 = vst.msk [vmem:[#allocation2 + $0x70] sm:$0xff] %vm281, 0.0
          %297 = vst.msk [vmem:[#allocation2 + $0x78] sm:$0xff] %vm281, 0.0
          %298 = vst.msk [vmem:[#allocation2 + $0x80] sm:$0xff] %vm281, 0.0
          %299 = vst.msk [vmem:[#allocation2 + $0x88] sm:$0xff] %vm281, 0.0
          %300 = vst.msk [vmem:[#allocation2 + $0x90] sm:$0xff] %vm281, 0.0
          %301 = vst.msk [vmem:[#allocation2 + $0x98] sm:$0xff] %vm281, 0.0
          %302 = vst.msk [vmem:[#allocation2 + $0xa0] sm:$0xff] %vm281, 0.0
          %303 = vst.msk [vmem:[#allocation2 + $0xa8] sm:$0xff] %vm281, 0.0
          %304 = vst.msk [vmem:[#allocation2 + $0xb0] sm:$0xff] %vm281, 0.0
          %305 = vst.msk [vmem:[#allocation2 + $0xb8] sm:$0xff] %vm281, 0.0
          %306 = vst.msk [vmem:[#allocation2 + $0xc0] sm:$0xff] %vm281, 0.0
          %307 = vst.msk [vmem:[#allocation2 + $0xc8] sm:$0xff] %vm281, 0.0
          %308 = vst.msk [vmem:[#allocation2 + $0xd0] sm:$0xff] %vm281, 0.0
          %309 = vst.msk [vmem:[#allocation2 + $0xd8] sm:$0xff] %vm281, 0.0
          %310 = vst.msk [vmem:[#allocation2 + $0xe0] sm:$0xff] %vm281, 0.0
          %311 = vst.msk [vmem:[#allocation2 + $0xe8] sm:$0xff] %vm281, 0.0
          %312 = vst.msk [vmem:[#allocation2 + $0xf0] sm:$0xff] %vm281, 0.0
          %313 = vst.msk [vmem:[#allocation2 + $0xf8] sm:$0xff] %vm281, 0.0
          %314 = vst.msk [vmem:[#allocation2 + $0x100] sm:$0xff] %vm281, 0.0
          %315 = vst.msk [vmem:[#allocation2 + $0x108] sm:$0xff] %vm281, 0.0
          %316 = vst.msk [vmem:[#allocation2 + $0x110] sm:$0xff] %vm281, 0.0
          %317 = vst.msk [vmem:[#allocation2 + $0x118] sm:$0xff] %vm281, 0.0
          %318 = vst.msk [vmem:[#allocation2 + $0x120] sm:$0xff] %vm281, 0.0
          %319 = vst.msk [vmem:[#allocation2 + $0x128] sm:$0xff] %vm281, 0.0
          %320 = vst.msk [vmem:[#allocation2 + $0x130] sm:$0xff] %vm281, 0.0
          %321 = vst.msk [vmem:[#allocation2 + $0x138] sm:$0xff] %vm281, 0.0
          %322 = vst.msk [vmem:[#allocation2 + $0x140] sm:$0xff] %vm281, 0.0
          %323 = vst.msk [vmem:[#allocation2 + $0x148] sm:$0xff] %vm281, 0.0
          %324 = vst.msk [vmem:[#allocation2 + $0x150] sm:$0xff] %vm281, 0.0
          %325 = vst.msk [vmem:[#allocation2 + $0x158] sm:$0xff] %vm281, 0.0
          %326 = vst.msk [vmem:[#allocation2 + $0x160] sm:$0xff] %vm281, 0.0
          %327 = vst.msk [vmem:[#allocation2 + $0x168] sm:$0xff] %vm281, 0.0
          %328 = vst.msk [vmem:[#allocation2 + $0x170] sm:$0xff] %vm281, 0.0
          %329 = vst.msk [vmem:[#allocation2 + $0x178] sm:$0xff] %vm281, 0.0
          %330 = vst.msk [vmem:[#allocation2 + $0x180] sm:$0xff] %vm281, 0.0
          %331 = vst.msk [vmem:[#allocation2 + $0x188] sm:$0xff] %vm281, 0.0
          %332 = vst.msk [vmem:[#allocation2 + $0x190] sm:$0xff] %vm281, 0.0
          %333 = vst.msk [vmem:[#allocation2 + $0x198] sm:$0xff] %vm281, 0.0
          %334 = vst.msk [vmem:[#allocation2 + $0x1a0] sm:$0xff] %vm281, 0.0
          %335 = vst.msk [vmem:[#allocation2 + $0x1a8] sm:$0xff] %vm281, 0.0
          %336 = vst.msk [vmem:[#allocation2 + $0x1b0] sm:$0xff] %vm281, 0.0
          %337 = vst.msk [vmem:[#allocation2 + $0x1b8] sm:$0xff] %vm281, 0.0
          %338 = vst.msk [vmem:[#allocation2 + $0x1c0] sm:$0xff] %vm281, 0.0
          %339 = vst.msk [vmem:[#allocation2 + $0x1c8] sm:$0xff] %vm281, 0.0
          %340 = vst.msk [vmem:[#allocation2 + $0x1d0] sm:$0xff] %vm281, 0.0
          %341 = vst.msk [vmem:[#allocation2 + $0x1d8] sm:$0xff] %vm281, 0.0
          %342 = vst.msk [vmem:[#allocation2 + $0x1e0] sm:$0xff] %vm281, 0.0
          %343 = vst.msk [vmem:[#allocation2 + $0x1e8] sm:$0xff] %vm281, 0.0
          %344 = vst.msk [vmem:[#allocation2 + $0x1f0] sm:$0xff] %vm281, 0.0
          %345 = vst.msk [vmem:[#allocation2 + $0x1f8] sm:$0xff] %vm281, 0.0
        $region40: #{_lambda_.2} parent=27 // pred_fallthru
          _
        %v346 = vld [vmem:[#allocation2] sm:$0xff]
        %v347 = vld [vmem:[#allocation2 + $0x8] sm:$0xff]
        %v348 = vld [vmem:[#allocation2 + $0x10] sm:$0xff]
        %v349 = vld [vmem:[#allocation2 + $0x18] sm:$0xff]
        %v350 = vld [vmem:[#allocation2 + $0x20] sm:$0xff]
        %v351 = vld [vmem:[#allocation2 + $0x28] sm:$0xff]
        %v352 = vld [vmem:[#allocation2 + $0x30] sm:$0xff]
        %v353 = vld [vmem:[#allocation2 + $0x38] sm:$0xff]
        %v354 = vld [vmem:[#allocation2 + $0x40] sm:$0xff]
        %v355 = vld [vmem:[#allocation2 + $0x48] sm:$0xff]
        %v356 = vld [vmem:[#allocation2 + $0x50] sm:$0xff]
        %v357 = vld [vmem:[#allocation2 + $0x58] sm:$0xff]
        %v358 = vld [vmem:[#allocation2 + $0x60] sm:$0xff]
        %v359 = vld [vmem:[#allocation2 + $0x68] sm:$0xff]
        %v360 = vld [vmem:[#allocation2 + $0x70] sm:$0xff]
        %v361 = vld [vmem:[#allocation2 + $0x78] sm:$0xff]
        %v362 = vld [vmem:[#allocation2 + $0x80] sm:$0xff]
        %v363 = vld [vmem:[#allocation2 + $0x88] sm:$0xff]
        %v364 = vld [vmem:[#allocation2 + $0x90] sm:$0xff]
        %v365 = vld [vmem:[#allocation2 + $0x98] sm:$0xff]
        %v366 = vld [vmem:[#allocation2 + $0xa0] sm:$0xff]
        %v367 = vld [vmem:[#allocation2 + $0xa8] sm:$0xff]
        %v368 = vld [vmem:[#allocation2 + $0xb0] sm:$0xff]
        %v369 = vld [vmem:[#allocation2 + $0xb8] sm:$0xff]
        %v370 = vld [vmem:[#allocation2 + $0xc0] sm:$0xff]
        %v371 = vld [vmem:[#allocation2 + $0xc8] sm:$0xff]
        %v372 = vld [vmem:[#allocation2 + $0xd0] sm:$0xff]
        %v373 = vld [vmem:[#allocation2 + $0xd8] sm:$0xff]
        %v374 = vld [vmem:[#allocation2 + $0xe0] sm:$0xff]
        %v375 = vld [vmem:[#allocation2 + $0xe8] sm:$0xff]
        %v376 = vld [vmem:[#allocation2 + $0xf0] sm:$0xff]
        %v377 = vld [vmem:[#allocation2 + $0xf8] sm:$0xff]
        %v378 = vld [vmem:[#allocation2 + $0x100] sm:$0xff]
        %v379 = vld [vmem:[#allocation2 + $0x108] sm:$0xff]
        %v380 = vld [vmem:[#allocation2 + $0x110] sm:$0xff]
        %v381 = vld [vmem:[#allocation2 + $0x118] sm:$0xff]
        %v382 = vld [vmem:[#allocation2 + $0x120] sm:$0xff]
        %v383 = vld [vmem:[#allocation2 + $0x128] sm:$0xff]
        %v384 = vld [vmem:[#allocation2 + $0x130] sm:$0xff]
        %v385 = vld [vmem:[#allocation2 + $0x138] sm:$0xff]
        %v386 = vld [vmem:[#allocation2 + $0x140] sm:$0xff]
        %v387 = vld [vmem:[#allocation2 + $0x148] sm:$0xff]
        %v388 = vld [vmem:[#allocation2 + $0x150] sm:$0xff]
        %v389 = vld [vmem:[#allocation2 + $0x158] sm:$0xff]
        %v390 = vld [vmem:[#allocation2 + $0x160] sm:$0xff]
        %v391 = vld [vmem:[#allocation2 + $0x168] sm:$0xff]
        %v392 = vld [vmem:[#allocation2 + $0x170] sm:$0xff]
        %v393 = vld [vmem:[#allocation2 + $0x178] sm:$0xff]
        %v394 = vld [vmem:[#allocation2 + $0x180] sm:$0xff]
        %v395 = vld [vmem:[#allocation2 + $0x188] sm:$0xff]
        %v396 = vld [vmem:[#allocation2 + $0x190] sm:$0xff]
        %v397 = vld [vmem:[#allocation2 + $0x198] sm:$0xff]
        %v398 = vld [vmem:[#allocation2 + $0x1a0] sm:$0xff]
        %v399 = vld [vmem:[#allocation2 + $0x1a8] sm:$0xff]
        %v400 = vld [vmem:[#allocation2 + $0x1b0] sm:$0xff]
        %v401 = vld [vmem:[#allocation2 + $0x1b8] sm:$0xff]
        %v402 = vld [vmem:[#allocation2 + $0x1c0] sm:$0xff]
        %v403 = vld [vmem:[#allocation2 + $0x1c8] sm:$0xff]
        %v404 = vld [vmem:[#allocation2 + $0x1d0] sm:$0xff]
        %v405 = vld [vmem:[#allocation2 + $0x1d8] sm:$0xff]
        %v406 = vld [vmem:[#allocation2 + $0x1e0] sm:$0xff]
        %v407 = vld [vmem:[#allocation2 + $0x1e8] sm:$0xff]
        %v408 = vld [vmem:[#allocation2 + $0x1f0] sm:$0xff]
        %v409 = vld [vmem:[#allocation2 + $0x1f8] sm:$0xff]
        %v410 = vld [vmem:[%s235] sm:$0xff]
        %v411 = vld [vmem:[%s235 + $0x8] sm:$0xff]
        %v412 = vld [vmem:[%s235 + $0x10] sm:$0xff]
        %v413 = vld [vmem:[%s235 + $0x18] sm:$0xff]
        %v414 = vld [vmem:[%s235 + $0x20] sm:$0xff]
        %v415 = vld [vmem:[%s235 + $0x28] sm:$0xff]
        %v416 = vld [vmem:[%s235 + $0x30] sm:$0xff]
        %v417 = vld [vmem:[%s235 + $0x38] sm:$0xff]
        %v418 = vld [vmem:[%s235 + $0x40] sm:$0xff]
        %v419 = vld [vmem:[%s235 + $0x48] sm:$0xff]
        %v420 = vld [vmem:[%s235 + $0x50] sm:$0xff]
        %v421 = vld [vmem:[%s235 + $0x58] sm:$0xff]
        %v422 = vld [vmem:[%s235 + $0x60] sm:$0xff]
        %v423 = vld [vmem:[%s235 + $0x68] sm:$0xff]
        %v424 = vld [vmem:[%s235 + $0x70] sm:$0xff]
        %v425 = vld [vmem:[%s235 + $0x78] sm:$0xff]
        %v426 = vld [vmem:[%s235 + $0x80] sm:$0xff]
        %v427 = vld [vmem:[%s235 + $0x88] sm:$0xff]
        %v428 = vld [vmem:[%s235 + $0x90] sm:$0xff]
        %v429 = vld [vmem:[%s235 + $0x98] sm:$0xff]
        %v430 = vld [vmem:[%s235 + $0xa0] sm:$0xff]
        %v431 = vld [vmem:[%s235 + $0xa8] sm:$0xff]
        %v432 = vld [vmem:[%s235 + $0xb0] sm:$0xff]
        %v433 = vld [vmem:[%s235 + $0xb8] sm:$0xff]
        %v434 = vld [vmem:[%s235 + $0xc0] sm:$0xff]
        %v435 = vld [vmem:[%s235 + $0xc8] sm:$0xff]
        %v436 = vld [vmem:[%s235 + $0xd0] sm:$0xff]
        %v437 = vld [vmem:[%s235 + $0xd8] sm:$0xff]
        %v438 = vld [vmem:[%s235 + $0xe0] sm:$0xff]
        %v439 = vld [vmem:[%s235 + $0xe8] sm:$0xff]
        %v440 = vld [vmem:[%s235 + $0xf0] sm:$0xff]
        %v441 = vld [vmem:[%s235 + $0xf8] sm:$0xff]
        %v442 = vld [vmem:[%s235 + $0x100] sm:$0xff]
        %v443 = vld [vmem:[%s235 + $0x108] sm:$0xff]
        %v444 = vld [vmem:[%s235 + $0x110] sm:$0xff]
        %v445 = vld [vmem:[%s235 + $0x118] sm:$0xff]
        %v446 = vld [vmem:[%s235 + $0x120] sm:$0xff]
        %v447 = vld [vmem:[%s235 + $0x128] sm:$0xff]
        %v448 = vld [vmem:[%s235 + $0x130] sm:$0xff]
        %v449 = vld [vmem:[%s235 + $0x138] sm:$0xff]
        %v450 = vld [vmem:[%s235 + $0x140] sm:$0xff]
        %v451 = vld [vmem:[%s235 + $0x148] sm:$0xff]
        %v452 = vld [vmem:[%s235 + $0x150] sm:$0xff]
        %v453 = vld [vmem:[%s235 + $0x158] sm:$0xff]
        %v454 = vld [vmem:[%s235 + $0x160] sm:$0xff]
        %v455 = vld [vmem:[%s235 + $0x168] sm:$0xff]
        %v456 = vld [vmem:[%s235 + $0x170] sm:$0xff]
        %v457 = vld [vmem:[%s235 + $0x178] sm:$0xff]
        %v458 = vld [vmem:[%s235 + $0x180] sm:$0xff]
        %v459 = vld [vmem:[%s235 + $0x188] sm:$0xff]
        %v460 = vld [vmem:[%s235 + $0x190] sm:$0xff]
        %v461 = vld [vmem:[%s235 + $0x198] sm:$0xff]
        %v462 = vld [vmem:[%s235 + $0x1a0] sm:$0xff]
        %v463 = vld [vmem:[%s235 + $0x1a8] sm:$0xff]
        %v464 = vld [vmem:[%s235 + $0x1b0] sm:$0xff]
        %v465 = vld [vmem:[%s235 + $0x1b8] sm:$0xff]
        %v466 = vld [vmem:[%s235 + $0x1c0] sm:$0xff]
        %v467 = vld [vmem:[%s235 + $0x1c8] sm:$0xff]
        %v468 = vld [vmem:[%s235 + $0x1d0] sm:$0xff]
        %v469 = vld [vmem:[%s235 + $0x1d8] sm:$0xff]
        %v470 = vld [vmem:[%s235 + $0x1e0] sm:$0xff]
        %v471 = vld [vmem:[%s235 + $0x1e8] sm:$0xff]
        %v472 = vld [vmem:[%s235 + $0x1f0] sm:$0xff]
        %v473 = vld [vmem:[%s235 + $0x1f8] sm:$0xff]
        %v474 = vld [vmem:[%s235 + $0x200] sm:$0xff]
        %v475 = vld [vmem:[%s235 + $0x208] sm:$0xff]
        %v476 = vld [vmem:[%s235 + $0x210] sm:$0xff]
        %v477 = vld [vmem:[%s235 + $0x218] sm:$0xff]
        %v478 = vld [vmem:[%s235 + $0x220] sm:$0xff]
        %v479 = vld [vmem:[%s235 + $0x228] sm:$0xff]
        %v480 = vld [vmem:[%s235 + $0x230] sm:$0xff]
        %v481 = vld [vmem:[%s235 + $0x238] sm:$0xff]
        %v482 = vld [vmem:[%s235 + $0x240] sm:$0xff]
        %v483 = vld [vmem:[%s235 + $0x248] sm:$0xff]
        %v484 = vld [vmem:[%s235 + $0x250] sm:$0xff]
        %v485 = vld [vmem:[%s235 + $0x258] sm:$0xff]
        %v486 = vld [vmem:[%s235 + $0x260] sm:$0xff]
        %v487 = vld [vmem:[%s235 + $0x268] sm:$0xff]
        %v488 = vld [vmem:[%s235 + $0x270] sm:$0xff]
        %v489 = vld [vmem:[%s235 + $0x278] sm:$0xff]
        %v490 = vld [vmem:[%s235 + $0x280] sm:$0xff]
        %v491 = vld [vmem:[%s235 + $0x288] sm:$0xff]
        %v492 = vld [vmem:[%s235 + $0x290] sm:$0xff]
        %v493 = vld [vmem:[%s235 + $0x298] sm:$0xff]
        %v494 = vld [vmem:[%s235 + $0x2a0] sm:$0xff]
        %v495 = vld [vmem:[%s235 + $0x2a8] sm:$0xff]
        %v496 = vld [vmem:[%s235 + $0x2b0] sm:$0xff]
        %v497 = vld [vmem:[%s235 + $0x2b8] sm:$0xff]
        %v498 = vld [vmem:[%s235 + $0x2c0] sm:$0xff]
        %v499 = vld [vmem:[%s235 + $0x2c8] sm:$0xff]
        %v500 = vld [vmem:[%s235 + $0x2d0] sm:$0xff]
        %v501 = vld [vmem:[%s235 + $0x2d8] sm:$0xff]
        %v502 = vld [vmem:[%s235 + $0x2e0] sm:$0xff]
        %v503 = vld [vmem:[%s235 + $0x2e8] sm:$0xff]
        %v504 = vld [vmem:[%s235 + $0x2f0] sm:$0xff]
        %v505 = vld [vmem:[%s235 + $0x2f8] sm:$0xff]
        %v506 = vld [vmem:[%s235 + $0x300] sm:$0xff]
        %v507 = vld [vmem:[%s235 + $0x308] sm:$0xff]
        %v508 = vld [vmem:[%s235 + $0x310] sm:$0xff]
        %v509 = vld [vmem:[%s235 + $0x318] sm:$0xff]
        %v510 = vld [vmem:[%s235 + $0x320] sm:$0xff]
        %v511 = vld [vmem:[%s235 + $0x328] sm:$0xff]
        %v512 = vld [vmem:[%s235 + $0x330] sm:$0xff]
        %v513 = vld [vmem:[%s235 + $0x338] sm:$0xff]
        %v514 = vld [vmem:[%s235 + $0x340] sm:$0xff]
        %v515 = vld [vmem:[%s235 + $0x348] sm:$0xff]
        %v516 = vld [vmem:[%s235 + $0x350] sm:$0xff]
        %v517 = vld [vmem:[%s235 + $0x358] sm:$0xff]
        %v518 = vld [vmem:[%s235 + $0x360] sm:$0xff]
        %v519 = vld [vmem:[%s235 + $0x368] sm:$0xff]
        %v520 = vld [vmem:[%s235 + $0x370] sm:$0xff]
        %v521 = vld [vmem:[%s235 + $0x378] sm:$0xff]
        %v522 = vld [vmem:[%s235 + $0x380] sm:$0xff]
        %v523 = vld [vmem:[%s235 + $0x388] sm:$0xff]
        %v524 = vld [vmem:[%s235 + $0x390] sm:$0xff]
        %v525 = vld [vmem:[%s235 + $0x398] sm:$0xff]
        %v526 = vld [vmem:[%s235 + $0x3a0] sm:$0xff]
        %v527 = vld [vmem:[%s235 + $0x3a8] sm:$0xff]
        %v528 = vld [vmem:[%s235 + $0x3b0] sm:$0xff]
        %v529 = vld [vmem:[%s235 + $0x3b8] sm:$0xff]
        %v530 = vld [vmem:[%s235 + $0x3c0] sm:$0xff]
        %v531 = vld [vmem:[%s235 + $0x3c8] sm:$0xff]
        %v532 = vld [vmem:[%s235 + $0x3d0] sm:$0xff]
        %v533 = vld [vmem:[%s235 + $0x3d8] sm:$0xff]
        %v534 = vld [vmem:[%s235 + $0x3e0] sm:$0xff]
        %v535 = vld [vmem:[%s235 + $0x3e8] sm:$0xff]
        %v536 = vld [vmem:[%s235 + $0x3f0] sm:$0xff]
        %v537 = vld [vmem:[%s235 + $0x3f8] sm:$0xff]
        %v538 = vld [vmem:[#allocation6] sm:$0xf]
        %v539 = vld [vmem:[#allocation6 + $0x4] sm:$0xf]
        %v540 = vld [vmem:[#allocation6 + $0x8] sm:$0xf]
        %v541 = vld [vmem:[#allocation6 + $0xc] sm:$0xf]
        %v542 = vld [vmem:[#allocation6 + $0x10] sm:$0xf]
        %v543 = vld [vmem:[#allocation6 + $0x14] sm:$0xf]
        %v544 = vld [vmem:[#allocation6 + $0x18] sm:$0xf]
        %v545 = vld [vmem:[#allocation6 + $0x1c] sm:$0xf]
        %v546 = vld [vmem:[#allocation6 + $0x20] sm:$0xf]
        %v547 = vld [vmem:[#allocation6 + $0x24] sm:$0xf]
        %v548 = vld [vmem:[#allocation6 + $0x28] sm:$0xf]
        %v549 = vld [vmem:[#allocation6 + $0x2c] sm:$0xf]
        %v550 = vld [vmem:[#allocation6 + $0x30] sm:$0xf]
        %v551 = vld [vmem:[#allocation6 + $0x34] sm:$0xf]
        %v552 = vld [vmem:[#allocation6 + $0x38] sm:$0xf]
        %v553 = vld [vmem:[#allocation6 + $0x3c] sm:$0xf]
        %v554 = vld [vmem:[#allocation6 + $0x40] sm:$0xf]
        %v555 = vld [vmem:[#allocation6 + $0x44] sm:$0xf]
        %v556 = vld [vmem:[#allocation6 + $0x48] sm:$0xf]
        %v557 = vld [vmem:[#allocation6 + $0x4c] sm:$0xf]
        %v558 = vld [vmem:[#allocation6 + $0x50] sm:$0xf]
        %v559 = vld [vmem:[#allocation6 + $0x54] sm:$0xf]
        %v560 = vld [vmem:[#allocation6 + $0x58] sm:$0xf]
        %v561 = vld [vmem:[#allocation6 + $0x5c] sm:$0xf]
        %v562 = vld [vmem:[#allocation6 + $0x60] sm:$0xf]
        %v563 = vld [vmem:[#allocation6 + $0x64] sm:$0xf]
        %v564 = vld [vmem:[#allocation6 + $0x68] sm:$0xf]
        %v565 = vld [vmem:[#allocation6 + $0x6c] sm:$0xf]
        %v566 = vld [vmem:[#allocation6 + $0x70] sm:$0xf]
        %v567 = vld [vmem:[#allocation6 + $0x74] sm:$0xf]
        %v568 = vld [vmem:[#allocation6 + $0x78] sm:$0xf]
        %v569 = vld [vmem:[#allocation6 + $0x7c] sm:$0xf]
        %v570 = vld [vmem:[#allocation6 + $0x80] sm:$0xf]
        %v571 = vld [vmem:[#allocation6 + $0x84] sm:$0xf]
        %v572 = vld [vmem:[#allocation6 + $0x88] sm:$0xf]
        %v573 = vld [vmem:[#allocation6 + $0x8c] sm:$0xf]
        %v574 = vld [vmem:[#allocation6 + $0x90] sm:$0xf]
        %v575 = vld [vmem:[#allocation6 + $0x94] sm:$0xf]
        %v576 = vld [vmem:[#allocation6 + $0x98] sm:$0xf]
        %v577 = vld [vmem:[#allocation6 + $0x9c] sm:$0xf]
        %v578 = vld [vmem:[#allocation6 + $0xa0] sm:$0xf]
        %v579 = vld [vmem:[#allocation6 + $0xa4] sm:$0xf]
        %v580 = vld [vmem:[#allocation6 + $0xa8] sm:$0xf]
        %v581 = vld [vmem:[#allocation6 + $0xac] sm:$0xf]
        %v582 = vld [vmem:[#allocation6 + $0xb0] sm:$0xf]
        %v583 = vld [vmem:[#allocation6 + $0xb4] sm:$0xf]
        %v584 = vld [vmem:[#allocation6 + $0xb8] sm:$0xf]
        %v585 = vld [vmem:[#allocation6 + $0xbc] sm:$0xf]
        %v586 = vld [vmem:[#allocation6 + $0xc0] sm:$0xf]
        %v587 = vld [vmem:[#allocation6 + $0xc4] sm:$0xf]
        %v588 = vld [vmem:[#allocation6 + $0xc8] sm:$0xf]
        %v589 = vld [vmem:[#allocation6 + $0xcc] sm:$0xf]
        %v590 = vld [vmem:[#allocation6 + $0xd0] sm:$0xf]
        %v591 = vld [vmem:[#allocation6 + $0xd4] sm:$0xf]
        %v592 = vld [vmem:[#allocation6 + $0xd8] sm:$0xf]
        %v593 = vld [vmem:[#allocation6 + $0xdc] sm:$0xf]
        %v594 = vld [vmem:[#allocation6 + $0xe0] sm:$0xf]
        %v595 = vld [vmem:[#allocation6 + $0xe4] sm:$0xf]
        %v596 = vld [vmem:[#allocation6 + $0xe8] sm:$0xf]
        %v597 = vld [vmem:[#allocation6 + $0xec] sm:$0xf]
        %v598 = vld [vmem:[#allocation6 + $0xf0] sm:$0xf]
        %v599 = vld [vmem:[#allocation6 + $0xf4] sm:$0xf]
        %v600 = vld [vmem:[#allocation6 + $0xf8] sm:$0xf]
        %v601 = vld [vmem:[#allocation6 + $0xfc] sm:$0xf]
        %v730 = vunpack.c.l.b16 %v410
        %v731 = vunpack.c.h.b16 %v410
        %v732 = vunpack.c.l.b16 %v411
        %v733 = vunpack.c.h.b16 %v411
        %v734 = vunpack.c.l.b16 %v412
        %v735 = vunpack.c.h.b16 %v412
        %v736 = vunpack.c.l.b16 %v413
        %v737 = vunpack.c.h.b16 %v413
        %v738 = vunpack.c.l.b16 %v414
        %v739 = vunpack.c.h.b16 %v414
        %v740 = vunpack.c.l.b16 %v415
        %v741 = vunpack.c.h.b16 %v415
        %v742 = vunpack.c.l.b16 %v416
        %v743 = vunpack.c.h.b16 %v416
        %v744 = vunpack.c.l.b16 %v417
        %v745 = vunpack.c.h.b16 %v417
        %v746 = vunpack.c.l.b16 %v418
        %v747 = vunpack.c.h.b16 %v418
        %v748 = vunpack.c.l.b16 %v419
        %v749 = vunpack.c.h.b16 %v419
        %v750 = vunpack.c.l.b16 %v420
        %v751 = vunpack.c.h.b16 %v420
        %v752 = vunpack.c.l.b16 %v421
        %v753 = vunpack.c.h.b16 %v421
        %v754 = vunpack.c.l.b16 %v422
        %v755 = vunpack.c.h.b16 %v422
        %v756 = vunpack.c.l.b16 %v423
        %v757 = vunpack.c.h.b16 %v423
        %v758 = vunpack.c.l.b16 %v424
        %v759 = vunpack.c.h.b16 %v424
        %v760 = vunpack.c.l.b16 %v425
        %v761 = vunpack.c.h.b16 %v425
        %v762 = vunpack.c.l.b16 %v426
        %v763 = vunpack.c.h.b16 %v426
        %v764 = vunpack.c.l.b16 %v427
        %v765 = vunpack.c.h.b16 %v427
        %v766 = vunpack.c.l.b16 %v428
        %v767 = vunpack.c.h.b16 %v428
        %v768 = vunpack.c.l.b16 %v429
        %v769 = vunpack.c.h.b16 %v429
        %v770 = vunpack.c.l.b16 %v430
        %v771 = vunpack.c.h.b16 %v430
        %v772 = vunpack.c.l.b16 %v431
        %v773 = vunpack.c.h.b16 %v431
        %v774 = vunpack.c.l.b16 %v432
        %v775 = vunpack.c.h.b16 %v432
        %v776 = vunpack.c.l.b16 %v433
        %v777 = vunpack.c.h.b16 %v433
        %v778 = vunpack.c.l.b16 %v434
        %v779 = vunpack.c.h.b16 %v434
        %v780 = vunpack.c.l.b16 %v435
        %v781 = vunpack.c.h.b16 %v435
        %v782 = vunpack.c.l.b16 %v436
        %v783 = vunpack.c.h.b16 %v436
        %v784 = vunpack.c.l.b16 %v437
        %v785 = vunpack.c.h.b16 %v437
        %v786 = vunpack.c.l.b16 %v438
        %v787 = vunpack.c.h.b16 %v438
        %v788 = vunpack.c.l.b16 %v439
        %v789 = vunpack.c.h.b16 %v439
        %v790 = vunpack.c.l.b16 %v440
        %v791 = vunpack.c.h.b16 %v440
        %v792 = vunpack.c.l.b16 %v441
        %v793 = vunpack.c.h.b16 %v441
        %v794 = vunpack.c.l.b16 %v442
        %v795 = vunpack.c.h.b16 %v442
        %v796 = vunpack.c.l.b16 %v443
        %v797 = vunpack.c.h.b16 %v443
        %v798 = vunpack.c.l.b16 %v444
        %v799 = vunpack.c.h.b16 %v444
        %v800 = vunpack.c.l.b16 %v445
        %v801 = vunpack.c.h.b16 %v445
        %v802 = vunpack.c.l.b16 %v446
        %v803 = vunpack.c.h.b16 %v446
        %v804 = vunpack.c.l.b16 %v447
        %v805 = vunpack.c.h.b16 %v447
        %v806 = vunpack.c.l.b16 %v448
        %v807 = vunpack.c.h.b16 %v448
        %v808 = vunpack.c.l.b16 %v449
        %v809 = vunpack.c.h.b16 %v449
        %v810 = vunpack.c.l.b16 %v450
        %v811 = vunpack.c.h.b16 %v450
        %v812 = vunpack.c.l.b16 %v451
        %v813 = vunpack.c.h.b16 %v451
        %v814 = vunpack.c.l.b16 %v452
        %v815 = vunpack.c.h.b16 %v452
        %v816 = vunpack.c.l.b16 %v453
        %v817 = vunpack.c.h.b16 %v453
        %v818 = vunpack.c.l.b16 %v454
        %v819 = vunpack.c.h.b16 %v454
        %v820 = vunpack.c.l.b16 %v455
        %v821 = vunpack.c.h.b16 %v455
        %v822 = vunpack.c.l.b16 %v456
        %v823 = vunpack.c.h.b16 %v456
        %v824 = vunpack.c.l.b16 %v457
        %v825 = vunpack.c.h.b16 %v457
        %v826 = vunpack.c.l.b16 %v458
        %v827 = vunpack.c.h.b16 %v458
        %v828 = vunpack.c.l.b16 %v459
        %v829 = vunpack.c.h.b16 %v459
        %v830 = vunpack.c.l.b16 %v460
        %v831 = vunpack.c.h.b16 %v460
        %v832 = vunpack.c.l.b16 %v461
        %v833 = vunpack.c.h.b16 %v461
        %v834 = vunpack.c.l.b16 %v462
        %v835 = vunpack.c.h.b16 %v462
        %v836 = vunpack.c.l.b16 %v463
        %v837 = vunpack.c.h.b16 %v463
        %v838 = vunpack.c.l.b16 %v464
        %v839 = vunpack.c.h.b16 %v464
        %v840 = vunpack.c.l.b16 %v465
        %v841 = vunpack.c.h.b16 %v465
        %v842 = vunpack.c.l.b16 %v466
        %v843 = vunpack.c.h.b16 %v466
        %v844 = vunpack.c.l.b16 %v467
        %v845 = vunpack.c.h.b16 %v467
        %v846 = vunpack.c.l.b16 %v468
        %v847 = vunpack.c.h.b16 %v468
        %v848 = vunpack.c.l.b16 %v469
        %v849 = vunpack.c.h.b16 %v469
        %v850 = vunpack.c.l.b16 %v470
        %v851 = vunpack.c.h.b16 %v470
        %v852 = vunpack.c.l.b16 %v471
        %v853 = vunpack.c.h.b16 %v471
        %v854 = vunpack.c.l.b16 %v472
        %v855 = vunpack.c.h.b16 %v472
        %v856 = vunpack.c.l.b16 %v473
        %v857 = vunpack.c.h.b16 %v473
        %v858 = vunpack.c.l.b16 %v474
        %v859 = vunpack.c.h.b16 %v474
        %v860 = vunpack.c.l.b16 %v475
        %v861 = vunpack.c.h.b16 %v475
        %v862 = vunpack.c.l.b16 %v476
        %v863 = vunpack.c.h.b16 %v476
        %v864 = vunpack.c.l.b16 %v477
        %v865 = vunpack.c.h.b16 %v477
        %v866 = vunpack.c.l.b16 %v478
        %v867 = vunpack.c.h.b16 %v478
        %v868 = vunpack.c.l.b16 %v479
        %v869 = vunpack.c.h.b16 %v479
        %v870 = vunpack.c.l.b16 %v480
        %v871 = vunpack.c.h.b16 %v480
        %v872 = vunpack.c.l.b16 %v481
        %v873 = vunpack.c.h.b16 %v481
        %v874 = vunpack.c.l.b16 %v482
        %v875 = vunpack.c.h.b16 %v482
        %v876 = vunpack.c.l.b16 %v483
        %v877 = vunpack.c.h.b16 %v483
        %v878 = vunpack.c.l.b16 %v484
        %v879 = vunpack.c.h.b16 %v484
        %v880 = vunpack.c.l.b16 %v485
        %v881 = vunpack.c.h.b16 %v485
        %v882 = vunpack.c.l.b16 %v486
        %v883 = vunpack.c.h.b16 %v486
        %v884 = vunpack.c.l.b16 %v487
        %v885 = vunpack.c.h.b16 %v487
        %v886 = vunpack.c.l.b16 %v488
        %v887 = vunpack.c.h.b16 %v488
        %v888 = vunpack.c.l.b16 %v489
        %v889 = vunpack.c.h.b16 %v489
        %v890 = vunpack.c.l.b16 %v490
        %v891 = vunpack.c.h.b16 %v490
        %v892 = vunpack.c.l.b16 %v491
        %v893 = vunpack.c.h.b16 %v491
        %v894 = vunpack.c.l.b16 %v492
        %v895 = vunpack.c.h.b16 %v492
        %v896 = vunpack.c.l.b16 %v493
        %v897 = vunpack.c.h.b16 %v493
        %v898 = vunpack.c.l.b16 %v494
        %v899 = vunpack.c.h.b16 %v494
        %v900 = vunpack.c.l.b16 %v495
        %v901 = vunpack.c.h.b16 %v495
        %v902 = vunpack.c.l.b16 %v496
        %v903 = vunpack.c.h.b16 %v496
        %v904 = vunpack.c.l.b16 %v497
        %v905 = vunpack.c.h.b16 %v497
        %v906 = vunpack.c.l.b16 %v498
        %v907 = vunpack.c.h.b16 %v498
        %v908 = vunpack.c.l.b16 %v499
        %v909 = vunpack.c.h.b16 %v499
        %v910 = vunpack.c.l.b16 %v500
        %v911 = vunpack.c.h.b16 %v500
        %v912 = vunpack.c.l.b16 %v501
        %v913 = vunpack.c.h.b16 %v501
        %v914 = vunpack.c.l.b16 %v502
        %v915 = vunpack.c.h.b16 %v502
        %v916 = vunpack.c.l.b16 %v503
        %v917 = vunpack.c.h.b16 %v503
        %v918 = vunpack.c.l.b16 %v504
        %v919 = vunpack.c.h.b16 %v504
        %v920 = vunpack.c.l.b16 %v505
        %v921 = vunpack.c.h.b16 %v505
        %v922 = vunpack.c.l.b16 %v506
        %v923 = vunpack.c.h.b16 %v506
        %v924 = vunpack.c.l.b16 %v507
        %v925 = vunpack.c.h.b16 %v507
        %v926 = vunpack.c.l.b16 %v508
        %v927 = vunpack.c.h.b16 %v508
        %v928 = vunpack.c.l.b16 %v509
        %v929 = vunpack.c.h.b16 %v509
        %v930 = vunpack.c.l.b16 %v510
        %v931 = vunpack.c.h.b16 %v510
        %v932 = vunpack.c.l.b16 %v511
        %v933 = vunpack.c.h.b16 %v511
        %v934 = vunpack.c.l.b16 %v512
        %v935 = vunpack.c.h.b16 %v512
        %v936 = vunpack.c.l.b16 %v513
        %v937 = vunpack.c.h.b16 %v513
        %v938 = vunpack.c.l.b16 %v514
        %v939 = vunpack.c.h.b16 %v514
        %v940 = vunpack.c.l.b16 %v515
        %v941 = vunpack.c.h.b16 %v515
        %v942 = vunpack.c.l.b16 %v516
        %v943 = vunpack.c.h.b16 %v516
        %v944 = vunpack.c.l.b16 %v517
        %v945 = vunpack.c.h.b16 %v517
        %v946 = vunpack.c.l.b16 %v518
        %v947 = vunpack.c.h.b16 %v518
        %v948 = vunpack.c.l.b16 %v519
        %v949 = vunpack.c.h.b16 %v519
        %v950 = vunpack.c.l.b16 %v520
        %v951 = vunpack.c.h.b16 %v520
        %v952 = vunpack.c.l.b16 %v521
        %v953 = vunpack.c.h.b16 %v521
        %v954 = vunpack.c.l.b16 %v522
        %v955 = vunpack.c.h.b16 %v522
        %v956 = vunpack.c.l.b16 %v523
        %v957 = vunpack.c.h.b16 %v523
        %v958 = vunpack.c.l.b16 %v524
        %v959 = vunpack.c.h.b16 %v524
        %v960 = vunpack.c.l.b16 %v525
        %v961 = vunpack.c.h.b16 %v525
        %v962 = vunpack.c.l.b16 %v526
        %v963 = vunpack.c.h.b16 %v526
        %v964 = vunpack.c.l.b16 %v527
        %v965 = vunpack.c.h.b16 %v527
        %v966 = vunpack.c.l.b16 %v528
        %v967 = vunpack.c.h.b16 %v528
        %v968 = vunpack.c.l.b16 %v529
        %v969 = vunpack.c.h.b16 %v529
        %v970 = vunpack.c.l.b16 %v530
        %v971 = vunpack.c.h.b16 %v530
        %v972 = vunpack.c.l.b16 %v531
        %v973 = vunpack.c.h.b16 %v531
        %v974 = vunpack.c.l.b16 %v532
        %v975 = vunpack.c.h.b16 %v532
        %v976 = vunpack.c.l.b16 %v533
        %v977 = vunpack.c.h.b16 %v533
        %v978 = vunpack.c.l.b16 %v534
        %v979 = vunpack.c.h.b16 %v534
        %v980 = vunpack.c.l.b16 %v535
        %v981 = vunpack.c.h.b16 %v535
        %v982 = vunpack.c.l.b16 %v536
        %v983 = vunpack.c.h.b16 %v536
        %v984 = vunpack.c.l.b16 %v537
        %v985 = vunpack.c.h.b16 %v537
        %v986 = vpack.c.b16 %v734, %v730
        %v987 = vpack.c.b16 %v735, %v731
        %v988 = vpack.c.b16 %v736, %v732
        %v989 = vpack.c.b16 %v737, %v733
        %v990 = vpack.c.b16 %v742, %v738
        %v991 = vpack.c.b16 %v743, %v739
        %v992 = vpack.c.b16 %v744, %v740
        %v993 = vpack.c.b16 %v745, %v741
        %v994 = vpack.c.b16 %v750, %v746
        %v995 = vpack.c.b16 %v751, %v747
        %v996 = vpack.c.b16 %v752, %v748
        %v997 = vpack.c.b16 %v753, %v749
        %v998 = vpack.c.b16 %v758, %v754
        %v999 = vpack.c.b16 %v759, %v755
        %v1000 = vpack.c.b16 %v760, %v756
        %v1001 = vpack.c.b16 %v761, %v757
        %v1002 = vpack.c.b16 %v766, %v762
        %v1003 = vpack.c.b16 %v767, %v763
        %v1004 = vpack.c.b16 %v768, %v764
        %v1005 = vpack.c.b16 %v769, %v765
        %v1006 = vpack.c.b16 %v774, %v770
        %v1007 = vpack.c.b16 %v775, %v771
        %v1008 = vpack.c.b16 %v776, %v772
        %v1009 = vpack.c.b16 %v777, %v773
        %v1010 = vpack.c.b16 %v782, %v778
        %v1011 = vpack.c.b16 %v783, %v779
        %v1012 = vpack.c.b16 %v784, %v780
        %v1013 = vpack.c.b16 %v785, %v781
        %v1014 = vpack.c.b16 %v790, %v786
        %v1015 = vpack.c.b16 %v791, %v787
        %v1016 = vpack.c.b16 %v792, %v788
        %v1017 = vpack.c.b16 %v793, %v789
        %v1018 = vpack.c.b16 %v798, %v794
        %v1019 = vpack.c.b16 %v799, %v795
        %v1020 = vpack.c.b16 %v800, %v796
        %v1021 = vpack.c.b16 %v801, %v797
        %v1022 = vpack.c.b16 %v806, %v802
        %v1023 = vpack.c.b16 %v807, %v803
        %v1024 = vpack.c.b16 %v808, %v804
        %v1025 = vpack.c.b16 %v809, %v805
        %v1026 = vpack.c.b16 %v814, %v810
        %v1027 = vpack.c.b16 %v815, %v811
        %v1028 = vpack.c.b16 %v816, %v812
        %v1029 = vpack.c.b16 %v817, %v813
        %v1030 = vpack.c.b16 %v822, %v818
        %v1031 = vpack.c.b16 %v823, %v819
        %v1032 = vpack.c.b16 %v824, %v820
        %v1033 = vpack.c.b16 %v825, %v821
        %v1034 = vpack.c.b16 %v830, %v826
        %v1035 = vpack.c.b16 %v831, %v827
        %v1036 = vpack.c.b16 %v832, %v828
        %v1037 = vpack.c.b16 %v833, %v829
        %v1038 = vpack.c.b16 %v838, %v834
        %v1039 = vpack.c.b16 %v839, %v835
        %v1040 = vpack.c.b16 %v840, %v836
        %v1041 = vpack.c.b16 %v841, %v837
        %v1042 = vpack.c.b16 %v846, %v842
        %v1043 = vpack.c.b16 %v847, %v843
        %v1044 = vpack.c.b16 %v848, %v844
        %v1045 = vpack.c.b16 %v849, %v845
        %v1046 = vpack.c.b16 %v854, %v850
        %v1047 = vpack.c.b16 %v855, %v851
        %v1048 = vpack.c.b16 %v856, %v852
        %v1049 = vpack.c.b16 %v857, %v853
        %v1050 = vpack.c.b16 %v862, %v858
        %v1051 = vpack.c.b16 %v863, %v859
        %v1052 = vpack.c.b16 %v864, %v860
        %v1053 = vpack.c.b16 %v865, %v861
        %v1054 = vpack.c.b16 %v870, %v866
        %v1055 = vpack.c.b16 %v871, %v867
        %v1056 = vpack.c.b16 %v872, %v868
        %v1057 = vpack.c.b16 %v873, %v869
        %v1058 = vpack.c.b16 %v878, %v874
        %v1059 = vpack.c.b16 %v879, %v875
        %v1060 = vpack.c.b16 %v880, %v876
        %v1061 = vpack.c.b16 %v881, %v877
        %v1062 = vpack.c.b16 %v886, %v882
        %v1063 = vpack.c.b16 %v887, %v883
        %v1064 = vpack.c.b16 %v888, %v884
        %v1065 = vpack.c.b16 %v889, %v885
        %v1066 = vpack.c.b16 %v894, %v890
        %v1067 = vpack.c.b16 %v895, %v891
        %v1068 = vpack.c.b16 %v896, %v892
        %v1069 = vpack.c.b16 %v897, %v893
        %v1070 = vpack.c.b16 %v902, %v898
        %v1071 = vpack.c.b16 %v903, %v899
        %v1072 = vpack.c.b16 %v904, %v900
        %v1073 = vpack.c.b16 %v905, %v901
        %v1074 = vpack.c.b16 %v910, %v906
        %v1075 = vpack.c.b16 %v911, %v907
        %v1076 = vpack.c.b16 %v912, %v908
        %v1077 = vpack.c.b16 %v913, %v909
        %v1078 = vpack.c.b16 %v918, %v914
        %v1079 = vpack.c.b16 %v919, %v915
        %v1080 = vpack.c.b16 %v920, %v916
        %v1081 = vpack.c.b16 %v921, %v917
        %v1082 = vpack.c.b16 %v926, %v922
        %v1083 = vpack.c.b16 %v927, %v923
        %v1084 = vpack.c.b16 %v928, %v924
        %v1085 = vpack.c.b16 %v929, %v925
        %v1086 = vpack.c.b16 %v934, %v930
        %v1087 = vpack.c.b16 %v935, %v931
        %v1088 = vpack.c.b16 %v936, %v932
        %v1089 = vpack.c.b16 %v937, %v933
        %v1090 = vpack.c.b16 %v942, %v938
        %v1091 = vpack.c.b16 %v943, %v939
        %v1092 = vpack.c.b16 %v944, %v940
        %v1093 = vpack.c.b16 %v945, %v941
        %v1094 = vpack.c.b16 %v950, %v946
        %v1095 = vpack.c.b16 %v951, %v947
        %v1096 = vpack.c.b16 %v952, %v948
        %v1097 = vpack.c.b16 %v953, %v949
        %v1098 = vpack.c.b16 %v958, %v954
        %v1099 = vpack.c.b16 %v959, %v955
        %v1100 = vpack.c.b16 %v960, %v956
        %v1101 = vpack.c.b16 %v961, %v957
        %v1102 = vpack.c.b16 %v966, %v962
        %v1103 = vpack.c.b16 %v967, %v963
        %v1104 = vpack.c.b16 %v968, %v964
        %v1105 = vpack.c.b16 %v969, %v965
        %v1106 = vpack.c.b16 %v974, %v970
        %v1107 = vpack.c.b16 %v975, %v971
        %v1108 = vpack.c.b16 %v976, %v972
        %v1109 = vpack.c.b16 %v977, %v973
        %v1110 = vpack.c.b16 %v982, %v978
        %v1111 = vpack.c.b16 %v983, %v979
        %v1112 = vpack.c.b16 %v984, %v980
        %v1113 = vpack.c.b16 %v985, %v981
        %v1306 = vunpack.c.l.b16 %v538
        %v1307 = vunpack.c.l.b16 %v539
        %v1308 = vunpack.c.l.b16 %v540
        %v1309 = vunpack.c.l.b16 %v541
        %v1310 = vunpack.c.l.b16 %v542
        %v1311 = vunpack.c.l.b16 %v543
        %v1312 = vunpack.c.l.b16 %v544
        %v1313 = vunpack.c.l.b16 %v545
        %v1314 = vunpack.c.l.b16 %v546
        %v1315 = vunpack.c.l.b16 %v547
        %v1316 = vunpack.c.l.b16 %v548
        %v1317 = vunpack.c.l.b16 %v549
        %v1318 = vunpack.c.l.b16 %v550
        %v1319 = vunpack.c.l.b16 %v551
        %v1320 = vunpack.c.l.b16 %v552
        %v1321 = vunpack.c.l.b16 %v553
        %v1322 = vunpack.c.l.b16 %v554
        %v1323 = vunpack.c.l.b16 %v555
        %v1324 = vunpack.c.l.b16 %v556
        %v1325 = vunpack.c.l.b16 %v557
        %v1326 = vunpack.c.l.b16 %v558
        %v1327 = vunpack.c.l.b16 %v559
        %v1328 = vunpack.c.l.b16 %v560
        %v1329 = vunpack.c.l.b16 %v561
        %v1330 = vunpack.c.l.b16 %v562
        %v1331 = vunpack.c.l.b16 %v563
        %v1332 = vunpack.c.l.b16 %v564
        %v1333 = vunpack.c.l.b16 %v565
        %v1334 = vunpack.c.l.b16 %v566
        %v1335 = vunpack.c.l.b16 %v567
        %v1336 = vunpack.c.l.b16 %v568
        %v1337 = vunpack.c.l.b16 %v569
        %v1338 = vunpack.c.l.b16 %v570
        %v1339 = vunpack.c.l.b16 %v571
        %v1340 = vunpack.c.l.b16 %v572
        %v1341 = vunpack.c.l.b16 %v573
        %v1342 = vunpack.c.l.b16 %v574
        %v1343 = vunpack.c.l.b16 %v575
        %v1344 = vunpack.c.l.b16 %v576
        %v1345 = vunpack.c.l.b16 %v577
        %v1346 = vunpack.c.l.b16 %v578
        %v1347 = vunpack.c.l.b16 %v579
        %v1348 = vunpack.c.l.b16 %v580
        %v1349 = vunpack.c.l.b16 %v581
        %v1350 = vunpack.c.l.b16 %v582
        %v1351 = vunpack.c.l.b16 %v583
        %v1352 = vunpack.c.l.b16 %v584
        %v1353 = vunpack.c.l.b16 %v585
        %v1354 = vunpack.c.l.b16 %v586
        %v1355 = vunpack.c.l.b16 %v587
        %v1356 = vunpack.c.l.b16 %v588
        %v1357 = vunpack.c.l.b16 %v589
        %v1358 = vunpack.c.l.b16 %v590
        %v1359 = vunpack.c.l.b16 %v591
        %v1360 = vunpack.c.l.b16 %v592
        %v1361 = vunpack.c.l.b16 %v593
        %v1362 = vunpack.c.l.b16 %v594
        %v1363 = vunpack.c.l.b16 %v595
        %v1364 = vunpack.c.l.b16 %v596
        %v1365 = vunpack.c.l.b16 %v597
        %v1366 = vunpack.c.l.b16 %v598
        %v1367 = vunpack.c.l.b16 %v599
        %v1368 = vunpack.c.l.b16 %v600
        %v1369 = vunpack.c.l.b16 %v601
        %v1370 = vpack.c.b16 %v1307, %v1306
        %v1371 = vpack.c.b16 %v1309, %v1308
        %v1372 = vpack.c.b16 %v1311, %v1310
        %v1373 = vpack.c.b16 %v1313, %v1312
        %v1374 = vpack.c.b16 %v1315, %v1314
        %v1375 = vpack.c.b16 %v1317, %v1316
        %v1376 = vpack.c.b16 %v1319, %v1318
        %v1377 = vpack.c.b16 %v1321, %v1320
        %v1378 = vpack.c.b16 %v1323, %v1322
        %v1379 = vpack.c.b16 %v1325, %v1324
        %v1380 = vpack.c.b16 %v1327, %v1326
        %v1381 = vpack.c.b16 %v1329, %v1328
        %v1382 = vpack.c.b16 %v1331, %v1330
        %v1383 = vpack.c.b16 %v1333, %v1332
        %v1384 = vpack.c.b16 %v1335, %v1334
        %v1385 = vpack.c.b16 %v1337, %v1336
        %v1386 = vpack.c.b16 %v1339, %v1338
        %v1387 = vpack.c.b16 %v1341, %v1340
        %v1388 = vpack.c.b16 %v1343, %v1342
        %v1389 = vpack.c.b16 %v1345, %v1344
        %v1390 = vpack.c.b16 %v1347, %v1346
        %v1391 = vpack.c.b16 %v1349, %v1348
        %v1392 = vpack.c.b16 %v1351, %v1350
        %v1393 = vpack.c.b16 %v1353, %v1352
        %v1394 = vpack.c.b16 %v1355, %v1354
        %v1395 = vpack.c.b16 %v1357, %v1356
        %v1396 = vpack.c.b16 %v1359, %v1358
        %v1397 = vpack.c.b16 %v1361, %v1360
        %v1398 = vpack.c.b16 %v1363, %v1362
        %v1399 = vpack.c.b16 %v1365, %v1364
        %v1400 = vpack.c.b16 %v1367, %v1366
        %v1401 = vpack.c.b16 %v1369, %v1368
        %1434 = vmatprep.subr.bf16.mxu0 0
        %1435 = vmatpush1.bf16.msra.mxu0 %v1370
        %1436 = vmatprep.subr.bf16.mxu0 0
        %1437 = vmatpush1.bf16.msra.mxu0 %v1371
        %1438 = vmatprep.subr.bf16.mxu0 0
        %1439 = vmatpush1.bf16.msra.mxu0 %v1372
        %1440 = vmatprep.subr.bf16.mxu0 0
        %1441 = vmatpush1.bf16.msra.mxu0 %v1373
        %1442 = vmatprep.subr.bf16.mxu0 0
        %1443 = vmatpush1.bf16.msra.mxu0 %v1374
        %1444 = vmatprep.subr.bf16.mxu0 0
        %1445 = vmatpush1.bf16.msra.mxu0 %v1375
        %1446 = vmatprep.subr.bf16.mxu0 0
        %1447 = vmatpush1.bf16.msra.mxu0 %v1376
        %1448 = vmatprep.subr.bf16.mxu0 0
        %1449 = vmatpush1.bf16.msra.mxu0 %v1377
        %1450 = vmatprep.subr.bf16.mxu0 0
        %1451 = vmatpush1.bf16.msra.mxu0 %v1378
        %1452 = vmatprep.subr.bf16.mxu0 0
        %1453 = vmatpush1.bf16.msra.mxu0 %v1379
        %1454 = vmatprep.subr.bf16.mxu0 0
        %1455 = vmatpush1.bf16.msra.mxu0 %v1380
        %1456 = vmatprep.subr.bf16.mxu0 0
        %1457 = vmatpush1.bf16.msra.mxu0 %v1381
        %1458 = vmatprep.subr.bf16.mxu0 0
        %1459 = vmatpush1.bf16.msra.mxu0 %v1382
        %1460 = vmatprep.subr.bf16.mxu0 0
        %1461 = vmatpush1.bf16.msra.mxu0 %v1383
        %1462 = vmatprep.subr.bf16.mxu0 0
        %1463 = vmatpush1.bf16.msra.mxu0 %v1384
        %1464 = vmatprep.subr.bf16.mxu0 0
        %1465 = vmatpush1.bf16.msra.mxu0 %v1385
        %1466 = vmatprep.mubr.bf16.mxu0 %v987
        %1467 = vmatmul.mubr.bf16.gmra.mrb[0].mxu0 %v986
        %v1468 = vpop.f32.mrb[0].mxu0
        %v1469 = vadd.f32 0.0, %v1468
        %v1470 = vpop.f32.mrb[0].mxu0
        %v1471 = vpop.f32.mrb[0].mxu0
        %v1472 = vadd.f32 0.0, %v1471
        %v1473 = vpop.f32.mrb[0].mxu0
        %1474 = vmatprep.mubr.bf16.mxu0 %v991
        %1475 = vmatmul.mubr.bf16.gmra.mrb[0].mxu0 %v990
        %v1476 = vpop.f32.mrb[0].mxu0
        %v1477 = vadd.f32 0.0, %v1476
        %v1478 = vpop.f32.mrb[0].mxu0
        %v1479 = vpop.f32.mrb[0].mxu0
        %v1480 = vadd.f32 0.0, %v1479
        %v1481 = vpop.f32.mrb[0].mxu0
        %1482 = vmatprep.mubr.bf16.mxu0 %v995
        %1483 = vmatmul.mubr.bf16.gmra.mrb[0].mxu0 %v994
        %v1484 = vpop.f32.mrb[0].mxu0
        %v1485 = vadd.f32 0.0, %v1484
        %v1486 = vpop.f32.mrb[0].mxu0
        %v1487 = vpop.f32.mrb[0].mxu0
        %v1488 = vadd.f32 0.0, %v1487
        %v1489 = vpop.f32.mrb[0].mxu0
        %1490 = vmatprep.mubr.bf16.mxu0 %v999
        %1491 = vmatmul.mubr.bf16.gmra.mrb[0].mxu0 %v998
        %v1492 = vpop.f32.mrb[0].mxu0
        %v1493 = vadd.f32 0.0, %v1492
        %v1494 = vpop.f32.mrb[0].mxu0
        %v1495 = vpop.f32.mrb[0].mxu0
        %v1496 = vadd.f32 0.0, %v1495
        %v1497 = vpop.f32.mrb[0].mxu0
        %1498 = vmatprep.mubr.bf16.mxu0 %v1003
        %1499 = vmatmul.mubr.bf16.gmra.mrb[0].mxu0 %v1002
        %v1500 = vpop.f32.mrb[0].mxu0
        %v1501 = vadd.f32 0.0, %v1500
        %v1502 = vpop.f32.mrb[0].mxu0
        %v1503 = vpop.f32.mrb[0].mxu0
        %v1504 = vadd.f32 0.0, %v1503
        %v1505 = vpop.f32.mrb[0].mxu0
        %1506 = vmatprep.mubr.bf16.mxu0 %v1007
        %1507 = vmatmul.mubr.bf16.gmra.mrb[0].mxu0 %v1006
        %v1508 = vpop.f32.mrb[0].mxu0
        %v1509 = vadd.f32 0.0, %v1508
        %v1510 = vpop.f32.mrb[0].mxu0
        %v1511 = vpop.f32.mrb[0].mxu0
        %v1512 = vadd.f32 0.0, %v1511
        %v1513 = vpop.f32.mrb[0].mxu0
        %1514 = vmatprep.mubr.bf16.mxu0 %v1011
        %1515 = vmatmul.mubr.bf16.gmra.mrb[0].mxu0 %v1010
        %v1516 = vpop.f32.mrb[0].mxu0
        %v1517 = vadd.f32 0.0, %v1516
        %v1518 = vpop.f32.mrb[0].mxu0
        %v1519 = vpop.f32.mrb[0].mxu0
        %v1520 = vadd.f32 0.0, %v1519
        %v1521 = vpop.f32.mrb[0].mxu0
        %1522 = vmatprep.mubr.bf16.mxu0 %v1015
        %1523 = vmatmul.mubr.bf16.gmra.mrb[0].mxu0 %v1014
        %v1524 = vpop.f32.mrb[0].mxu0
        %v1525 = vadd.f32 0.0, %v1524
        %v1526 = vpop.f32.mrb[0].mxu0
        %v1527 = vpop.f32.mrb[0].mxu0
        %v1528 = vadd.f32 0.0, %v1527
        %v1529 = vpop.f32.mrb[0].mxu0
        %1530 = vmatprep.mubr.bf16.mxu0 %v1019
        %1531 = vmatmul.mubr.bf16.gmra.mrb[0].mxu0 %v1018
        %v1532 = vpop.f32.mrb[0].mxu0
        %v1533 = vadd.f32 0.0, %v1532
        %v1534 = vpop.f32.mrb[0].mxu0
        %v1535 = vpop.f32.mrb[0].mxu0
        %v1536 = vadd.f32 0.0, %v1535
        %v1537 = vpop.f32.mrb[0].mxu0
        %1538 = vmatprep.mubr.bf16.mxu0 %v1023
        %1539 = vmatmul.mubr.bf16.gmra.mrb[0].mxu0 %v1022
        %v1540 = vpop.f32.mrb[0].mxu0
        %v1541 = vadd.f32 0.0, %v1540
        %v1542 = vpop.f32.mrb[0].mxu0
        %v1543 = vpop.f32.mrb[0].mxu0
        %v1544 = vadd.f32 0.0, %v1543
        %v1545 = vpop.f32.mrb[0].mxu0
        %1546 = vmatprep.mubr.bf16.mxu0 %v1027
        %1547 = vmatmul.mubr.bf16.gmra.mrb[0].mxu0 %v1026
        %v1548 = vpop.f32.mrb[0].mxu0
        %v1549 = vadd.f32 0.0, %v1548
        %v1550 = vpop.f32.mrb[0].mxu0
        %v1551 = vpop.f32.mrb[0].mxu0
        %v1552 = vadd.f32 0.0, %v1551
        %v1553 = vpop.f32.mrb[0].mxu0
        %1554 = vmatprep.mubr.bf16.mxu0 %v1031
        %1555 = vmatmul.mubr.bf16.gmra.mrb[0].mxu0 %v1030
        %v1556 = vpop.f32.mrb[0].mxu0
        %v1557 = vadd.f32 0.0, %v1556
        %v1558 = vpop.f32.mrb[0].mxu0
        %v1559 = vpop.f32.mrb[0].mxu0
        %v1560 = vadd.f32 0.0, %v1559
        %v1561 = vpop.f32.mrb[0].mxu0
        %1562 = vmatprep.mubr.bf16.mxu0 %v1035
        %1563 = vmatmul.mubr.bf16.gmra.mrb[0].mxu0 %v1034
        %v1564 = vpop.f32.mrb[0].mxu0
        %v1565 = vadd.f32 0.0, %v1564
        %v1566 = vpop.f32.mrb[0].mxu0
        %v1567 = vpop.f32.mrb[0].mxu0
        %v1568 = vadd.f32 0.0, %v1567
        %v1569 = vpop.f32.mrb[0].mxu0
        %1570 = vmatprep.mubr.bf16.mxu0 %v1039
        %1571 = vmatmul.mubr.bf16.gmra.mrb[0].mxu0 %v1038
        %v1572 = vpop.f32.mrb[0].mxu0
        %v1573 = vadd.f32 0.0, %v1572
        %v1574 = vpop.f32.mrb[0].mxu0
        %v1575 = vpop.f32.mrb[0].mxu0
        %v1576 = vadd.f32 0.0, %v1575
        %v1577 = vpop.f32.mrb[0].mxu0
        %1578 = vmatprep.mubr.bf16.mxu0 %v1043
        %1579 = vmatmul.mubr.bf16.gmra.mrb[0].mxu0 %v1042
        %v1580 = vpop.f32.mrb[0].mxu0
        %v1581 = vadd.f32 0.0, %v1580
        %v1582 = vpop.f32.mrb[0].mxu0
        %v1583 = vpop.f32.mrb[0].mxu0
        %v1584 = vadd.f32 0.0, %v1583
        %v1585 = vpop.f32.mrb[0].mxu0
        %1586 = vmatprep.mubr.bf16.mxu0 %v1047
        %1587 = vmatmul.mubr.bf16.gmra.mrb[0].mxu0 %v1046
        %v1588 = vpop.f32.mrb[0].mxu0
        %v1589 = vadd.f32 0.0, %v1588
        %v1590 = vpop.f32.mrb[0].mxu0
        %v1591 = vpop.f32.mrb[0].mxu0
        %v1592 = vadd.f32 0.0, %v1591
        %v1593 = vpop.f32.mrb[0].mxu0
        %1594 = vmatprep.mubr.bf16.mxu0 %v1051
        %1595 = vmatmul.mubr.bf16.gmra.mrb[0].mxu0 %v1050
        %v1596 = vpop.f32.mrb[0].mxu0
        %v1597 = vadd.f32 0.0, %v1596
        %v1598 = vpop.f32.mrb[0].mxu0
        %v1599 = vpop.f32.mrb[0].mxu0
        %v1600 = vadd.f32 0.0, %v1599
        %v1601 = vpop.f32.mrb[0].mxu0
        %1602 = vmatprep.mubr.bf16.mxu0 %v1055
        %1603 = vmatmul.mubr.bf16.gmra.mrb[0].mxu0 %v1054
        %v1604 = vpop.f32.mrb[0].mxu0
        %v1605 = vadd.f32 0.0, %v1604
        %v1606 = vpop.f32.mrb[0].mxu0
        %v1607 = vpop.f32.mrb[0].mxu0
        %v1608 = vadd.f32 0.0, %v1607
        %v1609 = vpop.f32.mrb[0].mxu0
        %1610 = vmatprep.mubr.bf16.mxu0 %v1059
        %1611 = vmatmul.mubr.bf16.gmra.mrb[0].mxu0 %v1058
        %v1612 = vpop.f32.mrb[0].mxu0
        %v1613 = vadd.f32 0.0, %v1612
        %v1614 = vpop.f32.mrb[0].mxu0
        %v1615 = vpop.f32.mrb[0].mxu0
        %v1616 = vadd.f32 0.0, %v1615
        %v1617 = vpop.f32.mrb[0].mxu0
        %1618 = vmatprep.mubr.bf16.mxu0 %v1063
        %1619 = vmatmul.mubr.bf16.gmra.mrb[0].mxu0 %v1062
        %v1620 = vpop.f32.mrb[0].mxu0
        %v1621 = vadd.f32 0.0, %v1620
        %v1622 = vpop.f32.mrb[0].mxu0
        %v1623 = vpop.f32.mrb[0].mxu0
        %v1624 = vadd.f32 0.0, %v1623
        %v1625 = vpop.f32.mrb[0].mxu0
        %1626 = vmatprep.mubr.bf16.mxu0 %v1067
        %1627 = vmatmul.mubr.bf16.gmra.mrb[0].mxu0 %v1066
        %v1628 = vpop.f32.mrb[0].mxu0
        %v1629 = vadd.f32 0.0, %v1628
        %v1630 = vpop.f32.mrb[0].mxu0
        %v1631 = vpop.f32.mrb[0].mxu0
        %v1632 = vadd.f32 0.0, %v1631
        %v1633 = vpop.f32.mrb[0].mxu0
        %1634 = vmatprep.mubr.bf16.mxu0 %v1071
        %1635 = vmatmul.mubr.bf16.gmra.mrb[0].mxu0 %v1070
        %v1636 = vpop.f32.mrb[0].mxu0
        %v1637 = vadd.f32 0.0, %v1636
        %v1638 = vpop.f32.mrb[0].mxu0
        %v1639 = vpop.f32.mrb[0].mxu0
        %v1640 = vadd.f32 0.0, %v1639
        %v1641 = vpop.f32.mrb[0].mxu0
        %1642 = vmatprep.mubr.bf16.mxu0 %v1075
        %1643 = vmatmul.mubr.bf16.gmra.mrb[0].mxu0 %v1074
        %v1644 = vpop.f32.mrb[0].mxu0
        %v1645 = vadd.f32 0.0, %v1644
        %v1646 = vpop.f32.mrb[0].mxu0
        %v1647 = vpop.f32.mrb[0].mxu0
        %v1648 = vadd.f32 0.0, %v1647
        %v1649 = vpop.f32.mrb[0].mxu0
        %1650 = vmatprep.mubr.bf16.mxu0 %v1079
        %1651 = vmatmul.mubr.bf16.gmra.mrb[0].mxu0 %v1078
        %v1652 = vpop.f32.mrb[0].mxu0
        %v1653 = vadd.f32 0.0, %v1652
        %v1654 = vpop.f32.mrb[0].mxu0
        %v1655 = vpop.f32.mrb[0].mxu0
        %v1656 = vadd.f32 0.0, %v1655
        %v1657 = vpop.f32.mrb[0].mxu0
        %1658 = vmatprep.mubr.bf16.mxu0 %v1083
        %1659 = vmatmul.mubr.bf16.gmra.mrb[0].mxu0 %v1082
        %v1660 = vpop.f32.mrb[0].mxu0
        %v1661 = vadd.f32 0.0, %v1660
        %v1662 = vpop.f32.mrb[0].mxu0
        %v1663 = vpop.f32.mrb[0].mxu0
        %v1664 = vadd.f32 0.0, %v1663
        %v1665 = vpop.f32.mrb[0].mxu0
        %1666 = vmatprep.mubr.bf16.mxu0 %v1087
        %1667 = vmatmul.mubr.bf16.gmra.mrb[0].mxu0 %v1086
        %v1668 = vpop.f32.mrb[0].mxu0
        %v1669 = vadd.f32 0.0, %v1668
        %v1670 = vpop.f32.mrb[0].mxu0
        %v1671 = vpop.f32.mrb[0].mxu0
        %v1672 = vadd.f32 0.0, %v1671
        %v1673 = vpop.f32.mrb[0].mxu0
        %1674 = vmatprep.mubr.bf16.mxu0 %v1091
        %1675 = vmatmul.mubr.bf16.gmra.mrb[0].mxu0 %v1090
        %v1676 = vpop.f32.mrb[0].mxu0
        %v1677 = vadd.f32 0.0, %v1676
        %v1678 = vpop.f32.mrb[0].mxu0
        %v1679 = vpop.f32.mrb[0].mxu0
        %v1680 = vadd.f32 0.0, %v1679
        %v1681 = vpop.f32.mrb[0].mxu0
        %1682 = vmatprep.mubr.bf16.mxu0 %v1095
        %1683 = vmatmul.mubr.bf16.gmra.mrb[0].mxu0 %v1094
        %v1684 = vpop.f32.mrb[0].mxu0
        %v1685 = vadd.f32 0.0, %v1684
        %v1686 = vpop.f32.mrb[0].mxu0
        %v1687 = vpop.f32.mrb[0].mxu0
        %v1688 = vadd.f32 0.0, %v1687
        %v1689 = vpop.f32.mrb[0].mxu0
        %1690 = vmatprep.mubr.bf16.mxu0 %v1099
        %1691 = vmatmul.mubr.bf16.gmra.mrb[0].mxu0 %v1098
        %v1692 = vpop.f32.mrb[0].mxu0
        %v1693 = vadd.f32 0.0, %v1692
        %v1694 = vpop.f32.mrb[0].mxu0
        %v1695 = vpop.f32.mrb[0].mxu0
        %v1696 = vadd.f32 0.0, %v1695
        %v1697 = vpop.f32.mrb[0].mxu0
        %1698 = vmatprep.mubr.bf16.mxu0 %v1103
        %1699 = vmatmul.mubr.bf16.gmra.mrb[0].mxu0 %v1102
        %v1700 = vpop.f32.mrb[0].mxu0
        %v1701 = vadd.f32 0.0, %v1700
        %v1702 = vpop.f32.mrb[0].mxu0
        %v1703 = vpop.f32.mrb[0].mxu0
        %v1704 = vadd.f32 0.0, %v1703
        %v1705 = vpop.f32.mrb[0].mxu0
        %1706 = vmatprep.mubr.bf16.mxu0 %v1107
        %1707 = vmatmul.mubr.bf16.gmra.mrb[0].mxu0 %v1106
        %v1708 = vpop.f32.mrb[0].mxu0
        %v1709 = vadd.f32 0.0, %v1708
        %v1710 = vpop.f32.mrb[0].mxu0
        %v1711 = vpop.f32.mrb[0].mxu0
        %v1712 = vadd.f32 0.0, %v1711
        %v1713 = vpop.f32.mrb[0].mxu0
        %1714 = vmatprep.mubr.bf16.mxu0 %v1111
        %1715 = vmatmul.mubr.bf16.gmra.mrb[0].mxu0 %v1110
        %v1716 = vpop.f32.mrb[0].mxu0
        %v1717 = vadd.f32 0.0, %v1716
        %v1718 = vpop.f32.mrb[0].mxu0
        %v1719 = vpop.f32.mrb[0].mxu0
        %v1720 = vadd.f32 0.0, %v1719
        %v1721 = vpop.f32.mrb[0].mxu0
        %1722 = vdwg.mxu0
        %1723 = vmatprep.subr.bf16.mxu0 0
        %1724 = vmatpush1.bf16.msra.mxu0 %v1386
        %1725 = vmatprep.subr.bf16.mxu0 0
        %1726 = vmatpush1.bf16.msra.mxu0 %v1387
        %1727 = vmatprep.subr.bf16.mxu0 0
        %1728 = vmatpush1.bf16.msra.mxu0 %v1388
        %1729 = vmatprep.subr.bf16.mxu0 0
        %1730 = vmatpush1.bf16.msra.mxu0 %v1389
        %1731 = vmatprep.subr.bf16.mxu0 0
        %1732 = vmatpush1.bf16.msra.mxu0 %v1390
        %1733 = vmatprep.subr.bf16.mxu0 0
        %1734 = vmatpush1.bf16.msra.mxu0 %v1391
        %1735 = vmatprep.subr.bf16.mxu0 0
        %1736 = vmatpush1.bf16.msra.mxu0 %v1392
        %1737 = vmatprep.subr.bf16.mxu0 0
        %1738 = vmatpush1.bf16.msra.mxu0 %v1393
        %1739 = vmatprep.subr.bf16.mxu0 0
        %1740 = vmatpush1.bf16.msra.mxu0 %v1394
        %1741 = vmatprep.subr.bf16.mxu0 0
        %1742 = vmatpush1.bf16.msra.mxu0 %v1395
        %1743 = vmatprep.subr.bf16.mxu0 0
        %1744 = vmatpush1.bf16.msra.mxu0 %v1396
        %1745 = vmatprep.subr.bf16.mxu0 0
        %1746 = vmatpush1.bf16.msra.mxu0 %v1397
        %1747 = vmatprep.subr.bf16.mxu0 0
        %1748 = vmatpush1.bf16.msra.mxu0 %v1398
        %1749 = vmatprep.subr.bf16.mxu0 0
        %1750 = vmatpush1.bf16.msra.mxu0 %v1399
        %1751 = vmatprep.subr.bf16.mxu0 0
        %1752 = vmatpush1.bf16.msra.mxu0 %v1400
        %1753 = vmatprep.subr.bf16.mxu0 0
        %1754 = vmatpush1.bf16.msra.mxu0 %v1401
        %1755 = vmatprep.mubr.bf16.mxu0 %v989
        %1756 = vmatmul.mubr.bf16.gmra.mrb[0].mxu0 %v988
        %v1757 = vpop.f32.mrb[0].mxu0
        %v1758 = vadd.f32 %v1469, %v1757
        %v1759 = vpop.f32.mrb[0].mxu0
        %v1760 = vpop.f32.mrb[0].mxu0
        %v1761 = vadd.f32 %v1472, %v1760
        %v1762 = vpop.f32.mrb[0].mxu0
        %1763 = vmatprep.mubr.bf16.mxu0 %v993
        %1764 = vmatmul.mubr.bf16.gmra.mrb[0].mxu0 %v992
        %v1765 = vpop.f32.mrb[0].mxu0
        %v1766 = vadd.f32 %v1477, %v1765
        %v1767 = vpop.f32.mrb[0].mxu0
        %v1768 = vpop.f32.mrb[0].mxu0
        %v1769 = vadd.f32 %v1480, %v1768
        %v1770 = vpop.f32.mrb[0].mxu0
        %1771 = vmatprep.mubr.bf16.mxu0 %v997
        %1772 = vmatmul.mubr.bf16.gmra.mrb[0].mxu0 %v996
        %v1773 = vpop.f32.mrb[0].mxu0
        %v1774 = vadd.f32 %v1485, %v1773
        %v1775 = vpop.f32.mrb[0].mxu0
        %v1776 = vpop.f32.mrb[0].mxu0
        %v1777 = vadd.f32 %v1488, %v1776
        %v1778 = vpop.f32.mrb[0].mxu0
        %1779 = vmatprep.mubr.bf16.mxu0 %v1001
        %1780 = vmatmul.mubr.bf16.gmra.mrb[0].mxu0 %v1000
        %v1781 = vpop.f32.mrb[0].mxu0
        %v1782 = vadd.f32 %v1493, %v1781
        %v1783 = vpop.f32.mrb[0].mxu0
        %v1784 = vpop.f32.mrb[0].mxu0
        %v1785 = vadd.f32 %v1496, %v1784
        %v1786 = vpop.f32.mrb[0].mxu0
        %1787 = vmatprep.mubr.bf16.mxu0 %v1005
        %1788 = vmatmul.mubr.bf16.gmra.mrb[0].mxu0 %v1004
        %v1789 = vpop.f32.mrb[0].mxu0
        %v1790 = vadd.f32 %v1501, %v1789
        %v1791 = vpop.f32.mrb[0].mxu0
        %v1792 = vpop.f32.mrb[0].mxu0
        %v1793 = vadd.f32 %v1504, %v1792
        %v1794 = vpop.f32.mrb[0].mxu0
        %1795 = vmatprep.mubr.bf16.mxu0 %v1009
        %1796 = vmatmul.mubr.bf16.gmra.mrb[0].mxu0 %v1008
        %v1797 = vpop.f32.mrb[0].mxu0
        %v1798 = vadd.f32 %v1509, %v1797
        %v1799 = vpop.f32.mrb[0].mxu0
        %v1800 = vpop.f32.mrb[0].mxu0
        %v1801 = vadd.f32 %v1512, %v1800
        %v1802 = vpop.f32.mrb[0].mxu0
        %1803 = vmatprep.mubr.bf16.mxu0 %v1013
        %1804 = vmatmul.mubr.bf16.gmra.mrb[0].mxu0 %v1012
        %v1805 = vpop.f32.mrb[0].mxu0
        %v1806 = vadd.f32 %v1517, %v1805
        %v1807 = vpop.f32.mrb[0].mxu0
        %v1808 = vpop.f32.mrb[0].mxu0
        %v1809 = vadd.f32 %v1520, %v1808
        %v1810 = vpop.f32.mrb[0].mxu0
        %1811 = vmatprep.mubr.bf16.mxu0 %v1017
        %1812 = vmatmul.mubr.bf16.gmra.mrb[0].mxu0 %v1016
        %v1813 = vpop.f32.mrb[0].mxu0
        %v1814 = vadd.f32 %v1525, %v1813
        %v1815 = vpop.f32.mrb[0].mxu0
        %v1816 = vpop.f32.mrb[0].mxu0
        %v1817 = vadd.f32 %v1528, %v1816
        %v1818 = vpop.f32.mrb[0].mxu0
        %1819 = vmatprep.mubr.bf16.mxu0 %v1021
        %1820 = vmatmul.mubr.bf16.gmra.mrb[0].mxu0 %v1020
        %v1821 = vpop.f32.mrb[0].mxu0
        %v1822 = vadd.f32 %v1533, %v1821
        %v1823 = vpop.f32.mrb[0].mxu0
        %v1824 = vpop.f32.mrb[0].mxu0
        %v1825 = vadd.f32 %v1536, %v1824
        %v1826 = vpop.f32.mrb[0].mxu0
        %1827 = vmatprep.mubr.bf16.mxu0 %v1025
        %1828 = vmatmul.mubr.bf16.gmra.mrb[0].mxu0 %v1024
        %v1829 = vpop.f32.mrb[0].mxu0
        %v1830 = vadd.f32 %v1541, %v1829
        %v1831 = vpop.f32.mrb[0].mxu0
        %v1832 = vpop.f32.mrb[0].mxu0
        %v1833 = vadd.f32 %v1544, %v1832
        %v1834 = vpop.f32.mrb[0].mxu0
        %1835 = vmatprep.mubr.bf16.mxu0 %v1029
        %1836 = vmatmul.mubr.bf16.gmra.mrb[0].mxu0 %v1028
        %v1837 = vpop.f32.mrb[0].mxu0
        %v1838 = vadd.f32 %v1549, %v1837
        %v1839 = vpop.f32.mrb[0].mxu0
        %v1840 = vpop.f32.mrb[0].mxu0
        %v1841 = vadd.f32 %v1552, %v1840
        %v1842 = vpop.f32.mrb[0].mxu0
        %1843 = vmatprep.mubr.bf16.mxu0 %v1033
        %1844 = vmatmul.mubr.bf16.gmra.mrb[0].mxu0 %v1032
        %v1845 = vpop.f32.mrb[0].mxu0
        %v1846 = vadd.f32 %v1557, %v1845
        %v1847 = vpop.f32.mrb[0].mxu0
        %v1848 = vpop.f32.mrb[0].mxu0
        %v1849 = vadd.f32 %v1560, %v1848
        %v1850 = vpop.f32.mrb[0].mxu0
        %1851 = vmatprep.mubr.bf16.mxu0 %v1037
        %1852 = vmatmul.mubr.bf16.gmra.mrb[0].mxu0 %v1036
        %v1853 = vpop.f32.mrb[0].mxu0
        %v1854 = vadd.f32 %v1565, %v1853
        %v1855 = vpop.f32.mrb[0].mxu0
        %v1856 = vpop.f32.mrb[0].mxu0
        %v1857 = vadd.f32 %v1568, %v1856
        %v1858 = vpop.f32.mrb[0].mxu0
        %1859 = vmatprep.mubr.bf16.mxu0 %v1041
        %1860 = vmatmul.mubr.bf16.gmra.mrb[0].mxu0 %v1040
        %v1861 = vpop.f32.mrb[0].mxu0
        %v1862 = vadd.f32 %v1573, %v1861
        %v1863 = vpop.f32.mrb[0].mxu0
        %v1864 = vpop.f32.mrb[0].mxu0
        %v1865 = vadd.f32 %v1576, %v1864
        %v1866 = vpop.f32.mrb[0].mxu0
        %1867 = vmatprep.mubr.bf16.mxu0 %v1045
        %1868 = vmatmul.mubr.bf16.gmra.mrb[0].mxu0 %v1044
        %v1869 = vpop.f32.mrb[0].mxu0
        %v1870 = vadd.f32 %v1581, %v1869
        %v1871 = vpop.f32.mrb[0].mxu0
        %v1872 = vpop.f32.mrb[0].mxu0
        %v1873 = vadd.f32 %v1584, %v1872
        %v1874 = vpop.f32.mrb[0].mxu0
        %1875 = vmatprep.mubr.bf16.mxu0 %v1049
        %1876 = vmatmul.mubr.bf16.gmra.mrb[0].mxu0 %v1048
        %v1877 = vpop.f32.mrb[0].mxu0
        %v1878 = vadd.f32 %v1589, %v1877
        %v1879 = vpop.f32.mrb[0].mxu0
        %v1880 = vpop.f32.mrb[0].mxu0
        %v1881 = vadd.f32 %v1592, %v1880
        %v1882 = vpop.f32.mrb[0].mxu0
        %1883 = vmatprep.mubr.bf16.mxu0 %v1053
        %1884 = vmatmul.mubr.bf16.gmra.mrb[0].mxu0 %v1052
        %v1885 = vpop.f32.mrb[0].mxu0
        %v1886 = vadd.f32 %v1597, %v1885
        %v1887 = vpop.f32.mrb[0].mxu0
        %v1888 = vpop.f32.mrb[0].mxu0
        %v1889 = vadd.f32 %v1600, %v1888
        %v1890 = vpop.f32.mrb[0].mxu0
        %1891 = vmatprep.mubr.bf16.mxu0 %v1057
        %1892 = vmatmul.mubr.bf16.gmra.mrb[0].mxu0 %v1056
        %v1893 = vpop.f32.mrb[0].mxu0
        %v1894 = vadd.f32 %v1605, %v1893
        %v1895 = vpop.f32.mrb[0].mxu0
        %v1896 = vpop.f32.mrb[0].mxu0
        %v1897 = vadd.f32 %v1608, %v1896
        %v1898 = vpop.f32.mrb[0].mxu0
        %1899 = vmatprep.mubr.bf16.mxu0 %v1061
        %1900 = vmatmul.mubr.bf16.gmra.mrb[0].mxu0 %v1060
        %v1901 = vpop.f32.mrb[0].mxu0
        %v1902 = vadd.f32 %v1613, %v1901
        %v1903 = vpop.f32.mrb[0].mxu0
        %v1904 = vpop.f32.mrb[0].mxu0
        %v1905 = vadd.f32 %v1616, %v1904
        %v1906 = vpop.f32.mrb[0].mxu0
        %1907 = vmatprep.mubr.bf16.mxu0 %v1065
        %1908 = vmatmul.mubr.bf16.gmra.mrb[0].mxu0 %v1064
        %v1909 = vpop.f32.mrb[0].mxu0
        %v1910 = vadd.f32 %v1621, %v1909
        %v1911 = vpop.f32.mrb[0].mxu0
        %v1912 = vpop.f32.mrb[0].mxu0
        %v1913 = vadd.f32 %v1624, %v1912
        %v1914 = vpop.f32.mrb[0].mxu0
        %1915 = vmatprep.mubr.bf16.mxu0 %v1069
        %1916 = vmatmul.mubr.bf16.gmra.mrb[0].mxu0 %v1068
        %v1917 = vpop.f32.mrb[0].mxu0
        %v1918 = vadd.f32 %v1629, %v1917
        %v1919 = vpop.f32.mrb[0].mxu0
        %v1920 = vpop.f32.mrb[0].mxu0
        %v1921 = vadd.f32 %v1632, %v1920
        %v1922 = vpop.f32.mrb[0].mxu0
        %1923 = vmatprep.mubr.bf16.mxu0 %v1073
        %1924 = vmatmul.mubr.bf16.gmra.mrb[0].mxu0 %v1072
        %v1925 = vpop.f32.mrb[0].mxu0
        %v1926 = vadd.f32 %v1637, %v1925
        %v1927 = vpop.f32.mrb[0].mxu0
        %v1928 = vpop.f32.mrb[0].mxu0
        %v1929 = vadd.f32 %v1640, %v1928
        %v1930 = vpop.f32.mrb[0].mxu0
        %1931 = vmatprep.mubr.bf16.mxu0 %v1077
        %1932 = vmatmul.mubr.bf16.gmra.mrb[0].mxu0 %v1076
        %v1933 = vpop.f32.mrb[0].mxu0
        %v1934 = vadd.f32 %v1645, %v1933
        %v1935 = vpop.f32.mrb[0].mxu0
        %v1936 = vpop.f32.mrb[0].mxu0
        %v1937 = vadd.f32 %v1648, %v1936
        %v1938 = vpop.f32.mrb[0].mxu0
        %1939 = vmatprep.mubr.bf16.mxu0 %v1081
        %1940 = vmatmul.mubr.bf16.gmra.mrb[0].mxu0 %v1080
        %v1941 = vpop.f32.mrb[0].mxu0
        %v1942 = vadd.f32 %v1653, %v1941
        %v1943 = vpop.f32.mrb[0].mxu0
        %v1944 = vpop.f32.mrb[0].mxu0
        %v1945 = vadd.f32 %v1656, %v1944
        %v1946 = vpop.f32.mrb[0].mxu0
        %1947 = vmatprep.mubr.bf16.mxu0 %v1085
        %1948 = vmatmul.mubr.bf16.gmra.mrb[0].mxu0 %v1084
        %v1949 = vpop.f32.mrb[0].mxu0
        %v1950 = vadd.f32 %v1661, %v1949
        %v1951 = vpop.f32.mrb[0].mxu0
        %v1952 = vpop.f32.mrb[0].mxu0
        %v1953 = vadd.f32 %v1664, %v1952
        %v1954 = vpop.f32.mrb[0].mxu0
        %1955 = vmatprep.mubr.bf16.mxu0 %v1089
        %1956 = vmatmul.mubr.bf16.gmra.mrb[0].mxu0 %v1088
        %v1957 = vpop.f32.mrb[0].mxu0
        %v1958 = vadd.f32 %v1669, %v1957
        %v1959 = vpop.f32.mrb[0].mxu0
        %v1960 = vpop.f32.mrb[0].mxu0
        %v1961 = vadd.f32 %v1672, %v1960
        %v1962 = vpop.f32.mrb[0].mxu0
        %1963 = vmatprep.mubr.bf16.mxu0 %v1093
        %1964 = vmatmul.mubr.bf16.gmra.mrb[0].mxu0 %v1092
        %v1965 = vpop.f32.mrb[0].mxu0
        %v1966 = vadd.f32 %v1677, %v1965
        %v1967 = vpop.f32.mrb[0].mxu0
        %v1968 = vpop.f32.mrb[0].mxu0
        %v1969 = vadd.f32 %v1680, %v1968
        %v1970 = vpop.f32.mrb[0].mxu0
        %1971 = vmatprep.mubr.bf16.mxu0 %v1097
        %1972 = vmatmul.mubr.bf16.gmra.mrb[0].mxu0 %v1096
        %v1973 = vpop.f32.mrb[0].mxu0
        %v1974 = vadd.f32 %v1685, %v1973
        %v1975 = vpop.f32.mrb[0].mxu0
        %v1976 = vpop.f32.mrb[0].mxu0
        %v1977 = vadd.f32 %v1688, %v1976
        %v1978 = vpop.f32.mrb[0].mxu0
        %1979 = vmatprep.mubr.bf16.mxu0 %v1101
        %1980 = vmatmul.mubr.bf16.gmra.mrb[0].mxu0 %v1100
        %v1981 = vpop.f32.mrb[0].mxu0
        %v1982 = vadd.f32 %v1693, %v1981
        %v1983 = vpop.f32.mrb[0].mxu0
        %v1984 = vpop.f32.mrb[0].mxu0
        %v1985 = vadd.f32 %v1696, %v1984
        %v1986 = vpop.f32.mrb[0].mxu0
        %1987 = vmatprep.mubr.bf16.mxu0 %v1105
        %1988 = vmatmul.mubr.bf16.gmra.mrb[0].mxu0 %v1104
        %v1989 = vpop.f32.mrb[0].mxu0
        %v1990 = vadd.f32 %v1701, %v1989
        %v1991 = vpop.f32.mrb[0].mxu0
        %v1992 = vpop.f32.mrb[0].mxu0
        %v1993 = vadd.f32 %v1704, %v1992
        %v1994 = vpop.f32.mrb[0].mxu0
        %1995 = vmatprep.mubr.bf16.mxu0 %v1109
        %1996 = vmatmul.mubr.bf16.gmra.mrb[0].mxu0 %v1108
        %v1997 = vpop.f32.mrb[0].mxu0
        %v1998 = vadd.f32 %v1709, %v1997
        %v1999 = vpop.f32.mrb[0].mxu0
        %v2000 = vpop.f32.mrb[0].mxu0
        %v2001 = vadd.f32 %v1712, %v2000
        %v2002 = vpop.f32.mrb[0].mxu0
        %2003 = vmatprep.mubr.bf16.mxu0 %v1113
        %2004 = vmatmul.mubr.bf16.gmra.mrb[0].mxu0 %v1112
        %v2005 = vpop.f32.mrb[0].mxu0
        %v2006 = vadd.f32 %v1717, %v2005
        %v2007 = vpop.f32.mrb[0].mxu0
        %v2008 = vpop.f32.mrb[0].mxu0
        %v2009 = vadd.f32 %v1720, %v2008
        %v2010 = vpop.f32.mrb[0].mxu0
        %2011 = vdwg.mxu0
        %v2012 = vadd.f32 %v346, %v1758
        %v2013 = vadd.f32 %v347, %v1761
        %v2014 = vadd.f32 %v348, %v1766
        %v2015 = vadd.f32 %v349, %v1769
        %v2016 = vadd.f32 %v350, %v1774
        %v2017 = vadd.f32 %v351, %v1777
        %v2018 = vadd.f32 %v352, %v1782
        %v2019 = vadd.f32 %v353, %v1785
        %v2020 = vadd.f32 %v354, %v1790
        %v2021 = vadd.f32 %v355, %v1793
        %v2022 = vadd.f32 %v356, %v1798
        %v2023 = vadd.f32 %v357, %v1801
        %v2024 = vadd.f32 %v358, %v1806
        %v2025 = vadd.f32 %v359, %v1809
        %v2026 = vadd.f32 %v360, %v1814
        %v2027 = vadd.f32 %v361, %v1817
        %v2028 = vadd.f32 %v362, %v1822
        %v2029 = vadd.f32 %v363, %v1825
        %v2030 = vadd.f32 %v364, %v1830
        %v2031 = vadd.f32 %v365, %v1833
        %v2032 = vadd.f32 %v366, %v1838
        %v2033 = vadd.f32 %v367, %v1841
        %v2034 = vadd.f32 %v368, %v1846
        %v2035 = vadd.f32 %v369, %v1849
        %v2036 = vadd.f32 %v370, %v1854
        %v2037 = vadd.f32 %v371, %v1857
        %v2038 = vadd.f32 %v372, %v1862
        %v2039 = vadd.f32 %v373, %v1865
        %v2040 = vadd.f32 %v374, %v1870
        %v2041 = vadd.f32 %v375, %v1873
        %v2042 = vadd.f32 %v376, %v1878
        %v2043 = vadd.f32 %v377, %v1881
        %v2044 = vadd.f32 %v378, %v1886
        %v2045 = vadd.f32 %v379, %v1889
        %v2046 = vadd.f32 %v380, %v1894
        %v2047 = vadd.f32 %v381, %v1897
        %v2048 = vadd.f32 %v382, %v1902
        %v2049 = vadd.f32 %v383, %v1905
        %v2050 = vadd.f32 %v384, %v1910
        %v2051 = vadd.f32 %v385, %v1913
        %v2052 = vadd.f32 %v386, %v1918
        %v2053 = vadd.f32 %v387, %v1921
        %v2054 = vadd.f32 %v388, %v1926
        %v2055 = vadd.f32 %v389, %v1929
        %v2056 = vadd.f32 %v390, %v1934
        %v2057 = vadd.f32 %v391, %v1937
        %v2058 = vadd.f32 %v392, %v1942
        %v2059 = vadd.f32 %v393, %v1945
        %v2060 = vadd.f32 %v394, %v1950
        %v2061 = vadd.f32 %v395, %v1953
        %v2062 = vadd.f32 %v396, %v1958
        %v2063 = vadd.f32 %v397, %v1961
        %v2064 = vadd.f32 %v398, %v1966
        %v2065 = vadd.f32 %v399, %v1969
        %v2066 = vadd.f32 %v400, %v1974
        %v2067 = vadd.f32 %v401, %v1977
        %v2068 = vadd.f32 %v402, %v1982
        %v2069 = vadd.f32 %v403, %v1985
        %v2070 = vadd.f32 %v404, %v1990
        %v2071 = vadd.f32 %v405, %v1993
        %v2072 = vadd.f32 %v406, %v1998
        %v2073 = vadd.f32 %v407, %v2001
        %v2074 = vadd.f32 %v408, %v2006
        %v2075 = vadd.f32 %v409, %v2009
        %vm2076 = vcmask 523264
        %2077 = vst.msk [vmem:[#allocation2] sm:$0xff] %vm2076, %v2012
        %2078 = vst.msk [vmem:[#allocation2 + $0x8] sm:$0xff] %vm2076, %v2013
        %2079 = vst.msk [vmem:[#allocation2 + $0x10] sm:$0xff] %vm2076, %v2014
        %2080 = vst.msk [vmem:[#allocation2 + $0x18] sm:$0xff] %vm2076, %v2015
        %2081 = vst.msk [vmem:[#allocation2 + $0x20] sm:$0xff] %vm2076, %v2016
        %2082 = vst.msk [vmem:[#allocation2 + $0x28] sm:$0xff] %vm2076, %v2017
        %2083 = vst.msk [vmem:[#allocation2 + $0x30] sm:$0xff] %vm2076, %v2018
        %2084 = vst.msk [vmem:[#allocation2 + $0x38] sm:$0xff] %vm2076, %v2019
        %2085 = vst.msk [vmem:[#allocation2 + $0x40] sm:$0xff] %vm2076, %v2020
        %2086 = vst.msk [vmem:[#allocation2 + $0x48] sm:$0xff] %vm2076, %v2021
        %2087 = vst.msk [vmem:[#allocation2 + $0x50] sm:$0xff] %vm2076, %v2022
        %2088 = vst.msk [vmem:[#allocation2 + $0x58] sm:$0xff] %vm2076, %v2023
        %2089 = vst.msk [vmem:[#allocation2 + $0x60] sm:$0xff] %vm2076, %v2024
        %2090 = vst.msk [vmem:[#allocation2 + $0x68] sm:$0xff] %vm2076, %v2025
        %2091 = vst.msk [vmem:[#allocation2 + $0x70] sm:$0xff] %vm2076, %v2026
        %2092 = vst.msk [vmem:[#allocation2 + $0x78] sm:$0xff] %vm2076, %v2027
        %2093 = vst.msk [vmem:[#allocation2 + $0x80] sm:$0xff] %vm2076, %v2028
        %2094 = vst.msk [vmem:[#allocation2 + $0x88] sm:$0xff] %vm2076, %v2029
        %2095 = vst.msk [vmem:[#allocation2 + $0x90] sm:$0xff] %vm2076, %v2030
        %2096 = vst.msk [vmem:[#allocation2 + $0x98] sm:$0xff] %vm2076, %v2031
        %2097 = vst.msk [vmem:[#allocation2 + $0xa0] sm:$0xff] %vm2076, %v2032
        %2098 = vst.msk [vmem:[#allocation2 + $0xa8] sm:$0xff] %vm2076, %v2033
        %2099 = vst.msk [vmem:[#allocation2 + $0xb0] sm:$0xff] %vm2076, %v2034
        %2100 = vst.msk [vmem:[#allocation2 + $0xb8] sm:$0xff] %vm2076, %v2035
        %2101 = vst.msk [vmem:[#allocation2 + $0xc0] sm:$0xff] %vm2076, %v2036
        %2102 = vst.msk [vmem:[#allocation2 + $0xc8] sm:$0xff] %vm2076, %v2037
        %2103 = vst.msk [vmem:[#allocation2 + $0xd0] sm:$0xff] %vm2076, %v2038
        %2104 = vst.msk [vmem:[#allocation2 + $0xd8] sm:$0xff] %vm2076, %v2039
        %2105 = vst.msk [vmem:[#allocation2 + $0xe0] sm:$0xff] %vm2076, %v2040
        %2106 = vst.msk [vmem:[#allocation2 + $0xe8] sm:$0xff] %vm2076, %v2041
        %2107 = vst.msk [vmem:[#allocation2 + $0xf0] sm:$0xff] %vm2076, %v2042
        %2108 = vst.msk [vmem:[#allocation2 + $0xf8] sm:$0xff] %vm2076, %v2043
        %2109 = vst.msk [vmem:[#allocation2 + $0x100] sm:$0xff] %vm2076, %v2044
        %2110 = vst.msk [vmem:[#allocation2 + $0x108] sm:$0xff] %vm2076, %v2045
        %2111 = vst.msk [vmem:[#allocation2 + $0x110] sm:$0xff] %vm2076, %v2046
        %2112 = vst.msk [vmem:[#allocation2 + $0x118] sm:$0xff] %vm2076, %v2047
        %2113 = vst.msk [vmem:[#allocation2 + $0x120] sm:$0xff] %vm2076, %v2048
        %2114 = vst.msk [vmem:[#allocation2 + $0x128] sm:$0xff] %vm2076, %v2049
        %2115 = vst.msk [vmem:[#allocation2 + $0x130] sm:$0xff] %vm2076, %v2050
        %2116 = vst.msk [vmem:[#allocation2 + $0x138] sm:$0xff] %vm2076, %v2051
        %2117 = vst.msk [vmem:[#allocation2 + $0x140] sm:$0xff] %vm2076, %v2052
        %2118 = vst.msk [vmem:[#allocation2 + $0x148] sm:$0xff] %vm2076, %v2053
        %2119 = vst.msk [vmem:[#allocation2 + $0x150] sm:$0xff] %vm2076, %v2054
        %2120 = vst.msk [vmem:[#allocation2 + $0x158] sm:$0xff] %vm2076, %v2055
        %2121 = vst.msk [vmem:[#allocation2 + $0x160] sm:$0xff] %vm2076, %v2056
        %2122 = vst.msk [vmem:[#allocation2 + $0x168] sm:$0xff] %vm2076, %v2057
        %2123 = vst.msk [vmem:[#allocation2 + $0x170] sm:$0xff] %vm2076, %v2058
        %2124 = vst.msk [vmem:[#allocation2 + $0x178] sm:$0xff] %vm2076, %v2059
        %2125 = vst.msk [vmem:[#allocation2 + $0x180] sm:$0xff] %vm2076, %v2060
        %2126 = vst.msk [vmem:[#allocation2 + $0x188] sm:$0xff] %vm2076, %v2061
        %2127 = vst.msk [vmem:[#allocation2 + $0x190] sm:$0xff] %vm2076, %v2062
        %2128 = vst.msk [vmem:[#allocation2 + $0x198] sm:$0xff] %vm2076, %v2063
        %2129 = vst.msk [vmem:[#allocation2 + $0x1a0] sm:$0xff] %vm2076, %v2064
        %2130 = vst.msk [vmem:[#allocation2 + $0x1a8] sm:$0xff] %vm2076, %v2065
        %2131 = vst.msk [vmem:[#allocation2 + $0x1b0] sm:$0xff] %vm2076, %v2066
        %2132 = vst.msk [vmem:[#allocation2 + $0x1b8] sm:$0xff] %vm2076, %v2067
        %2133 = vst.msk [vmem:[#allocation2 + $0x1c0] sm:$0xff] %vm2076, %v2068
        %2134 = vst.msk [vmem:[#allocation2 + $0x1c8] sm:$0xff] %vm2076, %v2069
        %2135 = vst.msk [vmem:[#allocation2 + $0x1d0] sm:$0xff] %vm2076, %v2070
        %2136 = vst.msk [vmem:[#allocation2 + $0x1d8] sm:$0xff] %vm2076, %v2071
        %2137 = vst.msk [vmem:[#allocation2 + $0x1e0] sm:$0xff] %vm2076, %v2072
        %2138 = vst.msk [vmem:[#allocation2 + $0x1e8] sm:$0xff] %vm2076, %v2073
        %2139 = vst.msk [vmem:[#allocation2 + $0x1f0] sm:$0xff] %vm2076, %v2074
        %2140 = vst.msk [vmem:[#allocation2 + $0x1f8] sm:$0xff] %vm2076, %v2075
        // Predicated region
        $region41: #{_lambda_.2} parent=27 // pred_check
          %p2141 = pneg %p277
        $region42: #{_lambda_.2} parent=27 // pred_check_branch
          %2143 = sbr.rel (%p2141) target = $region44
        $region43: #{_lambda_.2} parent=27 // pred_region
          %v2144 = vld [vmem:[#allocation2] sm:$0xff]
          %v2145 = vld [vmem:[#allocation2 + $0x8] sm:$0xff]
          %v2146 = vld [vmem:[#allocation2 + $0x10] sm:$0xff]
          %v2147 = vld [vmem:[#allocation2 + $0x18] sm:$0xff]
          %v2148 = vld [vmem:[#allocation2 + $0x20] sm:$0xff]
          %v2149 = vld [vmem:[#allocation2 + $0x28] sm:$0xff]
          %v2150 = vld [vmem:[#allocation2 + $0x30] sm:$0xff]
          %v2151 = vld [vmem:[#allocation2 + $0x38] sm:$0xff]
          %v2152 = vld [vmem:[#allocation2 + $0x40] sm:$0xff]
          %v2153 = vld [vmem:[#allocation2 + $0x48] sm:$0xff]
          %v2154 = vld [vmem:[#allocation2 + $0x50] sm:$0xff]
          %v2155 = vld [vmem:[#allocation2 + $0x58] sm:$0xff]
          %v2156 = vld [vmem:[#allocation2 + $0x60] sm:$0xff]
          %v2157 = vld [vmem:[#allocation2 + $0x68] sm:$0xff]
          %v2158 = vld [vmem:[#allocation2 + $0x70] sm:$0xff]
          %v2159 = vld [vmem:[#allocation2 + $0x78] sm:$0xff]
          %v2160 = vld [vmem:[#allocation2 + $0x80] sm:$0xff]
          %v2161 = vld [vmem:[#allocation2 + $0x88] sm:$0xff]
          %v2162 = vld [vmem:[#allocation2 + $0x90] sm:$0xff]
          %v2163 = vld [vmem:[#allocation2 + $0x98] sm:$0xff]
          %v2164 = vld [vmem:[#allocation2 + $0xa0] sm:$0xff]
          %v2165 = vld [vmem:[#allocation2 + $0xa8] sm:$0xff]
          %v2166 = vld [vmem:[#allocation2 + $0xb0] sm:$0xff]
          %v2167 = vld [vmem:[#allocation2 + $0xb8] sm:$0xff]
          %v2168 = vld [vmem:[#allocation2 + $0xc0] sm:$0xff]
          %v2169 = vld [vmem:[#allocation2 + $0xc8] sm:$0xff]
          %v2170 = vld [vmem:[#allocation2 + $0xd0] sm:$0xff]
          %v2171 = vld [vmem:[#allocation2 + $0xd8] sm:$0xff]
          %v2172 = vld [vmem:[#allocation2 + $0xe0] sm:$0xff]
          %v2173 = vld [vmem:[#allocation2 + $0xe8] sm:$0xff]
          %v2174 = vld [vmem:[#allocation2 + $0xf0] sm:$0xff]
          %v2175 = vld [vmem:[#allocation2 + $0xf8] sm:$0xff]
          %v2176 = vld [vmem:[#allocation2 + $0x100] sm:$0xff]
          %v2177 = vld [vmem:[#allocation2 + $0x108] sm:$0xff]
          %v2178 = vld [vmem:[#allocation2 + $0x110] sm:$0xff]
          %v2179 = vld [vmem:[#allocation2 + $0x118] sm:$0xff]
          %v2180 = vld [vmem:[#allocation2 + $0x120] sm:$0xff]
          %v2181 = vld [vmem:[#allocation2 + $0x128] sm:$0xff]
          %v2182 = vld [vmem:[#allocation2 + $0x130] sm:$0xff]
          %v2183 = vld [vmem:[#allocation2 + $0x138] sm:$0xff]
          %v2184 = vld [vmem:[#allocation2 + $0x140] sm:$0xff]
          %v2185 = vld [vmem:[#allocation2 + $0x148] sm:$0xff]
          %v2186 = vld [vmem:[#allocation2 + $0x150] sm:$0xff]
          %v2187 = vld [vmem:[#allocation2 + $0x158] sm:$0xff]
          %v2188 = vld [vmem:[#allocation2 + $0x160] sm:$0xff]
          %v2189 = vld [vmem:[#allocation2 + $0x168] sm:$0xff]
          %v2190 = vld [vmem:[#allocation2 + $0x170] sm:$0xff]
          %v2191 = vld [vmem:[#allocation2 + $0x178] sm:$0xff]
          %v2192 = vld [vmem:[#allocation2 + $0x180] sm:$0xff]
          %v2193 = vld [vmem:[#allocation2 + $0x188] sm:$0xff]
          %v2194 = vld [vmem:[#allocation2 + $0x190] sm:$0xff]
          %v2195 = vld [vmem:[#allocation2 + $0x198] sm:$0xff]
          %v2196 = vld [vmem:[#allocation2 + $0x1a0] sm:$0xff]
          %v2197 = vld [vmem:[#allocation2 + $0x1a8] sm:$0xff]
          %v2198 = vld [vmem:[#allocation2 + $0x1b0] sm:$0xff]
          %v2199 = vld [vmem:[#allocation2 + $0x1b8] sm:$0xff]
          %v2200 = vld [vmem:[#allocation2 + $0x1c0] sm:$0xff]
          %v2201 = vld [vmem:[#allocation2 + $0x1c8] sm:$0xff]
          %v2202 = vld [vmem:[#allocation2 + $0x1d0] sm:$0xff]
          %v2203 = vld [vmem:[#allocation2 + $0x1d8] sm:$0xff]
          %v2204 = vld [vmem:[#allocation2 + $0x1e0] sm:$0xff]
          %v2205 = vld [vmem:[#allocation2 + $0x1e8] sm:$0xff]
          %v2206 = vld [vmem:[#allocation2 + $0x1f0] sm:$0xff]
          %v2207 = vld [vmem:[#allocation2 + $0x1f8] sm:$0xff]
          %v2208 = vsel %vm2076, %v2144, 0.0
          %v2209 = vsel %vm2076, %v2145, 0.0
          %v2210 = vadd.f32 %v2208, %v2209
          %v2211 = vsel %vm2076, %v2146, 0.0
          %v2212 = vadd.f32 %v2210, %v2211
          %v2213 = vsel %vm2076, %v2147, 0.0
          %v2214 = vadd.f32 %v2212, %v2213
          %v2215 = vsel %vm2076, %v2148, 0.0
          %v2216 = vadd.f32 %v2214, %v2215
          %v2217 = vsel %vm2076, %v2149, 0.0
          %v2218 = vadd.f32 %v2216, %v2217
          %v2219 = vsel %vm2076, %v2150, 0.0
          %v2220 = vadd.f32 %v2218, %v2219
          %v2221 = vsel %vm2076, %v2151, 0.0
          %v2222 = vadd.f32 %v2220, %v2221
          %v2223 = vsel %vm2076, %v2152, 0.0
          %v2224 = vadd.f32 %v2222, %v2223
          %v2225 = vsel %vm2076, %v2153, 0.0
          %v2226 = vadd.f32 %v2224, %v2225
          %v2227 = vsel %vm2076, %v2154, 0.0
          %v2228 = vadd.f32 %v2226, %v2227
          %v2229 = vsel %vm2076, %v2155, 0.0
          %v2230 = vadd.f32 %v2228, %v2229
          %v2231 = vsel %vm2076, %v2156, 0.0
          %v2232 = vadd.f32 %v2230, %v2231
          %v2233 = vsel %vm2076, %v2157, 0.0
          %v2234 = vadd.f32 %v2232, %v2233
          %v2235 = vsel %vm2076, %v2158, 0.0
          %v2236 = vadd.f32 %v2234, %v2235
          %v2237 = vsel %vm2076, %v2159, 0.0
          %v2238 = vadd.f32 %v2236, %v2237
          %v2239 = vsel %vm2076, %v2160, 0.0
          %v2240 = vadd.f32 %v2238, %v2239
          %v2241 = vsel %vm2076, %v2161, 0.0
          %v2242 = vadd.f32 %v2240, %v2241
          %v2243 = vsel %vm2076, %v2162, 0.0
          %v2244 = vadd.f32 %v2242, %v2243
          %v2245 = vsel %vm2076, %v2163, 0.0
          %v2246 = vadd.f32 %v2244, %v2245
          %v2247 = vsel %vm2076, %v2164, 0.0
          %v2248 = vadd.f32 %v2246, %v2247
          %v2249 = vsel %vm2076, %v2165, 0.0
          %v2250 = vadd.f32 %v2248, %v2249
          %v2251 = vsel %vm2076, %v2166, 0.0
          %v2252 = vadd.f32 %v2250, %v2251
          %v2253 = vsel %vm2076, %v2167, 0.0
          %v2254 = vadd.f32 %v2252, %v2253
          %v2255 = vsel %vm2076, %v2168, 0.0
          %v2256 = vadd.f32 %v2254, %v2255
          %v2257 = vsel %vm2076, %v2169, 0.0
          %v2258 = vadd.f32 %v2256, %v2257
          %v2259 = vsel %vm2076, %v2170, 0.0
          %v2260 = vadd.f32 %v2258, %v2259
          %v2261 = vsel %vm2076, %v2171, 0.0
          %v2262 = vadd.f32 %v2260, %v2261
          %v2263 = vsel %vm2076, %v2172, 0.0
          %v2264 = vadd.f32 %v2262, %v2263
          %v2265 = vsel %vm2076, %v2173, 0.0
          %v2266 = vadd.f32 %v2264, %v2265
          %v2267 = vsel %vm2076, %v2174, 0.0
          %v2268 = vadd.f32 %v2266, %v2267
          %v2269 = vsel %vm2076, %v2175, 0.0
          %v2270 = vadd.f32 %v2268, %v2269
          %v2271 = vsel %vm2076, %v2176, 0.0
          %v2272 = vadd.f32 %v2270, %v2271
          %v2273 = vsel %vm2076, %v2177, 0.0
          %v2274 = vadd.f32 %v2272, %v2273
          %v2275 = vsel %vm2076, %v2178, 0.0
          %v2276 = vadd.f32 %v2274, %v2275
          %v2277 = vsel %vm2076, %v2179, 0.0
          %v2278 = vadd.f32 %v2276, %v2277
          %v2279 = vsel %vm2076, %v2180, 0.0
          %v2280 = vadd.f32 %v2278, %v2279
          %v2281 = vsel %vm2076, %v2181, 0.0
          %v2282 = vadd.f32 %v2280, %v2281
          %v2283 = vsel %vm2076, %v2182, 0.0
          %v2284 = vadd.f32 %v2282, %v2283
          %v2285 = vsel %vm2076, %v2183, 0.0
          %v2286 = vadd.f32 %v2284, %v2285
          %v2287 = vsel %vm2076, %v2184, 0.0
          %v2288 = vadd.f32 %v2286, %v2287
          %v2289 = vsel %vm2076, %v2185, 0.0
          %v2290 = vadd.f32 %v2288, %v2289
          %v2291 = vsel %vm2076, %v2186, 0.0
          %v2292 = vadd.f32 %v2290, %v2291
          %v2293 = vsel %vm2076, %v2187, 0.0
          %v2294 = vadd.f32 %v2292, %v2293
          %v2295 = vsel %vm2076, %v2188, 0.0
          %v2296 = vadd.f32 %v2294, %v2295
          %v2297 = vsel %vm2076, %v2189, 0.0
          %v2298 = vadd.f32 %v2296, %v2297
          %v2299 = vsel %vm2076, %v2190, 0.0
          %v2300 = vadd.f32 %v2298, %v2299
          %v2301 = vsel %vm2076, %v2191, 0.0
          %v2302 = vadd.f32 %v2300, %v2301
          %v2303 = vsel %vm2076, %v2192, 0.0
          %v2304 = vadd.f32 %v2302, %v2303
          %v2305 = vsel %vm2076, %v2193, 0.0
          %v2306 = vadd.f32 %v2304, %v2305
          %v2307 = vsel %vm2076, %v2194, 0.0
          %v2308 = vadd.f32 %v2306, %v2307
          %v2309 = vsel %vm2076, %v2195, 0.0
          %v2310 = vadd.f32 %v2308, %v2309
          %v2311 = vsel %vm2076, %v2196, 0.0
          %v2312 = vadd.f32 %v2310, %v2311
          %v2313 = vsel %vm2076, %v2197, 0.0
          %v2314 = vadd.f32 %v2312, %v2313
          %v2315 = vsel %vm2076, %v2198, 0.0
          %v2316 = vadd.f32 %v2314, %v2315
          %v2317 = vsel %vm2076, %v2199, 0.0
          %v2318 = vadd.f32 %v2316, %v2317
          %v2319 = vsel %vm2076, %v2200, 0.0
          %v2320 = vadd.f32 %v2318, %v2319
          %v2321 = vsel %vm2076, %v2201, 0.0
          %v2322 = vadd.f32 %v2320, %v2321
          %v2323 = vsel %vm2076, %v2202, 0.0
          %v2324 = vadd.f32 %v2322, %v2323
          %v2325 = vsel %vm2076, %v2203, 0.0
          %v2326 = vadd.f32 %v2324, %v2325
          %v2327 = vsel %vm2076, %v2204, 0.0
          %v2328 = vadd.f32 %v2326, %v2327
          %v2329 = vsel %vm2076, %v2205, 0.0
          %v2330 = vadd.f32 %v2328, %v2329
          %v2331 = vsel %vm2076, %v2206, 0.0
          %v2332 = vadd.f32 %v2330, %v2331
          %v2333 = vsel %vm2076, %v2207, 0.0
          %v2334 = vadd.f32 %v2332, %v2333
          %v2335 = vrot.slane %v2334, 4
          %v2336 = vadd.f32 %v2334, %v2335
          %v2337 = vrot.slane %v2336, 2
          %v2338 = vadd.f32 %v2336, %v2337
          %v2339 = vrot.slane %v2338, 1
          %v2340 = vadd.f32 %v2338, %v2339
          %vm2341 = vcmask 516096
          %2342 = vst.msk [vmem:[%s265] sm:$0x1] %vm2341, %v2340
          %v2343 = vmul.f32 %v2144, %v2144
          %v2344 = vmul.f32 %v2145, %v2145
          %v2345 = vmul.f32 %v2146, %v2146
          %v2346 = vmul.f32 %v2147, %v2147
          %v2347 = vmul.f32 %v2148, %v2148
          %v2348 = vmul.f32 %v2149, %v2149
          %v2349 = vmul.f32 %v2150, %v2150
          %v2350 = vmul.f32 %v2151, %v2151
          %v2351 = vmul.f32 %v2152, %v2152
          %v2352 = vmul.f32 %v2153, %v2153
          %v2353 = vmul.f32 %v2154, %v2154
          %v2354 = vmul.f32 %v2155, %v2155
          %v2355 = vmul.f32 %v2156, %v2156
          %v2356 = vmul.f32 %v2157, %v2157
          %v2357 = vmul.f32 %v2158, %v2158
          %v2358 = vmul.f32 %v2159, %v2159
          %v2359 = vmul.f32 %v2160, %v2160
          %v2360 = vmul.f32 %v2161, %v2161
          %v2361 = vmul.f32 %v2162, %v2162
          %v2362 = vmul.f32 %v2163, %v2163
          %v2363 = vmul.f32 %v2164, %v2164
          %v2364 = vmul.f32 %v2165, %v2165
          %v2365 = vmul.f32 %v2166, %v2166
          %v2366 = vmul.f32 %v2167, %v2167
          %v2367 = vmul.f32 %v2168, %v2168
          %v2368 = vmul.f32 %v2169, %v2169
          %v2369 = vmul.f32 %v2170, %v2170
          %v2370 = vmul.f32 %v2171, %v2171
          %v2371 = vmul.f32 %v2172, %v2172
          %v2372 = vmul.f32 %v2173, %v2173
          %v2373 = vmul.f32 %v2174, %v2174
          %v2374 = vmul.f32 %v2175, %v2175
          %v2375 = vmul.f32 %v2176, %v2176
          %v2376 = vmul.f32 %v2177, %v2177
          %v2377 = vmul.f32 %v2178, %v2178
          %v2378 = vmul.f32 %v2179, %v2179
          %v2379 = vmul.f32 %v2180, %v2180
          %v2380 = vmul.f32 %v2181, %v2181
          %v2381 = vmul.f32 %v2182, %v2182
          %v2382 = vmul.f32 %v2183, %v2183
          %v2383 = vmul.f32 %v2184, %v2184
          %v2384 = vmul.f32 %v2185, %v2185
          %v2385 = vmul.f32 %v2186, %v2186
          %v2386 = vmul.f32 %v2187, %v2187
          %v2387 = vmul.f32 %v2188, %v2188
          %v2388 = vmul.f32 %v2189, %v2189
          %v2389 = vmul.f32 %v2190, %v2190
          %v2390 = vmul.f32 %v2191, %v2191
          %v2391 = vmul.f32 %v2192, %v2192
          %v2392 = vmul.f32 %v2193, %v2193
          %v2393 = vmul.f32 %v2194, %v2194
          %v2394 = vmul.f32 %v2195, %v2195
          %v2395 = vmul.f32 %v2196, %v2196
          %v2396 = vmul.f32 %v2197, %v2197
          %v2397 = vmul.f32 %v2198, %v2198
          %v2398 = vmul.f32 %v2199, %v2199
          %v2399 = vmul.f32 %v2200, %v2200
          %v2400 = vmul.f32 %v2201, %v2201
          %v2401 = vmul.f32 %v2202, %v2202
          %v2402 = vmul.f32 %v2203, %v2203
          %v2403 = vmul.f32 %v2204, %v2204
          %v2404 = vmul.f32 %v2205, %v2205
          %v2405 = vmul.f32 %v2206, %v2206
          %v2406 = vmul.f32 %v2207, %v2207
          %v2407 = vsel %vm2076, %v2343, 0.0
          %v2408 = vsel %vm2076, %v2344, 0.0
          %v2409 = vadd.f32 %v2407, %v2408
          %v2410 = vsel %vm2076, %v2345, 0.0
          %v2411 = vadd.f32 %v2409, %v2410
          %v2412 = vsel %vm2076, %v2346, 0.0
          %v2413 = vadd.f32 %v2411, %v2412
          %v2414 = vsel %vm2076, %v2347, 0.0
          %v2415 = vadd.f32 %v2413, %v2414
          %v2416 = vsel %vm2076, %v2348, 0.0
          %v2417 = vadd.f32 %v2415, %v2416
          %v2418 = vsel %vm2076, %v2349, 0.0
          %v2419 = vadd.f32 %v2417, %v2418
          %v2420 = vsel %vm2076, %v2350, 0.0
          %v2421 = vadd.f32 %v2419, %v2420
          %v2422 = vsel %vm2076, %v2351, 0.0
          %v2423 = vadd.f32 %v2421, %v2422
          %v2424 = vsel %vm2076, %v2352, 0.0
          %v2425 = vadd.f32 %v2423, %v2424
          %v2426 = vsel %vm2076, %v2353, 0.0
          %v2427 = vadd.f32 %v2425, %v2426
          %v2428 = vsel %vm2076, %v2354, 0.0
          %v2429 = vadd.f32 %v2427, %v2428
          %v2430 = vsel %vm2076, %v2355, 0.0
          %v2431 = vadd.f32 %v2429, %v2430
          %v2432 = vsel %vm2076, %v2356, 0.0
          %v2433 = vadd.f32 %v2431, %v2432
          %v2434 = vsel %vm2076, %v2357, 0.0
          %v2435 = vadd.f32 %v2433, %v2434
          %v2436 = vsel %vm2076, %v2358, 0.0
          %v2437 = vadd.f32 %v2435, %v2436
          %v2438 = vsel %vm2076, %v2359, 0.0
          %v2439 = vadd.f32 %v2437, %v2438
          %v2440 = vsel %vm2076, %v2360, 0.0
          %v2441 = vadd.f32 %v2439, %v2440
          %v2442 = vsel %vm2076, %v2361, 0.0
          %v2443 = vadd.f32 %v2441, %v2442
          %v2444 = vsel %vm2076, %v2362, 0.0
          %v2445 = vadd.f32 %v2443, %v2444
          %v2446 = vsel %vm2076, %v2363, 0.0
          %v2447 = vadd.f32 %v2445, %v2446
          %v2448 = vsel %vm2076, %v2364, 0.0
          %v2449 = vadd.f32 %v2447, %v2448
          %v2450 = vsel %vm2076, %v2365, 0.0
          %v2451 = vadd.f32 %v2449, %v2450
          %v2452 = vsel %vm2076, %v2366, 0.0
          %v2453 = vadd.f32 %v2451, %v2452
          %v2454 = vsel %vm2076, %v2367, 0.0
          %v2455 = vadd.f32 %v2453, %v2454
          %v2456 = vsel %vm2076, %v2368, 0.0
          %v2457 = vadd.f32 %v2455, %v2456
          %v2458 = vsel %vm2076, %v2369, 0.0
          %v2459 = vadd.f32 %v2457, %v2458
          %v2460 = vsel %vm2076, %v2370, 0.0
          %v2461 = vadd.f32 %v2459, %v2460
          %v2462 = vsel %vm2076, %v2371, 0.0
          %v2463 = vadd.f32 %v2461, %v2462
          %v2464 = vsel %vm2076, %v2372, 0.0
          %v2465 = vadd.f32 %v2463, %v2464
          %v2466 = vsel %vm2076, %v2373, 0.0
          %v2467 = vadd.f32 %v2465, %v2466
          %v2468 = vsel %vm2076, %v2374, 0.0
          %v2469 = vadd.f32 %v2467, %v2468
          %v2470 = vsel %vm2076, %v2375, 0.0
          %v2471 = vadd.f32 %v2469, %v2470
          %v2472 = vsel %vm2076, %v2376, 0.0
          %v2473 = vadd.f32 %v2471, %v2472
          %v2474 = vsel %vm2076, %v2377, 0.0
          %v2475 = vadd.f32 %v2473, %v2474
          %v2476 = vsel %vm2076, %v2378, 0.0
          %v2477 = vadd.f32 %v2475, %v2476
          %v2478 = vsel %vm2076, %v2379, 0.0
          %v2479 = vadd.f32 %v2477, %v2478
          %v2480 = vsel %vm2076, %v2380, 0.0
          %v2481 = vadd.f32 %v2479, %v2480
          %v2482 = vsel %vm2076, %v2381, 0.0
          %v2483 = vadd.f32 %v2481, %v2482
          %v2484 = vsel %vm2076, %v2382, 0.0
          %v2485 = vadd.f32 %v2483, %v2484
          %v2486 = vsel %vm2076, %v2383, 0.0
          %v2487 = vadd.f32 %v2485, %v2486
          %v2488 = vsel %vm2076, %v2384, 0.0
          %v2489 = vadd.f32 %v2487, %v2488
          %v2490 = vsel %vm2076, %v2385, 0.0
          %v2491 = vadd.f32 %v2489, %v2490
          %v2492 = vsel %vm2076, %v2386, 0.0
          %v2493 = vadd.f32 %v2491, %v2492
          %v2494 = vsel %vm2076, %v2387, 0.0
          %v2495 = vadd.f32 %v2493, %v2494
          %v2496 = vsel %vm2076, %v2388, 0.0
          %v2497 = vadd.f32 %v2495, %v2496
          %v2498 = vsel %vm2076, %v2389, 0.0
          %v2499 = vadd.f32 %v2497, %v2498
          %v2500 = vsel %vm2076, %v2390, 0.0
          %v2501 = vadd.f32 %v2499, %v2500
          %v2502 = vsel %vm2076, %v2391, 0.0
          %v2503 = vadd.f32 %v2501, %v2502
          %v2504 = vsel %vm2076, %v2392, 0.0
          %v2505 = vadd.f32 %v2503, %v2504
          %v2506 = vsel %vm2076, %v2393, 0.0
          %v2507 = vadd.f32 %v2505, %v2506
          %v2508 = vsel %vm2076, %v2394, 0.0
          %v2509 = vadd.f32 %v2507, %v2508
          %v2510 = vsel %vm2076, %v2395, 0.0
          %v2511 = vadd.f32 %v2509, %v2510
          %v2512 = vsel %vm2076, %v2396, 0.0
          %v2513 = vadd.f32 %v2511, %v2512
          %v2514 = vsel %vm2076, %v2397, 0.0
          %v2515 = vadd.f32 %v2513, %v2514
          %v2516 = vsel %vm2076, %v2398, 0.0
          %v2517 = vadd.f32 %v2515, %v2516
          %v2518 = vsel %vm2076, %v2399, 0.0
          %v2519 = vadd.f32 %v2517, %v2518
          %v2520 = vsel %vm2076, %v2400, 0.0
          %v2521 = vadd.f32 %v2519, %v2520
          %v2522 = vsel %vm2076, %v2401, 0.0
          %v2523 = vadd.f32 %v2521, %v2522
          %v2524 = vsel %vm2076, %v2402, 0.0
          %v2525 = vadd.f32 %v2523, %v2524
          %v2526 = vsel %vm2076, %v2403, 0.0
          %v2527 = vadd.f32 %v2525, %v2526
          %v2528 = vsel %vm2076, %v2404, 0.0
          %v2529 = vadd.f32 %v2527, %v2528
          %v2530 = vsel %vm2076, %v2405, 0.0
          %v2531 = vadd.f32 %v2529, %v2530
          %v2532 = vsel %vm2076, %v2406, 0.0
          %v2533 = vadd.f32 %v2531, %v2532
          %v2534 = vrot.slane %v2533, 4
          %v2535 = vadd.f32 %v2533, %v2534
          %v2536 = vrot.slane %v2535, 2
          %v2537 = vadd.f32 %v2535, %v2536
          %v2538 = vrot.slane %v2537, 1
          %v2539 = vadd.f32 %v2537, %v2538
          %2540 = vst.msk [vmem:[%s271] sm:$0x1] %vm2341, %v2539
          %v2541 = vpack.c.bf16 %v2145, %v2144
          %v2542 = vpack.c.bf16 %v2147, %v2146
          %v2543 = vpack.c.bf16 %v2149, %v2148
          %v2544 = vpack.c.bf16 %v2151, %v2150
          %v2545 = vpack.c.bf16 %v2153, %v2152
          %v2546 = vpack.c.bf16 %v2155, %v2154
          %v2547 = vpack.c.bf16 %v2157, %v2156
          %v2548 = vpack.c.bf16 %v2159, %v2158
          %v2549 = vpack.c.bf16 %v2161, %v2160
          %v2550 = vpack.c.bf16 %v2163, %v2162
          %v2551 = vpack.c.bf16 %v2165, %v2164
          %v2552 = vpack.c.bf16 %v2167, %v2166
          %v2553 = vpack.c.bf16 %v2169, %v2168
          %v2554 = vpack.c.bf16 %v2171, %v2170
          %v2555 = vpack.c.bf16 %v2173, %v2172
          %v2556 = vpack.c.bf16 %v2175, %v2174
          %v2557 = vpack.c.bf16 %v2177, %v2176
          %v2558 = vpack.c.bf16 %v2179, %v2178
          %v2559 = vpack.c.bf16 %v2181, %v2180
          %v2560 = vpack.c.bf16 %v2183, %v2182
          %v2561 = vpack.c.bf16 %v2185, %v2184
          %v2562 = vpack.c.bf16 %v2187, %v2186
          %v2563 = vpack.c.bf16 %v2189, %v2188
          %v2564 = vpack.c.bf16 %v2191, %v2190
          %v2565 = vpack.c.bf16 %v2193, %v2192
          %v2566 = vpack.c.bf16 %v2195, %v2194
          %v2567 = vpack.c.bf16 %v2197, %v2196
          %v2568 = vpack.c.bf16 %v2199, %v2198
          %v2569 = vpack.c.bf16 %v2201, %v2200
          %v2570 = vpack.c.bf16 %v2203, %v2202
          %v2571 = vpack.c.bf16 %v2205, %v2204
          %v2572 = vpack.c.bf16 %v2207, %v2206
          %v2605 = vunpack.c.l.b16 %v2541
          %v2606 = vunpack.c.h.b16 %v2541
          %v2607 = vunpack.c.l.b16 %v2542
          %v2608 = vunpack.c.h.b16 %v2542
          %v2609 = vunpack.c.l.b16 %v2543
          %v2610 = vunpack.c.h.b16 %v2543
          %v2611 = vunpack.c.l.b16 %v2544
          %v2612 = vunpack.c.h.b16 %v2544
          %v2613 = vunpack.c.l.b16 %v2545
          %v2614 = vunpack.c.h.b16 %v2545
          %v2615 = vunpack.c.l.b16 %v2546
          %v2616 = vunpack.c.h.b16 %v2546
          %v2617 = vunpack.c.l.b16 %v2547
          %v2618 = vunpack.c.h.b16 %v2547
          %v2619 = vunpack.c.l.b16 %v2548
          %v2620 = vunpack.c.h.b16 %v2548
          %v2621 = vunpack.c.l.b16 %v2549
          %v2622 = vunpack.c.h.b16 %v2549
          %v2623 = vunpack.c.l.b16 %v2550
          %v2624 = vunpack.c.h.b16 %v2550
          %v2625 = vunpack.c.l.b16 %v2551
          %v2626 = vunpack.c.h.b16 %v2551
          %v2627 = vunpack.c.l.b16 %v2552
          %v2628 = vunpack.c.h.b16 %v2552
          %v2629 = vunpack.c.l.b16 %v2553
          %v2630 = vunpack.c.h.b16 %v2553
          %v2631 = vunpack.c.l.b16 %v2554
          %v2632 = vunpack.c.h.b16 %v2554
          %v2633 = vunpack.c.l.b16 %v2555
          %v2634 = vunpack.c.h.b16 %v2555
          %v2635 = vunpack.c.l.b16 %v2556
          %v2636 = vunpack.c.h.b16 %v2556
          %v2637 = vunpack.c.l.b16 %v2557
          %v2638 = vunpack.c.h.b16 %v2557
          %v2639 = vunpack.c.l.b16 %v2558
          %v2640 = vunpack.c.h.b16 %v2558
          %v2641 = vunpack.c.l.b16 %v2559
          %v2642 = vunpack.c.h.b16 %v2559
          %v2643 = vunpack.c.l.b16 %v2560
          %v2644 = vunpack.c.h.b16 %v2560
          %v2645 = vunpack.c.l.b16 %v2561
          %v2646 = vunpack.c.h.b16 %v2561
          %v2647 = vunpack.c.l.b16 %v2562
          %v2648 = vunpack.c.h.b16 %v2562
          %v2649 = vunpack.c.l.b16 %v2563
          %v2650 = vunpack.c.h.b16 %v2563
          %v2651 = vunpack.c.l.b16 %v2564
          %v2652 = vunpack.c.h.b16 %v2564
          %v2653 = vunpack.c.l.b16 %v2565
          %v2654 = vunpack.c.h.b16 %v2565
          %v2655 = vunpack.c.l.b16 %v2566
          %v2656 = vunpack.c.h.b16 %v2566
          %v2657 = vunpack.c.l.b16 %v2567
          %v2658 = vunpack.c.h.b16 %v2567
          %v2659 = vunpack.c.l.b16 %v2568
          %v2660 = vunpack.c.h.b16 %v2568
          %v2661 = vunpack.c.l.b16 %v2569
          %v2662 = vunpack.c.h.b16 %v2569
          %v2663 = vunpack.c.l.b16 %v2570
          %v2664 = vunpack.c.h.b16 %v2570
          %v2665 = vunpack.c.l.b16 %v2571
          %v2666 = vunpack.c.h.b16 %v2571
          %v2667 = vunpack.c.l.b16 %v2572
          %v2668 = vunpack.c.h.b16 %v2572
          %v2669 = vpack.c.b16 %v2605, %v2605
          %v2670 = vpack.c.b16 %v2606, %v2606
          %v2671 = vpack.c.b16 %v2607, %v2607
          %v2672 = vpack.c.b16 %v2608, %v2608
          %v2673 = vpack.c.b16 %v2609, %v2609
          %v2674 = vpack.c.b16 %v2610, %v2610
          %v2675 = vpack.c.b16 %v2611, %v2611
          %v2676 = vpack.c.b16 %v2612, %v2612
          %v2677 = vpack.c.b16 %v2613, %v2613
          %v2678 = vpack.c.b16 %v2614, %v2614
          %v2679 = vpack.c.b16 %v2615, %v2615
          %v2680 = vpack.c.b16 %v2616, %v2616
          %v2681 = vpack.c.b16 %v2617, %v2617
          %v2682 = vpack.c.b16 %v2618, %v2618
          %v2683 = vpack.c.b16 %v2619, %v2619
          %v2684 = vpack.c.b16 %v2620, %v2620
          %v2685 = vpack.c.b16 %v2621, %v2621
          %v2686 = vpack.c.b16 %v2622, %v2622
          %v2687 = vpack.c.b16 %v2623, %v2623
          %v2688 = vpack.c.b16 %v2624, %v2624
          %v2689 = vpack.c.b16 %v2625, %v2625
          %v2690 = vpack.c.b16 %v2626, %v2626
          %v2691 = vpack.c.b16 %v2627, %v2627
          %v2692 = vpack.c.b16 %v2628, %v2628
          %v2693 = vpack.c.b16 %v2629, %v2629
          %v2694 = vpack.c.b16 %v2630, %v2630
          %v2695 = vpack.c.b16 %v2631, %v2631
          %v2696 = vpack.c.b16 %v2632, %v2632
          %v2697 = vpack.c.b16 %v2633, %v2633
          %v2698 = vpack.c.b16 %v2634, %v2634
          %v2699 = vpack.c.b16 %v2635, %v2635
          %v2700 = vpack.c.b16 %v2636, %v2636
          %v2701 = vpack.c.b16 %v2637, %v2637
          %v2702 = vpack.c.b16 %v2638, %v2638
          %v2703 = vpack.c.b16 %v2639, %v2639
          %v2704 = vpack.c.b16 %v2640, %v2640
          %v2705 = vpack.c.b16 %v2641, %v2641
          %v2706 = vpack.c.b16 %v2642, %v2642
          %v2707 = vpack.c.b16 %v2643, %v2643
          %v2708 = vpack.c.b16 %v2644, %v2644
          %v2709 = vpack.c.b16 %v2645, %v2645
          %v2710 = vpack.c.b16 %v2646, %v2646
          %v2711 = vpack.c.b16 %v2647, %v2647
          %v2712 = vpack.c.b16 %v2648, %v2648
          %v2713 = vpack.c.b16 %v2649, %v2649
          %v2714 = vpack.c.b16 %v2650, %v2650
          %v2715 = vpack.c.b16 %v2651, %v2651
          %v2716 = vpack.c.b16 %v2652, %v2652
          %v2717 = vpack.c.b16 %v2653, %v2653
          %v2718 = vpack.c.b16 %v2654, %v2654
          %v2719 = vpack.c.b16 %v2655, %v2655
          %v2720 = vpack.c.b16 %v2656, %v2656
          %v2721 = vpack.c.b16 %v2657, %v2657
          %v2722 = vpack.c.b16 %v2658, %v2658
          %v2723 = vpack.c.b16 %v2659, %v2659
          %v2724 = vpack.c.b16 %v2660, %v2660
          %v2725 = vpack.c.b16 %v2661, %v2661
          %v2726 = vpack.c.b16 %v2662, %v2662
          %v2727 = vpack.c.b16 %v2663, %v2663
          %v2728 = vpack.c.b16 %v2664, %v2664
          %v2729 = vpack.c.b16 %v2665, %v2665
          %v2730 = vpack.c.b16 %v2666, %v2666
          %v2731 = vpack.c.b16 %v2667, %v2667
          %v2732 = vpack.c.b16 %v2668, %v2668
          %vm2797 = vcmask 519168
          %2798 = vst.msk [vmem:[%s259] sm:$0xf] %vm2797, %v2669
          %2799 = vst.msk [vmem:[%s259 + $0x4] sm:$0xf] %vm2797, %v2670
          %2800 = vst.msk [vmem:[%s259 + $0x8] sm:$0xf] %vm2797, %v2671
          %2801 = vst.msk [vmem:[%s259 + $0xc] sm:$0xf] %vm2797, %v2672
          %2802 = vst.msk [vmem:[%s259 + $0x10] sm:$0xf] %vm2797, %v2673
          %2803 = vst.msk [vmem:[%s259 + $0x14] sm:$0xf] %vm2797, %v2674
          %2804 = vst.msk [vmem:[%s259 + $0x18] sm:$0xf] %vm2797, %v2675
          %2805 = vst.msk [vmem:[%s259 + $0x1c] sm:$0xf] %vm2797, %v2676
          %2806 = vst.msk [vmem:[%s259 + $0x20] sm:$0xf] %vm2797, %v2677
          %2807 = vst.msk [vmem:[%s259 + $0x24] sm:$0xf] %vm2797, %v2678
          %2808 = vst.msk [vmem:[%s259 + $0x28] sm:$0xf] %vm2797, %v2679
          %2809 = vst.msk [vmem:[%s259 + $0x2c] sm:$0xf] %vm2797, %v2680
          %2810 = vst.msk [vmem:[%s259 + $0x30] sm:$0xf] %vm2797, %v2681
          %2811 = vst.msk [vmem:[%s259 + $0x34] sm:$0xf] %vm2797, %v2682
          %2812 = vst.msk [vmem:[%s259 + $0x38] sm:$0xf] %vm2797, %v2683
          %2813 = vst.msk [vmem:[%s259 + $0x3c] sm:$0xf] %vm2797, %v2684
          %2814 = vst.msk [vmem:[%s259 + $0x40] sm:$0xf] %vm2797, %v2685
          %2815 = vst.msk [vmem:[%s259 + $0x44] sm:$0xf] %vm2797, %v2686
          %2816 = vst.msk [vmem:[%s259 + $0x48] sm:$0xf] %vm2797, %v2687
          %2817 = vst.msk [vmem:[%s259 + $0x4c] sm:$0xf] %vm2797, %v2688
          %2818 = vst.msk [vmem:[%s259 + $0x50] sm:$0xf] %vm2797, %v2689
          %2819 = vst.msk [vmem:[%s259 + $0x54] sm:$0xf] %vm2797, %v2690
          %2820 = vst.msk [vmem:[%s259 + $0x58] sm:$0xf] %vm2797, %v2691
          %2821 = vst.msk [vmem:[%s259 + $0x5c] sm:$0xf] %vm2797, %v2692
          %2822 = vst.msk [vmem:[%s259 + $0x60] sm:$0xf] %vm2797, %v2693
          %2823 = vst.msk [vmem:[%s259 + $0x64] sm:$0xf] %vm2797, %v2694
          %2824 = vst.msk [vmem:[%s259 + $0x68] sm:$0xf] %vm2797, %v2695
          %2825 = vst.msk [vmem:[%s259 + $0x6c] sm:$0xf] %vm2797, %v2696
          %2826 = vst.msk [vmem:[%s259 + $0x70] sm:$0xf] %vm2797, %v2697
          %2827 = vst.msk [vmem:[%s259 + $0x74] sm:$0xf] %vm2797, %v2698
          %2828 = vst.msk [vmem:[%s259 + $0x78] sm:$0xf] %vm2797, %v2699
          %2829 = vst.msk [vmem:[%s259 + $0x7c] sm:$0xf] %vm2797, %v2700
          %2830 = vst.msk [vmem:[%s259 + $0x80] sm:$0xf] %vm2797, %v2701
          %2831 = vst.msk [vmem:[%s259 + $0x84] sm:$0xf] %vm2797, %v2702
          %2832 = vst.msk [vmem:[%s259 + $0x88] sm:$0xf] %vm2797, %v2703
          %2833 = vst.msk [vmem:[%s259 + $0x8c] sm:$0xf] %vm2797, %v2704
          %2834 = vst.msk [vmem:[%s259 + $0x90] sm:$0xf] %vm2797, %v2705
          %2835 = vst.msk [vmem:[%s259 + $0x94] sm:$0xf] %vm2797, %v2706
          %2836 = vst.msk [vmem:[%s259 + $0x98] sm:$0xf] %vm2797, %v2707
          %2837 = vst.msk [vmem:[%s259 + $0x9c] sm:$0xf] %vm2797, %v2708
          %2838 = vst.msk [vmem:[%s259 + $0xa0] sm:$0xf] %vm2797, %v2709
          %2839 = vst.msk [vmem:[%s259 + $0xa4] sm:$0xf] %vm2797, %v2710
          %2840 = vst.msk [vmem:[%s259 + $0xa8] sm:$0xf] %vm2797, %v2711
          %2841 = vst.msk [vmem:[%s259 + $0xac] sm:$0xf] %vm2797, %v2712
          %2842 = vst.msk [vmem:[%s259 + $0xb0] sm:$0xf] %vm2797, %v2713
          %2843 = vst.msk [vmem:[%s259 + $0xb4] sm:$0xf] %vm2797, %v2714
          %2844 = vst.msk [vmem:[%s259 + $0xb8] sm:$0xf] %vm2797, %v2715
          %2845 = vst.msk [vmem:[%s259 + $0xbc] sm:$0xf] %vm2797, %v2716
          %2846 = vst.msk [vmem:[%s259 + $0xc0] sm:$0xf] %vm2797, %v2717
          %2847 = vst.msk [vmem:[%s259 + $0xc4] sm:$0xf] %vm2797, %v2718
          %2848 = vst.msk [vmem:[%s259 + $0xc8] sm:$0xf] %vm2797, %v2719
          %2849 = vst.msk [vmem:[%s259 + $0xcc] sm:$0xf] %vm2797, %v2720
          %2850 = vst.msk [vmem:[%s259 + $0xd0] sm:$0xf] %vm2797, %v2721
          %2851 = vst.msk [vmem:[%s259 + $0xd4] sm:$0xf] %vm2797, %v2722
          %2852 = vst.msk [vmem:[%s259 + $0xd8] sm:$0xf] %vm2797, %v2723
          %2853 = vst.msk [vmem:[%s259 + $0xdc] sm:$0xf] %vm2797, %v2724
          %2854 = vst.msk [vmem:[%s259 + $0xe0] sm:$0xf] %vm2797, %v2725
          %2855 = vst.msk [vmem:[%s259 + $0xe4] sm:$0xf] %vm2797, %v2726
          %2856 = vst.msk [vmem:[%s259 + $0xe8] sm:$0xf] %vm2797, %v2727
          %2857 = vst.msk [vmem:[%s259 + $0xec] sm:$0xf] %vm2797, %v2728
          %2858 = vst.msk [vmem:[%s259 + $0xf0] sm:$0xf] %vm2797, %v2729
          %2859 = vst.msk [vmem:[%s259 + $0xf4] sm:$0xf] %vm2797, %v2730
          %2860 = vst.msk [vmem:[%s259 + $0xf8] sm:$0xf] %vm2797, %v2731
          %2861 = vst.msk [vmem:[%s259 + $0xfc] sm:$0xf] %vm2797, %v2732
        $region44: #{_lambda_.2} parent=27 // pred_fallthru
          _
        %s2862 = sand.u32 %s100, 1
        %s2863 = scalar_lea.sflag [#allocation5], %s2862
        %s2864 = sand.u32 %s100, 1
        %s2865 = smul.addr %s2864, 256
        %s2866 = scalar_lea.vmem [#allocation8], %s2865
        %s2867 = sand.u32 %s26, 1
        %s2868 = scalar_lea.sflag [#allocation10], %s2867
        %s2869 = sand.u32 %s126, 1
        %s2870 = scalar_lea.vmem [#allocation9], %s2869
        %s2871 = sand.u32 %s26, 1
        %s2872 = scalar_lea.sflag [#allocation10], %s2871
        %s2873 = sand.u32 %s152, 1
        %s2874 = scalar_lea.vmem [#allocation11], %s2873
        // Predicated region
        $region45: #{_lambda_.2} parent=27 // pred_check
          %p2875 = pneg %p110
        $region46: #{_lambda_.2} parent=27 // pred_check_branch
          %2877 = sbr.rel (%p2875) target = $region48
        $region47: #{_lambda_.2} parent=27 // pred_region
          %s2878 = smul.u32 64, %s30
          %s2880 = ssub.s32 4096, 4096
          %2881 = vsyncadd %s2863, %s2880
          %s2882 = smul.addr %s2878, 64
          %s2883 = scalar_lea.hbm %s2, %s2882
          %s2884 = sshll.u32 %s2866, 4
          %s2885 = int_to_ptr.vmem [resolvable:$true] %s2884
          %2890 = dma.vmem_to_hbm [thread:$0]  %s2885, 4096, %s2883, %s2863, 64, 64, 4
        $region48: #{_lambda_.2} parent=27 // pred_fallthru
          _
        // Predicated region
        $region49: #{_lambda_.2} parent=27 // pred_check
          %p2891 = pneg %p136
        $region50: #{_lambda_.2} parent=27 // pred_check_branch
          %2893 = sbr.rel (%p2891) target = $region52
        $region51: #{_lambda_.2} parent=27 // pred_region
          %s2895 = ssub.s32 16, 16
          %2896 = vsyncadd %s2868, %s2895
          %s2897 = smul.addr %s30, 16
          %s2898 = scalar_lea.hbm %s3, %s2897
          %s2900 = sshll.u32 %s2870, 4
          %s2901 = int_to_ptr.vmem [resolvable:$true] %s2900
          %2903 = dma.vmem_to_hbm [thread:$0]  %s2901, 16, %s2898, %s2868
        $region52: #{_lambda_.2} parent=27 // pred_fallthru
          _
        // Predicated region
        $region53: #{_lambda_.2} parent=27 // pred_check
          %p2904 = pneg %p162
        $region54: #{_lambda_.2} parent=27 // pred_check_branch
          %2906 = sbr.rel (%p2904) target = $region56
        $region55: #{_lambda_.2} parent=27 // pred_region
          %s2908 = ssub.s32 16, 16
          %2909 = vsyncadd %s2872, %s2908
          %s2910 = smul.addr %s30, 16
          %s2911 = scalar_lea.hbm %s4, %s2910
          %s2913 = sshll.u32 %s2874, 4
          %s2914 = int_to_ptr.vmem [resolvable:$true] %s2913
          %2916 = dma.vmem_to_hbm [thread:$0]  %s2914, 16, %s2911, %s2872
        $region56: #{_lambda_.2} parent=27 // pred_fallthru
          _
      $region28: #{_lambda_.2} parent=5 // pred_fallthru
        _
      %p2917 = scmp.le.s32.totalorder 2, %s21
      // Predicated region
      $region57: #{_lambda_.2} parent=5 // pred_check
        %p2918 = pneg %p2917
      $region58: #{_lambda_.2} parent=5 // pred_check_branch
        %2920 = sbr.rel (%p2918) target = $region60
      $region59: #{_lambda_.2} parent=5 // pred_region
        %s2921 = ssub.s32 %s21, 2
        // Predicated region
        $region61: #{_lambda_.2} parent=59 // pred_check
          %p2922 = pneg %p116
        $region62: #{_lambda_.2} parent=59 // pred_check_branch
          %2924 = sbr.rel (%p2922) target = $region64
        $region63: #{_lambda_.2} parent=59 // pred_region
          %s2925 = sand.u32 %s101, 1
          %s2926 = scalar_lea.sflag [#allocation5], %s2925
          %s2927 = sand.u32 %s101, 1
          %s2928 = smul.addr %s2927, 256
          %s2929 = scalar_lea.vmem [#allocation8], %s2928
          %2930 = dma.done %s2926, 4096
        $region64: #{_lambda_.2} parent=59 // pred_fallthru
          _
        // Predicated region
        $region65: #{_lambda_.2} parent=59 // pred_check
          %p2931 = pneg %p142
        $region66: #{_lambda_.2} parent=59 // pred_check_branch
          %2933 = sbr.rel (%p2931) target = $region68
        $region67: #{_lambda_.2} parent=59 // pred_region
          %s2934 = sand.u32 %s27, 1
          %s2935 = scalar_lea.sflag [#allocation10], %s2934
          %s2936 = sand.u32 %s127, 1
          %s2937 = scalar_lea.vmem [#allocation9], %s2936
          %2938 = dma.done %s2935, 16
        $region68: #{_lambda_.2} parent=59 // pred_fallthru
          _
        // Predicated region
        $region69: #{_lambda_.2} parent=59 // pred_check
          %p2939 = pneg %p168
        $region70: #{_lambda_.2} parent=59 // pred_check_branch
          %2941 = sbr.rel (%p2939) target = $region72
        $region71: #{_lambda_.2} parent=59 // pred_region
          %s2942 = sand.u32 %s27, 1
          %s2943 = scalar_lea.sflag [#allocation10], %s2942
          %s2944 = sand.u32 %s153, 1
          %s2945 = scalar_lea.vmem [#allocation11], %s2944
          %2946 = dma.done %s2943, 16
        $region72: #{_lambda_.2} parent=59 // pred_fallthru
          _
      $region60: #{_lambda_.2} parent=5 // pred_fallthru
        _
    $region6: #{_lambda_.2} parent=1 // loop_footer
      %s25 = sadd.s32 1, %s21
    $region7: #{_lambda_.2} parent=1 // loop_footer_branch
      %20 = sbr.rel target = $region3
    $region8: #{_lambda_.2} parent=1 // loop_exit
      _
    %2947 = vsyncpa [#allocation4], 1
    %s2948 = scalar_lea.sflag [#allocation4], 1
    %2949 = vsyncpa %s2948, 1
    %2950 = vsyncpa [#allocation7], 1
    %2951 = vsyncpa [#allocation5], 1
    %s2952 = scalar_lea.sflag [#allocation5], 1
    %2953 = vsyncpa %s2952, 1
    %2954 = vsyncpa [#allocation10], 1
    %s2955 = scalar_lea.sflag [#allocation10], 1
    %2956 = vsyncpa %s2955, 1

</llo_original>
